<compile_context>
chip_gen: v7x
topology: tpu7x:2x2x1
jax: 0.10.0
libtpu: 0.0.40
codegen_flags: <defaults>
</compile_context>

<pallas_src>
import functools

import numpy as np

import jax
import jax.numpy as jnp
from jax.experimental import pallas as pl
from jax.experimental.pallas import tpu as pltpu

HIDDEN = 256      # forced by the hard-coded 256 inside forward()
OUTPUT = 128      # output_size (vocabulary) — synthetic, lane-dense
MAXLEN = 16       # MAX_LENGTH — synthetic
LANEPAD = 128     # attention logits / weights padded to a full lane width

# Packed-slab widths (all split offsets are multiples of 128 -> tile aligned).
W256_N = 6 * HIDDEN + 6 * HIDDEN + 3 * HIDDEN + 3 * HIDDEN + OUTPUT      # 4736
BIAS_N = LANEPAD + HIDDEN + 6 * HIDDEN + 6 * HIDDEN + 3 * HIDDEN + 3 * HIDDEN + OUTPUT  # 5120


def _sigmoid_exact(x):
    # Exact sigmoid (plain divide): gate values feed the recurrence, so no
    # approximate reciprocal here (it would drift over a multi-step decode).
    return 1.0 / (1.0 + jnp.exp(-x))


def attn_decoder_kernel(
    tok_sref,              # SMEM (T,) int32 scalar-prefetch (drives the emb-row index_map)
    hidden0_ref,           # VMEM (1, H)          f32   initial hidden state
    enc_ref,               # VMEM (LANEPAD, H)    bf16  encoder outputs, rows >= L zero-padded
    emb_row_ref,           # VMEM (1, 1, H)       bf16  only the selected row is DMA'd per step
    w512_ref,              # VMEM (2H, LANEPAD+H) bf16  [wa | wc]
    w256_ref,              # VMEM (H, W256_N)     bf16  [wih_fb | whh_fb | wih_g | whh_g | wo]
    bias_ref,              # VMEM (1, BIAS_N)     f32   all biases packed
    logp_ref,              # out block (1, 1, V)        f32 log-probs for step t
    hid_out_ref,           # out block (1, H)           f32 final hidden (resident block)
    attnw_ref,             # out block (1, 1, LANEPAD)  f32 attention weights for step t
    h_carry,               # VMEM scratch (1, H)   f32 — recurrent hidden carried across steps
    cat_ref,               # VMEM scratch (1, 2H)  f32 — fused-concat staging buffer
    xg_ref,                # VMEM scratch (2, H)   f32 — stacked GRU inputs (M=2 dot)
    *, actual_len,
):
    H = hidden0_ref.shape[1]
    LP = attnw_ref.shape[2]
    V = logp_ref.shape[2]
    t = pl.program_id(0)

    @pl.when(t == 0)
    def _():
        h_carry[...] = hidden0_ref[...]

    hid = h_carry[...]                                   # (1, H) f32
    emb = emb_row_ref[0].astype(jnp.float32)             # (1, H) f32
    # TODO(synk): nn.Dropout(p=0.1) treated as eval-mode identity.

    # ---- static slices of the packed slabs (every offset is a multiple of 128)
    wa = w512_ref[:, 0:LP]                               # (2H, LP)  bf16
    wc = w512_ref[:, LP:LP + H]                          # (2H, H)   bf16
    o = 0
    wih_fb = w256_ref[:, o:o + 6 * H]; o += 6 * H        # (H, 6H)
    whh_fb = w256_ref[:, o:o + 6 * H]; o += 6 * H        # (H, 6H)
    wih_g = w256_ref[:, o:o + 3 * H]; o += 3 * H         # (H, 3H)
    whh_g = w256_ref[:, o:o + 3 * H]; o += 3 * H         # (H, 3H)
    wo = w256_ref[:, o:o + V]                            # (H, V)
    o = 0
    ba = bias_ref[:, o:o + LP]; o += LP
    bc = bias_ref[:, o:o + H]; o += H
    bih_fb = bias_ref[:, o:o + 6 * H]; o += 6 * H
    bhh_fb = bias_ref[:, o:o + 6 * H]; o += 6 * H
    bih_g = bias_ref[:, o:o + 3 * H]; o += 3 * H
    bhh_g = bias_ref[:, o:o + 3 * H]; o += 3 * H
    bo = bias_ref[:, o:o + V]

    def dot_bf16(a_f32, w_bf16):
        # MXU matmul: bf16 x bf16 inputs, f32 accumulation.
        return jnp.dot(a_f32.astype(jnp.bfloat16), w_bf16,
                       preferred_element_type=jnp.float32)

    # --- attn_weights = softmax(relu(attn(cat(emb, hid))), dim=1) --------------
    # fused concat -> single K=2H matmul (one MXU issue instead of two).
    cat_ref[:, 0:H] = emb
    cat_ref[:, H:2 * H] = hid
    logits = dot_bf16(cat_ref[...], wa) + ba             # (1, LP)
    s = jnp.maximum(logits, 0.0)
    lane = jax.lax.broadcasted_iota(jnp.int32, s.shape, 1)
    s = jnp.where(lane < actual_len, s, jnp.float32(-1e30))   # mask padded lanes
    m = jnp.max(s, axis=1, keepdims=True)
    e = jnp.exp(s - m)                                   # padded lanes underflow to exactly 0
    attn_w = e * pl.reciprocal(jnp.sum(e, axis=1, keepdims=True), approx=True)
    attnw_ref[0] = attn_w

    # --- attn_applied = bmm(attn_w, encoder_outputs) ----------------------------
    # Padded attn_w lanes AND padded enc rows are exactly zero, so the full
    # lane-dense K=LP dot is exact.  Explicit bf16 x bf16, f32 accumulate.
    attn_applied = jnp.dot(attn_w.astype(jnp.bfloat16), enc_ref[...],
                           preferred_element_type=jnp.float32)       # (1, H)

    # --- output = relu(attn_combine(cat(emb, attn_applied))) -------------------
    cat_ref[:, H:2 * H] = attn_applied   # emb still lives in the first half
    x0 = jnp.maximum(dot_bf16(cat_ref[...], wc) + bc, 0.0)           # (1, H)

    def gru_gates(gi, gh, h_prev):
        # PyTorch GRU gate order (r, z, n); n uses r * (W_hn h + b_hn).
        r = _sigmoid_exact(gi[:, 0:H] + gh[:, 0:H])
        z = _sigmoid_exact(gi[:, H:2 * H] + gh[:, H:2 * H])
        n = jnp.tanh(gi[:, 2 * H:3 * H] + r * gh[:, 2 * H:3 * H])
        return (1.0 - z) * n + z * h_prev

    # --- bidirectional GRU over the length-1 sequence, h0 = hidden for both
    #     directions (hidden.repeat(2,1,1)); fw/bw weights fused along N --------
    gi_fb = dot_bf16(x0, wih_fb) + bih_fb                # (1, 6H)
    gh_fb = dot_bf16(hid, whh_fb) + bhh_fb               # (1, 6H)
    h_fw = gru_gates(gi_fb[:, 0:3 * H], gh_fb[:, 0:3 * H], hid)
    h_bw = gru_gates(gi_fb[:, 3 * H:6 * H], gh_fb[:, 3 * H:6 * H], hid)
    # bioutput.view([-1,1,256]) -> length-2 sequence [h_fw, h_bw];
    # torch.mean(bihidden, dim=0, keepdim=True) -> mean of the two final states.
    h_mean = 0.5 * (h_fw + h_bw)

    # --- unidirectional GRU over [h_fw, h_bw], h0 = h_mean ----------------------
    # The two input projections share the RHS -> batch them into one M=2 dot.
    xg_ref[0:1, :] = h_fw
    xg_ref[1:2, :] = h_bw
    gi_stack = dot_bf16(xg_ref[...], wih_g) + bih_g      # (2, 3H)
    gh1 = dot_bf16(h_mean, whh_g) + bhh_g
    h1 = gru_gates(gi_stack[0:1, :], gh1, h_mean)
    gh2 = dot_bf16(h1, whh_g) + bhh_g
    h2 = gru_gates(gi_stack[1:2, :], gh2, h1)

    # --- output = log_softmax(out(output[0]), dim=1); output[0] == h1 ----------
    out_logits = dot_bf16(h1, wo) + bo                   # (1, V)
    m2 = jnp.max(out_logits, axis=1, keepdims=True)
    lse = m2 + jnp.log(jnp.sum(jnp.exp(out_logits - m2), axis=1, keepdims=True))
    logp_ref[0] = out_logits - lse
    hid_out_ref[...] = h2        # constant-index output block: final write persists
    h_carry[...] = h2            # feeds step t+1


def init_params(key, hidden=HIDDEN, output=OUTPUT, maxlen=MAXLEN):
    """Module-layout parameters; weights stored as (in_features, out_features)
    so the kernel computes x @ W (== PyTorch's x @ W.T with W as (out, in))."""
    names = ["emb", "wa", "ba", "wc", "bc",
             "wih_f", "whh_f", "bih_f", "bhh_f",
             "wih_b", "whh_b", "bih_b", "bhh_b",
             "wih_g", "whh_g", "bih_g", "bhh_g",
             "wo", "bo"]
    shapes = {
        "emb":   (output, hidden),
        "wa":    (2 * hidden, maxlen), "ba": (1, maxlen),
        "wc":    (2 * hidden, hidden), "bc": (1, hidden),
        "wih_f": (hidden, 3 * hidden), "whh_f": (hidden, 3 * hidden),
        "bih_f": (1, 3 * hidden),      "bhh_f": (1, 3 * hidden),
        "wih_b": (hidden, 3 * hidden), "whh_b": (hidden, 3 * hidden),
        "bih_b": (1, 3 * hidden),      "bhh_b": (1, 3 * hidden),
        "wih_g": (hidden, 3 * hidden), "whh_g": (hidden, 3 * hidden),
        "bih_g": (1, 3 * hidden),      "bhh_g": (1, 3 * hidden),
        "wo":    (hidden, output),     "bo": (1, output),
    }
    ks = jax.random.split(key, len(names))
    return {n: (0.08 * jax.random.normal(k, shapes[n])).astype(jnp.float32)
            for n, k in zip(names, ks)}


def prepare_kernel_params(p, lanepad=LANEPAD):
    """Kernel layout: bf16 weights (half the streamed bytes), attention width
    lane-padded to 128, everything packed into three contiguous slabs
    (one K=512 weight slab, one K=256 weight slab, one f32 bias row), and the
    embedding table reshaped (V, 1, H) for the scalar-prefetch row gather."""
    H = HIDDEN
    L = p["wa"].shape[1]
    V = p["emb"].shape[0]
    wdt = jnp.bfloat16
    wa = jnp.zeros((2 * H, lanepad), jnp.float32).at[:, :L].set(p["wa"])
    ba = jnp.zeros((1, lanepad), jnp.float32).at[:, :L].set(p["ba"])
    w512 = jnp.concatenate([wa, p["wc"]], axis=1).astype(wdt)            # (2H, LP+H)
    w256 = jnp.concatenate([
        jnp.concatenate([p["wih_f"], p["wih_b"]], axis=1),               # (H, 6H)
        jnp.concatenate([p["whh_f"], p["whh_b"]], axis=1),               # (H, 6H)
        p["wih_g"], p["whh_g"], p["wo"],
    ], axis=1).astype(wdt)                                               # (H, W256_N)
    bias = jnp.concatenate([
        ba, p["bc"],
        jnp.concatenate([p["bih_f"], p["bih_b"]], axis=1),
        jnp.concatenate([p["bhh_f"], p["bhh_b"]], axis=1),
        p["bih_g"], p["bhh_g"], p["bo"],
    ], axis=1).astype(jnp.float32)                                       # (1, BIAS_N)
    # TODO(synk): generation-specific weight quantization (int8 on v5e/v6e,
    # fp8 on v7x — its MXU has no int support) would halve the one-time DMA.
    return {
        "emb": p["emb"].astype(wdt).reshape(V, 1, H),
        "w512": w512, "w256": w256, "bias": bias,
    }


@jax.jit
def attn_decoder_decode(kparams, tokens, hidden, encoder_outputs):
    """Teacher-forced decode of T tokens fused into ONE pallas_call.

    Per-step semantics are identical to AttnDecoderRNN.forward(); the hidden
    returned by step t feeds step t+1 (VMEM scratch carry).  All weights have
    constant index_maps, so they are streamed from HBM once per call and stay
    VMEM-resident across the T steps."""
    H, LP = HIDDEN, LANEPAD
    T = tokens.shape[0]
    L = encoder_outputs.shape[0]
    V = kparams["emb"].shape[0]

    tokens = tokens.reshape((T,)).astype(jnp.int32)
    hid2d = hidden.reshape(1, H).astype(jnp.float32)
    enc_pad = jnp.zeros((LP, H), jnp.bfloat16).at[:L, :].set(
        encoder_outputs.astype(jnp.bfloat16))

    const2 = lambda t, tok: (0, 0)   # resident blocks (never re-DMA'd across steps)

    in_specs = [
        pl.BlockSpec((1, H), const2),                                  # initial hidden
        pl.BlockSpec((LP, H), const2),                                 # encoder outputs (bf16, padded)
        pl.BlockSpec((1, 1, H), lambda t, tok: (tok[t], 0, 0)),        # embedding row gather
        pl.BlockSpec((2 * H, LP + H), const2),                         # K=512 weight slab
        pl.BlockSpec((H, W256_N), const2),                             # K=256 weight slab
        pl.BlockSpec((1, BIAS_N), const2),                             # packed biases
    ]
    out_specs = (
        pl.BlockSpec((1, 1, V), lambda t, tok: (t, 0, 0)),             # per-step log-probs
        pl.BlockSpec((1, H), const2),                                  # final hidden (resident)
        pl.BlockSpec((1, 1, LP), lambda t, tok: (t, 0, 0)),            # per-step attention weights
    )
    out_shapes = (
        jax.ShapeDtypeStruct((T, 1, V), jnp.float32),
        jax.ShapeDtypeStruct((1, H), jnp.float32),
        jax.ShapeDtypeStruct((T, 1, LP), jnp.float32),
    )

    grid_spec = pltpu.PrefetchScalarGridSpec(
        num_scalar_prefetch=1,
        grid=(T,),
        in_specs=in_specs,
        out_specs=out_specs,
        scratch_shapes=[
            pltpu.VMEM((1, H), jnp.float32),       # recurrent hidden carry
            pltpu.VMEM((1, 2 * H), jnp.float32),   # fused-concat staging
            pltpu.VMEM((2, H), jnp.float32),       # stacked GRU inputs (M=2)
        ],
    )

    logp, h_new, attn_w = pl.pallas_call(
        functools.partial(attn_decoder_kernel, actual_len=L),
        out_shape=out_shapes,
        grid_spec=grid_spec,
        compiler_params=pltpu.CompilerParams(
            dimension_semantics=("arbitrary",),     # steps carry recurrent state
            vmem_limit_bytes=32 * 1024 * 1024),
        cost_estimate=pl.CostEstimate(
            flops=3_700_000 * T,
            transcendentals=3_500 * T,
            bytes_accessed=2_950_000 + 2_048 * T),
    )(tokens, hid2d, enc_pad, kparams["emb"],
      kparams["w512"], kparams["w256"], kparams["bias"])

    # TODO(synk): for batch >= 2 decode streams, add a leading 'parallel' batch
    # grid axis (uses the second TensorCore on v7x) and batch the M=1 matmuls.
    return logp.reshape(T, V), h_new.reshape(1, 1, H), attn_w[:, 0, :L]


def attn_decoder_forward(kparams, token, hidden, encoder_outputs):
    """Single decode step — same signature/semantics as the PyTorch forward()."""
    return attn_decoder_decode(kparams, jnp.reshape(token, (1,)),
                               hidden, encoder_outputs)


def reference_decode_np(kp, tokens, hidden, enc, maxlen=MAXLEN):
    """Pure numpy (float64) reference using the SAME bf16-prepared parameters."""
    H, LP = HIDDEN, LANEPAD
    V = int(kp["emb"].shape[0])
    f64 = np.float64
    to64 = lambda a: np.asarray(a.astype(jnp.float32), dtype=f64)
    w512, w256, bias = to64(kp["w512"]), to64(kp["w256"]), to64(kp["bias"])
    emb_tab = to64(kp["emb"]).reshape(V, H)
    enc64 = to64(jnp.asarray(enc, jnp.float32).astype(jnp.bfloat16))   # kernel sees bf16 enc

    wa, wc = w512[:, :LP], w512[:, LP:LP + H]
    o = 0
    wih_fb = w256[:, o:o + 6 * H]; o += 6 * H
    whh_fb = w256[:, o:o + 6 * H]; o += 6 * H
    wih_g = w256[:, o:o + 3 * H]; o += 3 * H
    whh_g = w256[:, o:o + 3 * H]; o += 3 * H
    wo = w256[:, o:o + V]
    b, o = {}, 0
    for name, n in [("ba", LP), ("bc", H), ("bih_fb", 6 * H), ("bhh_fb", 6 * H),
                    ("bih_g", 3 * H), ("bhh_g", 3 * H), ("bo", V)]:
        b[name] = bias[:, o:o + n]; o += n

    def sigmoid(x): return 1.0 / (1.0 + np.exp(-x))

    def gates(gi, gh, hp):
        r = sigmoid(gi[:, :H] + gh[:, :H])
        z = sigmoid(gi[:, H:2 * H] + gh[:, H:2 * H])
        n = np.tanh(gi[:, 2 * H:] + r * gh[:, 2 * H:])
        return (1.0 - z) * n + z * hp

    hid = np.asarray(hidden, dtype=f64).reshape(1, H)
    logps, aws = [], []
    for t in range(len(tokens)):
        e = emb_tab[int(tokens[t])].reshape(1, H)
        s = np.maximum(np.concatenate([e, hid], 1) @ wa + b["ba"], 0.0)
        s[:, maxlen:] = -np.inf
        s = s - s.max(axis=1, keepdims=True)
        ex = np.exp(s)
        aw = ex / ex.sum(axis=1, keepdims=True)
        attn_applied = aw[:, :maxlen] @ enc64[:maxlen]
        x0 = np.maximum(np.concatenate([e, attn_applied], 1) @ wc + b["bc"], 0.0)
        gi_fb = x0 @ wih_fb + b["bih_fb"]
        gh_fb = hid @ whh_fb + b["bhh_fb"]
        h_fw = gates(gi_fb[:, :3 * H], gh_fb[:, :3 * H], hid)
        h_bw = gates(gi_fb[:, 3 * H:], gh_fb[:, 3 * H:], hid)
        h_mean = 0.5 * (h_fw + h_bw)
        h1 = gates(h_fw @ wih_g + b["bih_g"], h_mean @ whh_g + b["bhh_g"], h_mean)
        h2 = gates(h_bw @ wih_g + b["bih_g"], h1 @ whh_g + b["bhh_g"], h1)
        ol = h1 @ wo + b["bo"]
        ol = ol - ol.max(axis=1, keepdims=True)
        logps.append(ol - np.log(np.exp(ol).sum(axis=1, keepdims=True)))
        aws.append(aw[:, :maxlen])
        hid = h2
    return (np.concatenate(logps, 0).astype(np.float32),
            hid.reshape(1, 1, H).astype(np.float32),
            np.concatenate(aws, 0).astype(np.float32))


if __name__ == "__main__":
    key = jax.random.PRNGKey(0)
    pkey, ekey = jax.random.split(key)
    raw_params = init_params(pkey)
    kparams = prepare_kernel_params(raw_params)

    hidden0 = jnp.zeros((1, 1, HIDDEN), dtype=jnp.float32)             # initHidden()
    encoder_outputs = jax.random.normal(ekey, (MAXLEN, HIDDEN), dtype=jnp.float32)

    # --- single step (matches the PyTorch forward() call) ---------------------
    token = jnp.array([3], dtype=jnp.int32)
    logp1, h1, aw1 = attn_decoder_forward(kparams, token, hidden0, encoder_outputs)
    jax.block_until_ready((logp1, h1, aw1))

    # --- fused T-step teacher-forced decode (one pallas_call, resident weights)
    tokens = jnp.array([3, 17, 42, 5, 99, 0, 64, 7], dtype=jnp.int32)
    T = tokens.shape[0]
    logpT, hT, awT = attn_decoder_decode(kparams, tokens, hidden0, encoder_outputs)
    jax.block_until_ready((logpT, hT, awT))

    # shape checks
    assert logp1.shape == (1, OUTPUT) and h1.shape == (1, 1, HIDDEN) and aw1.shape == (1, MAXLEN)
    assert logpT.shape == (T, OUTPUT) and hT.shape == (1, 1, HIDDEN) and awT.shape == (T, MAXLEN)

    # numerical reference (numpy float64, same bf16 parameters)
    ref_logp, ref_h, ref_aw = reference_decode_np(
        kparams, np.asarray(tokens), np.asarray(hidden0), np.asarray(encoder_outputs))
    np.testing.assert_allclose(np.asarray(logpT), ref_logp, atol=0.2, rtol=0)
    np.testing.assert_allclose(np.asarray(awT), ref_aw, atol=0.05, rtol=0)
    np.testing.assert_allclose(np.asarray(hT).ravel(), ref_h.ravel(), atol=0.1, rtol=0)

    # step 0 of the fused decode must match the single-step call
    np.testing.assert_allclose(np.asarray(logp1[0]), np.asarray(logpT[0]), atol=1e-4, rtol=0)
    np.testing.assert_allclose(np.asarray(aw1), np.asarray(awT[0:1]), atol=1e-4, rtol=0)

    # sanity: finite, softmax / log_softmax normalization
    assert np.isfinite(np.asarray(logpT)).all()
    assert np.isfinite(np.asarray(hT)).all()
    assert np.isfinite(np.asarray(awT)).all()
    assert np.allclose(np.asarray(awT).sum(axis=1), 1.0, atol=5e-3)
    assert np.allclose(np.exp(np.asarray(logpT)).sum(axis=1), 1.0, atol=5e-3)
    print("KERNEL_OK")
</pallas_src>

<mosaic_0001>
module attributes {stable_mosaic.version = 11 : i64} {
  func.func @attn_decoder_kernel(%arg0: i32, %arg1: memref<1xi32, #tpu.memory_space<smem>>, %arg2: memref<1x256xf32, #tpu.memory_space<vmem>>, %arg3: memref<128x256xbf16, #tpu.memory_space<vmem>>, %arg4: memref<1x1x256xbf16, #tpu.memory_space<vmem>>, %arg5: memref<512x384xbf16, #tpu.memory_space<vmem>>, %arg6: memref<256x4736xbf16, #tpu.memory_space<vmem>>, %arg7: memref<1x5120xf32, #tpu.memory_space<vmem>>, %arg8: memref<1x1x128xf32, #tpu.memory_space<vmem>>, %arg9: memref<1x256xf32, #tpu.memory_space<vmem>>, %arg10: memref<1x1x128xf32, #tpu.memory_space<vmem>>, %arg11: memref<1x256xf32, #tpu.memory_space<vmem>>, %arg12: memref<1x512xf32, #tpu.memory_space<vmem>>, %arg13: memref<2x256xf32, #tpu.memory_space<vmem>>) attributes {dimension_semantics = [#tpu.dimension_semantics<arbitrary>], iteration_bounds = array<i64: 1>, scalar_prefetch = 1 : i64, scratch_operands = 3 : i64, tpu.core_type = #tpu.core_type<tc>, window_params = [{pipeline_mode = #tpu.pipeline_mode<synchronous>, transform_indices = @transform_0, window_bounds = array<i64: 1, 256>}, {pipeline_mode = #tpu.pipeline_mode<synchronous>, transform_indices = @transform_1, window_bounds = array<i64: 128, 256>}, {transform_indices = @transform_2, window_bounds = array<i64: 1, 1, 256>}, {pipeline_mode = #tpu.pipeline_mode<synchronous>, transform_indices = @transform_3, window_bounds = array<i64: 512, 384>}, {pipeline_mode = #tpu.pipeline_mode<synchronous>, transform_indices = @transform_4, window_bounds = array<i64: 256, 4736>}, {pipeline_mode = #tpu.pipeline_mode<synchronous>, transform_indices = @transform_5, window_bounds = array<i64: 1, 5120>}, {transform_indices = @transform_6, window_bounds = array<i64: 1, 1, 128>}, {pipeline_mode = #tpu.pipeline_mode<synchronous>, transform_indices = @transform_7, window_bounds = array<i64: 1, 256>}, {transform_indices = @transform_8, window_bounds = array<i64: 1, 1, 128>}]} {
    %c0_i32 = arith.constant 0 : i32
    %0 = arith.cmpi eq, %arg0, %c0_i32 : i32
    %1 = arith.extui %0 : i1 to i32
    %c0_i32_0 = arith.constant 0 : i32
    %2 = arith.cmpi ne, %1, %c0_i32_0 : i32
    scf.if %2 {
      %c0_93 = arith.constant 0 : index
      %c0_94 = arith.constant 0 : index
      %224 = vector.load %arg2[%c0_93, %c0_94] : memref<1x256xf32, #tpu.memory_space<vmem>>, vector<1x256xf32>
      %c0_95 = arith.constant 0 : index
      %c0_96 = arith.constant 0 : index
      %225 = vector.load %arg11[%c0_95, %c0_96] : memref<1x256xf32, #tpu.memory_space<vmem>>, vector<1x256xf32>
      tpu.vector_store %arg11[%c0_95, %c0_96], %224 {strides = array<i32>} : memref<1x256xf32, #tpu.memory_space<vmem>>, vector<1x256xf32>,
    } else {
    }
    %c0 = arith.constant 0 : index
    %c0_1 = arith.constant 0 : index
    %3 = vector.load %arg11[%c0, %c0_1] : memref<1x256xf32, #tpu.memory_space<vmem>>, vector<1x256xf32>
    %c0_2 = arith.constant 0 : index
    %c0_3 = arith.constant 0 : index
    %c0_4 = arith.constant 0 : index
    %4 = vector.load %arg4[%c0_2, %c0_3, %c0_4] : memref<1x1x256xbf16, #tpu.memory_space<vmem>>, vector<1x1x256xbf16>
    %5 = vector.shape_cast %4 : vector<1x1x256xbf16> to vector<1x256xbf16>
    %6 = arith.extf %5 : vector<1x256xbf16> to vector<1x256xf32>
    %c0_5 = arith.constant 0 : index
    %c0_6 = arith.constant 0 : index
    %7 = vector.load %arg5[%c0_5, %c0_6] : memref<512x384xbf16, #tpu.memory_space<vmem>>, vector<512x128xbf16>
    %c0_7 = arith.constant 0 : index
    %c128 = arith.constant 128 : index
    %8 = vector.load %arg5[%c0_7, %c128] : memref<512x384xbf16, #tpu.memory_space<vmem>>, vector<512x256xbf16>
    %c0_8 = arith.constant 0 : index
    %c0_9 = arith.constant 0 : index
    %9 = vector.load %arg6[%c0_8, %c0_9] : memref<256x4736xbf16, #tpu.memory_space<vmem>>, vector<256x1536xbf16>
    %c0_10 = arith.constant 0 : index
    %c1536 = arith.constant 1536 : index
    %10 = vector.load %arg6[%c0_10, %c1536] : memref<256x4736xbf16, #tpu.memory_space<vmem>>, vector<256x1536xbf16>
    %c0_11 = arith.constant 0 : index
    %c3072 = arith.constant 3072 : index
    %11 = vector.load %arg6[%c0_11, %c3072] : memref<256x4736xbf16, #tpu.memory_space<vmem>>, vector<256x768xbf16>
    %c0_12 = arith.constant 0 : index
    %c3840 = arith.constant 3840 : index
    %12 = vector.load %arg6[%c0_12, %c3840] : memref<256x4736xbf16, #tpu.memory_space<vmem>>, vector<256x768xbf16>
    %c0_13 = arith.constant 0 : index
    %c4608 = arith.constant 4608 : index
    %13 = vector.load %arg6[%c0_13, %c4608] : memref<256x4736xbf16, #tpu.memory_space<vmem>>, vector<256x128xbf16>
    %c0_14 = arith.constant 0 : index
    %c0_15 = arith.constant 0 : index
    %14 = vector.load %arg7[%c0_14, %c0_15] : memref<1x5120xf32, #tpu.memory_space<vmem>>, vector<1x128xf32>
    %c0_16 = arith.constant 0 : index
    %c128_17 = arith.constant 128 : index
    %15 = vector.load %arg7[%c0_16, %c128_17] : memref<1x5120xf32, #tpu.memory_space<vmem>>, vector<1x256xf32>
    %c0_18 = arith.constant 0 : index
    %c384 = arith.constant 384 : index
    %16 = vector.load %arg7[%c0_18, %c384] : memref<1x5120xf32, #tpu.memory_space<vmem>>, vector<1x1536xf32>
    %c0_19 = arith.constant 0 : index
    %c1920 = arith.constant 1920 : index
    %17 = vector.load %arg7[%c0_19, %c1920] : memref<1x5120xf32, #tpu.memory_space<vmem>>, vector<1x1536xf32>
    %c0_20 = arith.constant 0 : index
    %c3456 = arith.constant 3456 : index
    %18 = vector.load %arg7[%c0_20, %c3456] : memref<1x5120xf32, #tpu.memory_space<vmem>>, vector<1x768xf32>
    %c0_21 = arith.constant 0 : index
    %c4224 = arith.constant 4224 : index
    %19 = vector.load %arg7[%c0_21, %c4224] : memref<1x5120xf32, #tpu.memory_space<vmem>>, vector<1x768xf32>
    %c0_22 = arith.constant 0 : index
    %c4992 = arith.constant 4992 : index
    %20 = vector.load %arg7[%c0_22, %c4992] : memref<1x5120xf32, #tpu.memory_space<vmem>>, vector<1x128xf32>
    %c0_23 = arith.constant 0 : index
    %c0_24 = arith.constant 0 : index
    %21 = vector.load %arg12[%c0_23, %c0_24] : memref<1x512xf32, #tpu.memory_space<vmem>>, vector<1x256xf32>
    tpu.vector_store %arg12[%c0_23, %c0_24], %6 {strides = array<i32>} : memref<1x512xf32, #tpu.memory_space<vmem>>, vector<1x256xf32>,
    %c0_25 = arith.constant 0 : index
    %c256 = arith.constant 256 : index
    %22 = vector.load %arg12[%c0_25, %c256] : memref<1x512xf32, #tpu.memory_space<vmem>>, vector<1x256xf32>
    tpu.vector_store %arg12[%c0_25, %c256], %3 {strides = array<i32>} : memref<1x512xf32, #tpu.memory_space<vmem>>, vector<1x256xf32>,
    %c0_26 = arith.constant 0 : index
    %c0_27 = arith.constant 0 : index
    %23 = vector.load %arg12[%c0_26, %c0_27] : memref<1x512xf32, #tpu.memory_space<vmem>>, vector<1x512xf32>
    %24 = arith.truncf %23 : vector<1x512xf32> to vector<1x512xbf16>
    %cst = arith.constant dense<0.000000e+00> : vector<1x128xf32>
    %25 = tpu.matmul %24, %7, %cst {dimension_numbers = #tpu.dot_dimension_numbers<[1], [0], [0], [1], [0, 0, 1, 1], [], []>} : vector<1x512xbf16>, vector<512x128xbf16>, vector<1x128xf32> -> vector<1x128xf32>
    %26 = arith.addf %25, %14 : vector<1x128xf32>
    %cst_28 = arith.constant 0.000000e+00 : f32
    %27 = vector.broadcast %cst_28 : f32 to vector<1x128xf32>
    %28 = arith.maximumf %26, %27 : vector<1x128xf32>
    %29 = tpu.iota {dimensions = array<i32: 1>} : vector<1x128xi32>
    %c16_i32 = arith.constant 16 : i32
    %30 = vector.broadcast %c16_i32 : i32 to vector<1x128xi32>
    %31 = arith.cmpi slt, %29, %30 : vector<1x128xi32>
    %cst_29 = arith.constant -1.000000e+30 : f32
    %32 = vector.broadcast %cst_29 : f32 to vector<1x128xf32>
    %33 = arith.select %31, %28, %32 : vector<1x128xi1>, vector<1x128xf32>
    %cst_30 = arith.constant dense<0xFF800000> : vector<1xf32>
    %34 = vector.multi_reduction <maximumf>, %33, %cst_30 [1] : vector<1x128xf32> to vector<1xf32>
    %35 = vector.shape_cast %34 : vector<1xf32> to vector<1x1xf32>
    %36 = vector.broadcast %35 : vector<1x1xf32> to vector<1x128xf32>
    %37 = arith.subf %33, %36 : vector<1x128xf32>
    %38 = math.exp %37 : vector<1x128xf32>
    %cst_31 = arith.constant dense<0.000000e+00> : vector<1xf32>
    %39 = vector.multi_reduction <add>, %38, %cst_31 [1] : vector<1x128xf32> to vector<1xf32>
    %40 = vector.shape_cast %39 : vector<1xf32> to vector<1x1xf32>
    %41 = tpu.reciprocal %40 {approx = true} : vector<1x1xf32> -> vector<1x1xf32>
    %42 = vector.broadcast %41 : vector<1x1xf32> to vector<1x128xf32>
    %43 = arith.mulf %38, %42 : vector<1x128xf32>
    %c0_32 = arith.constant 0 : index
    %c0_33 = arith.constant 0 : index
    %c0_34 = arith.constant 0 : index
    %44 = vector.load %arg10[%c0_32, %c0_33, %c0_34] : memref<1x1x128xf32, #tpu.memory_space<vmem>>, vector<1x1x128xf32>
    %45 = vector.shape_cast %44 : vector<1x1x128xf32> to vector<1x128xf32>
    %46 = vector.shape_cast %43 : vector<1x128xf32> to vector<1x1x128xf32>
    tpu.vector_store %arg10[%c0_32, %c0_33, %c0_34], %46 {strides = array<i32>} : memref<1x1x128xf32, #tpu.memory_space<vmem>>, vector<1x1x128xf32>,
    %47 = arith.truncf %43 : vector<1x128xf32> to vector<1x128xbf16>
    %c0_35 = arith.constant 0 : index
    %c0_36 = arith.constant 0 : index
    %48 = vector.load %arg3[%c0_35, %c0_36] : memref<128x256xbf16, #tpu.memory_space<vmem>>, vector<128x256xbf16>
    %cst_37 = arith.constant dense<0.000000e+00> : vector<1x256xf32>
    %49 = tpu.matmul %47, %48, %cst_37 {dimension_numbers = #tpu.dot_dimension_numbers<[1], [0], [0], [1], [0, 0, 1, 1], [], []>} : vector<1x128xbf16>, vector<128x256xbf16>, vector<1x256xf32> -> vector<1x256xf32>
    %c0_38 = arith.constant 0 : index
    %c256_39 = arith.constant 256 : index
    %50 = vector.load %arg12[%c0_38, %c256_39] : memref<1x512xf32, #tpu.memory_space<vmem>>, vector<1x256xf32>
    tpu.vector_store %arg12[%c0_38, %c256_39], %49 {strides = array<i32>} : memref<1x512xf32, #tpu.memory_space<vmem>>, vector<1x256xf32>,
    %c0_40 = arith.constant 0 : index
    %c0_41 = arith.constant 0 : index
    %51 = vector.load %arg12[%c0_40, %c0_41] : memref<1x512xf32, #tpu.memory_space<vmem>>, vector<1x512xf32>
    %52 = arith.truncf %51 : vector<1x512xf32> to vector<1x512xbf16>
    %cst_42 = arith.constant dense<0.000000e+00> : vector<1x256xf32>
    %53 = tpu.matmul %52, %8, %cst_42 {dimension_numbers = #tpu.dot_dimension_numbers<[1], [0], [0], [1], [0, 0, 1, 1], [], []>} : vector<1x512xbf16>, vector<512x256xbf16>, vector<1x256xf32> -> vector<1x256xf32>
    %54 = arith.addf %53, %15 : vector<1x256xf32>
    %cst_43 = arith.constant 0.000000e+00 : f32
    %55 = vector.broadcast %cst_43 : f32 to vector<1x256xf32>
    %56 = arith.maximumf %54, %55 : vector<1x256xf32>
    %57 = arith.truncf %56 : vector<1x256xf32> to vector<1x256xbf16>
    %cst_44 = arith.constant dense<0.000000e+00> : vector<1x1536xf32>
    %58 = tpu.matmul %57, %9, %cst_44 {dimension_numbers = #tpu.dot_dimension_numbers<[1], [0], [0], [1], [0, 0, 1, 1], [], []>} : vector<1x256xbf16>, vector<256x1536xbf16>, vector<1x1536xf32> -> vector<1x1536xf32>
    %59 = arith.addf %58, %16 : vector<1x1536xf32>
    %60 = arith.truncf %3 : vector<1x256xf32> to vector<1x256xbf16>
    %cst_45 = arith.constant dense<0.000000e+00> : vector<1x1536xf32>
    %61 = tpu.matmul %60, %10, %cst_45 {dimension_numbers = #tpu.dot_dimension_numbers<[1], [0], [0], [1], [0, 0, 1, 1], [], []>} : vector<1x256xbf16>, vector<256x1536xbf16>, vector<1x1536xf32> -> vector<1x1536xf32>
    %62 = arith.addf %61, %17 : vector<1x1536xf32>
    %63 = vector.extract_strided_slice %59 {offsets = [0, 0], sizes = [1, 768], strides = [1, 1]} : vector<1x1536xf32> to vector<1x768xf32>
    %64 = vector.extract_strided_slice %62 {offsets = [0, 0], sizes = [1, 768], strides = [1, 1]} : vector<1x1536xf32> to vector<1x768xf32>
    %65 = vector.extract_strided_slice %63 {offsets = [0, 0], sizes = [1, 256], strides = [1, 1]} : vector<1x768xf32> to vector<1x256xf32>
    %66 = vector.extract_strided_slice %64 {offsets = [0, 0], sizes = [1, 256], strides = [1, 1]} : vector<1x768xf32> to vector<1x256xf32>
    %67 = arith.addf %65, %66 : vector<1x256xf32>
    %cst_46 = arith.constant 0.000000e+00 : f32
    %68 = vector.broadcast %cst_46 : f32 to vector<1x256xf32>
    %69 = arith.subf %68, %67 : vector<1x256xf32>
    %70 = math.exp %69 : vector<1x256xf32>
    %cst_47 = arith.constant 1.000000e+00 : f32
    %71 = vector.broadcast %cst_47 : f32 to vector<1x256xf32>
    %72 = arith.addf %71, %70 : vector<1x256xf32>
    %cst_48 = arith.constant 1.000000e+00 : f32
    %73 = vector.broadcast %cst_48 : f32 to vector<1x256xf32>
    %74 = arith.divf %73, %72 : vector<1x256xf32>
    %75 = vector.extract_strided_slice %63 {offsets = [0, 256], sizes = [1, 256], strides = [1, 1]} : vector<1x768xf32> to vector<1x256xf32>
    %76 = vector.extract_strided_slice %64 {offsets = [0, 256], sizes = [1, 256], strides = [1, 1]} : vector<1x768xf32> to vector<1x256xf32>
    %77 = arith.addf %75, %76 : vector<1x256xf32>
    %cst_49 = arith.constant 0.000000e+00 : f32
    %78 = vector.broadcast %cst_49 : f32 to vector<1x256xf32>
    %79 = arith.subf %78, %77 : vector<1x256xf32>
    %80 = math.exp %79 : vector<1x256xf32>
    %cst_50 = arith.constant 1.000000e+00 : f32
    %81 = vector.broadcast %cst_50 : f32 to vector<1x256xf32>
    %82 = arith.addf %81, %80 : vector<1x256xf32>
    %cst_51 = arith.constant 1.000000e+00 : f32
    %83 = vector.broadcast %cst_51 : f32 to vector<1x256xf32>
    %84 = arith.divf %83, %82 : vector<1x256xf32>
    %85 = vector.extract_strided_slice %63 {offsets = [0, 512], sizes = [1, 256], strides = [1, 1]} : vector<1x768xf32> to vector<1x256xf32>
    %86 = vector.extract_strided_slice %64 {offsets = [0, 512], sizes = [1, 256], strides = [1, 1]} : vector<1x768xf32> to vector<1x256xf32>
    %87 = arith.mulf %74, %86 : vector<1x256xf32>
    %88 = arith.addf %85, %87 : vector<1x256xf32>
    %89 = math.tanh %88 : vector<1x256xf32>
    %cst_52 = arith.constant 1.000000e+00 : f32
    %90 = vector.broadcast %cst_52 : f32 to vector<1x256xf32>
    %91 = arith.subf %90, %84 : vector<1x256xf32>
    %92 = arith.mulf %91, %89 : vector<1x256xf32>
    %93 = arith.mulf %84, %3 : vector<1x256xf32>
    %94 = arith.addf %92, %93 : vector<1x256xf32>
    %95 = vector.extract_strided_slice %59 {offsets = [0, 768], sizes = [1, 768], strides = [1, 1]} : vector<1x1536xf32> to vector<1x768xf32>
    %96 = vector.extract_strided_slice %62 {offsets = [0, 768], sizes = [1, 768], strides = [1, 1]} : vector<1x1536xf32> to vector<1x768xf32>
    %97 = vector.extract_strided_slice %95 {offsets = [0, 0], sizes = [1, 256], strides = [1, 1]} : vector<1x768xf32> to vector<1x256xf32>
    %98 = vector.extract_strided_slice %96 {offsets = [0, 0], sizes = [1, 256], strides = [1, 1]} : vector<1x768xf32> to vector<1x256xf32>
    %99 = arith.addf %97, %98 : vector<1x256xf32>
    %cst_53 = arith.constant 0.000000e+00 : f32
    %100 = vector.broadcast %cst_53 : f32 to vector<1x256xf32>
    %101 = arith.subf %100, %99 : vector<1x256xf32>
    %102 = math.exp %101 : vector<1x256xf32>
    %cst_54 = arith.constant 1.000000e+00 : f32
    %103 = vector.broadcast %cst_54 : f32 to vector<1x256xf32>
    %104 = arith.addf %103, %102 : vector<1x256xf32>
    %cst_55 = arith.constant 1.000000e+00 : f32
    %105 = vector.broadcast %cst_55 : f32 to vector<1x256xf32>
    %106 = arith.divf %105, %104 : vector<1x256xf32>
    %107 = vector.extract_strided_slice %95 {offsets = [0, 256], sizes = [1, 256], strides = [1, 1]} : vector<1x768xf32> to vector<1x256xf32>
    %108 = vector.extract_strided_slice %96 {offsets = [0, 256], sizes = [1, 256], strides = [1, 1]} : vector<1x768xf32> to vector<1x256xf32>
    %109 = arith.addf %107, %108 : vector<1x256xf32>
    %cst_56 = arith.constant 0.000000e+00 : f32
    %110 = vector.broadcast %cst_56 : f32 to vector<1x256xf32>
    %111 = arith.subf %110, %109 : vector<1x256xf32>
    %112 = math.exp %111 : vector<1x256xf32>
    %cst_57 = arith.constant 1.000000e+00 : f32
    %113 = vector.broadcast %cst_57 : f32 to vector<1x256xf32>
    %114 = arith.addf %113, %112 : vector<1x256xf32>
    %cst_58 = arith.constant 1.000000e+00 : f32
    %115 = vector.broadcast %cst_58 : f32 to vector<1x256xf32>
    %116 = arith.divf %115, %114 : vector<1x256xf32>
    %117 = vector.extract_strided_slice %95 {offsets = [0, 512], sizes = [1, 256], strides = [1, 1]} : vector<1x768xf32> to vector<1x256xf32>
    %118 = vector.extract_strided_slice %96 {offsets = [0, 512], sizes = [1, 256], strides = [1, 1]} : vector<1x768xf32> to vector<1x256xf32>
    %119 = arith.mulf %106, %118 : vector<1x256xf32>
    %120 = arith.addf %117, %119 : vector<1x256xf32>
    %121 = math.tanh %120 : vector<1x256xf32>
    %cst_59 = arith.constant 1.000000e+00 : f32
    %122 = vector.broadcast %cst_59 : f32 to vector<1x256xf32>
    %123 = arith.subf %122, %116 : vector<1x256xf32>
    %124 = arith.mulf %123, %121 : vector<1x256xf32>
    %125 = arith.mulf %116, %3 : vector<1x256xf32>
    %126 = arith.addf %124, %125 : vector<1x256xf32>
    %127 = arith.addf %94, %126 : vector<1x256xf32>
    %cst_60 = arith.constant 5.000000e-01 : f32
    %128 = vector.broadcast %cst_60 : f32 to vector<1x256xf32>
    %129 = arith.mulf %128, %127 : vector<1x256xf32>
    %c0_61 = arith.constant 0 : index
    %c0_62 = arith.constant 0 : index
    %130 = vector.load %arg13[%c0_61, %c0_62] : memref<2x256xf32, #tpu.memory_space<vmem>>, vector<1x256xf32>
    tpu.vector_store %arg13[%c0_61, %c0_62], %94 {strides = array<i32>} : memref<2x256xf32, #tpu.memory_space<vmem>>, vector<1x256xf32>,
    %c1 = arith.constant 1 : index
    %c0_63 = arith.constant 0 : index
    %131 = vector.load %arg13[%c1, %c0_63] : memref<2x256xf32, #tpu.memory_space<vmem>>, vector<1x256xf32>
    tpu.vector_store %arg13[%c1, %c0_63], %126 {strides = array<i32>} : memref<2x256xf32, #tpu.memory_space<vmem>>, vector<1x256xf32>,
    %c0_64 = arith.constant 0 : index
    %c0_65 = arith.constant 0 : index
    %132 = vector.load %arg13[%c0_64, %c0_65] : memref<2x256xf32, #tpu.memory_space<vmem>>, vector<2x256xf32>
    %133 = arith.truncf %132 : vector<2x256xf32> to vector<2x256xbf16>
    %cst_66 = arith.constant dense<0.000000e+00> : vector<2x768xf32>
    %134 = tpu.matmul %133, %11, %cst_66 {dimension_numbers = #tpu.dot_dimension_numbers<[1], [0], [0], [1], [0, 0, 1, 1], [], []>} : vector<2x256xbf16>, vector<256x768xbf16>, vector<2x768xf32> -> vector<2x768xf32>
    %135 = vector.broadcast %18 : vector<1x768xf32> to vector<2x768xf32>
    %136 = arith.addf %134, %135 : vector<2x768xf32>
    %137 = arith.truncf %129 : vector<1x256xf32> to vector<1x256xbf16>
    %cst_67 = arith.constant dense<0.000000e+00> : vector<1x768xf32>
    %138 = tpu.matmul %137, %12, %cst_67 {dimension_numbers = #tpu.dot_dimension_numbers<[1], [0], [0], [1], [0, 0, 1, 1], [], []>} : vector<1x256xbf16>, vector<256x768xbf16>, vector<1x768xf32> -> vector<1x768xf32>
    %139 = arith.addf %138, %19 : vector<1x768xf32>
    %140 = vector.extract_strided_slice %136 {offsets = [0, 0], sizes = [1, 768], strides = [1, 1]} : vector<2x768xf32> to vector<1x768xf32>
    %141 = vector.extract_strided_slice %140 {offsets = [0, 0], sizes = [1, 256], strides = [1, 1]} : vector<1x768xf32> to vector<1x256xf32>
    %142 = vector.extract_strided_slice %139 {offsets = [0, 0], sizes = [1, 256], strides = [1, 1]} : vector<1x768xf32> to vector<1x256xf32>
    %143 = arith.addf %141, %142 : vector<1x256xf32>
    %cst_68 = arith.constant 0.000000e+00 : f32
    %144 = vector.broadcast %cst_68 : f32 to vector<1x256xf32>
    %145 = arith.subf %144, %143 : vector<1x256xf32>
    %146 = math.exp %145 : vector<1x256xf32>
    %cst_69 = arith.constant 1.000000e+00 : f32
    %147 = vector.broadcast %cst_69 : f32 to vector<1x256xf32>
    %148 = arith.addf %147, %146 : vector<1x256xf32>
    %cst_70 = arith.constant 1.000000e+00 : f32
    %149 = vector.broadcast %cst_70 : f32 to vector<1x256xf32>
    %150 = arith.divf %149, %148 : vector<1x256xf32>
    %151 = vector.extract_strided_slice %140 {offsets = [0, 256], sizes = [1, 256], strides = [1, 1]} : vector<1x768xf32> to vector<1x256xf32>
    %152 = vector.extract_strided_slice %139 {offsets = [0, 256], sizes = [1, 256], strides = [1, 1]} : vector<1x768xf32> to vector<1x256xf32>
    %153 = arith.addf %151, %152 : vector<1x256xf32>
    %cst_71 = arith.constant 0.000000e+00 : f32
    %154 = vector.broadcast %cst_71 : f32 to vector<1x256xf32>
    %155 = arith.subf %154, %153 : vector<1x256xf32>
    %156 = math.exp %155 : vector<1x256xf32>
    %cst_72 = arith.constant 1.000000e+00 : f32
    %157 = vector.broadcast %cst_72 : f32 to vector<1x256xf32>
    %158 = arith.addf %157, %156 : vector<1x256xf32>
    %cst_73 = arith.constant 1.000000e+00 : f32
    %159 = vector.broadcast %cst_73 : f32 to vector<1x256xf32>
    %160 = arith.divf %159, %158 : vector<1x256xf32>
    %161 = vector.extract_strided_slice %140 {offsets = [0, 512], sizes = [1, 256], strides = [1, 1]} : vector<1x768xf32> to vector<1x256xf32>
    %162 = vector.extract_strided_slice %139 {offsets = [0, 512], sizes = [1, 256], strides = [1, 1]} : vector<1x768xf32> to vector<1x256xf32>
    %163 = arith.mulf %150, %162 : vector<1x256xf32>
    %164 = arith.addf %161, %163 : vector<1x256xf32>
    %165 = math.tanh %164 : vector<1x256xf32>
    %cst_74 = arith.constant 1.000000e+00 : f32
    %166 = vector.broadcast %cst_74 : f32 to vector<1x256xf32>
    %167 = arith.subf %166, %160 : vector<1x256xf32>
    %168 = arith.mulf %167, %165 : vector<1x256xf32>
    %169 = arith.mulf %160, %129 : vector<1x256xf32>
    %170 = arith.addf %168, %169 : vector<1x256xf32>
    %171 = arith.truncf %170 : vector<1x256xf32> to vector<1x256xbf16>
    %cst_75 = arith.constant dense<0.000000e+00> : vector<1x768xf32>
    %172 = tpu.matmul %171, %12, %cst_75 {dimension_numbers = #tpu.dot_dimension_numbers<[1], [0], [0], [1], [0, 0, 1, 1], [], []>} : vector<1x256xbf16>, vector<256x768xbf16>, vector<1x768xf32> -> vector<1x768xf32>
    %173 = arith.addf %172, %19 : vector<1x768xf32>
    %174 = vector.extract_strided_slice %136 {offsets = [1, 0], sizes = [1, 768], strides = [1, 1]} : vector<2x768xf32> to vector<1x768xf32>
    %175 = vector.extract_strided_slice %174 {offsets = [0, 0], sizes = [1, 256], strides = [1, 1]} : vector<1x768xf32> to vector<1x256xf32>
    %176 = vector.extract_strided_slice %173 {offsets = [0, 0], sizes = [1, 256], strides = [1, 1]} : vector<1x768xf32> to vector<1x256xf32>
    %177 = arith.addf %175, %176 : vector<1x256xf32>
    %cst_76 = arith.constant 0.000000e+00 : f32
    %178 = vector.broadcast %cst_76 : f32 to vector<1x256xf32>
    %179 = arith.subf %178, %177 : vector<1x256xf32>
    %180 = math.exp %179 : vector<1x256xf32>
    %cst_77 = arith.constant 1.000000e+00 : f32
    %181 = vector.broadcast %cst_77 : f32 to vector<1x256xf32>
    %182 = arith.addf %181, %180 : vector<1x256xf32>
    %cst_78 = arith.constant 1.000000e+00 : f32
    %183 = vector.broadcast %cst_78 : f32 to vector<1x256xf32>
    %184 = arith.divf %183, %182 : vector<1x256xf32>
    %185 = vector.extract_strided_slice %174 {offsets = [0, 256], sizes = [1, 256], strides = [1, 1]} : vector<1x768xf32> to vector<1x256xf32>
    %186 = vector.extract_strided_slice %173 {offsets = [0, 256], sizes = [1, 256], strides = [1, 1]} : vector<1x768xf32> to vector<1x256xf32>
    %187 = arith.addf %185, %186 : vector<1x256xf32>
    %cst_79 = arith.constant 0.000000e+00 : f32
    %188 = vector.broadcast %cst_79 : f32 to vector<1x256xf32>
    %189 = arith.subf %188, %187 : vector<1x256xf32>
    %190 = math.exp %189 : vector<1x256xf32>
    %cst_80 = arith.constant 1.000000e+00 : f32
    %191 = vector.broadcast %cst_80 : f32 to vector<1x256xf32>
    %192 = arith.addf %191, %190 : vector<1x256xf32>
    %cst_81 = arith.constant 1.000000e+00 : f32
    %193 = vector.broadcast %cst_81 : f32 to vector<1x256xf32>
    %194 = arith.divf %193, %192 : vector<1x256xf32>
    %195 = vector.extract_strided_slice %174 {offsets = [0, 512], sizes = [1, 256], strides = [1, 1]} : vector<1x768xf32> to vector<1x256xf32>
    %196 = vector.extract_strided_slice %173 {offsets = [0, 512], sizes = [1, 256], strides = [1, 1]} : vector<1x768xf32> to vector<1x256xf32>
    %197 = arith.mulf %184, %196 : vector<1x256xf32>
    %198 = arith.addf %195, %197 : vector<1x256xf32>
    %199 = math.tanh %198 : vector<1x256xf32>
    %cst_82 = arith.constant 1.000000e+00 : f32
    %200 = vector.broadcast %cst_82 : f32 to vector<1x256xf32>
    %201 = arith.subf %200, %194 : vector<1x256xf32>
    %202 = arith.mulf %201, %199 : vector<1x256xf32>
    %203 = arith.mulf %194, %170 : vector<1x256xf32>
    %204 = arith.addf %202, %203 : vector<1x256xf32>
    %205 = arith.truncf %170 : vector<1x256xf32> to vector<1x256xbf16>
    %cst_83 = arith.constant dense<0.000000e+00> : vector<1x128xf32>
    %206 = tpu.matmul %205, %13, %cst_83 {dimension_numbers = #tpu.dot_dimension_numbers<[1], [0], [0], [1], [0, 0, 1, 1], [], []>} : vector<1x256xbf16>, vector<256x128xbf16>, vector<1x128xf32> -> vector<1x128xf32>
    %207 = arith.addf %206, %20 : vector<1x128xf32>
    %cst_84 = arith.constant dense<0xFF800000> : vector<1xf32>
    %208 = vector.multi_reduction <maximumf>, %207, %cst_84 [1] : vector<1x128xf32> to vector<1xf32>
    %209 = vector.shape_cast %208 : vector<1xf32> to vector<1x1xf32>
    %210 = vector.broadcast %209 : vector<1x1xf32> to vector<1x128xf32>
    %211 = arith.subf %207, %210 : vector<1x128xf32>
    %212 = math.exp %211 : vector<1x128xf32>
    %cst_85 = arith.constant dense<0.000000e+00> : vector<1xf32>
    %213 = vector.multi_reduction <add>, %212, %cst_85 [1] : vector<1x128xf32> to vector<1xf32>
    %214 = vector.shape_cast %213 : vector<1xf32> to vector<1x1xf32>
    %215 = math.log %214 : vector<1x1xf32>
    %216 = arith.addf %209, %215 : vector<1x1xf32>
    %217 = vector.broadcast %216 : vector<1x1xf32> to vector<1x128xf32>
    %218 = arith.subf %207, %217 : vector<1x128xf32>
    %c0_86 = arith.constant 0 : index
    %c0_87 = arith.constant 0 : index
    %c0_88 = arith.constant 0 : index
    %219 = vector.load %arg8[%c0_86, %c0_87, %c0_88] : memref<1x1x128xf32, #tpu.memory_space<vmem>>, vector<1x1x128xf32>
    %220 = vector.shape_cast %219 : vector<1x1x128xf32> to vector<1x128xf32>
    %221 = vector.shape_cast %218 : vector<1x128xf32> to vector<1x1x128xf32>
    tpu.vector_store %arg8[%c0_86, %c0_87, %c0_88], %221 {strides = array<i32>} : memref<1x1x128xf32, #tpu.memory_space<vmem>>, vector<1x1x128xf32>,
    %c0_89 = arith.constant 0 : index
    %c0_90 = arith.constant 0 : index
    %222 = vector.load %arg9[%c0_89, %c0_90] : memref<1x256xf32, #tpu.memory_space<vmem>>, vector<1x256xf32>
    tpu.vector_store %arg9[%c0_89, %c0_90], %204 {strides = array<i32>} : memref<1x256xf32, #tpu.memory_space<vmem>>, vector<1x256xf32>,
    %c0_91 = arith.constant 0 : index
    %c0_92 = arith.constant 0 : index
    %223 = vector.load %arg11[%c0_91, %c0_92] : memref<1x256xf32, #tpu.memory_space<vmem>>, vector<1x256xf32>
    tpu.vector_store %arg11[%c0_91, %c0_92], %204 {strides = array<i32>} : memref<1x256xf32, #tpu.memory_space<vmem>>, vector<1x256xf32>,
    return
  }
  func.func @transform_0(%arg0: i32, %arg1: memref<1xi32, #tpu.memory_space<smem>>) -> (i32, i32) {
    %c0_i32 = arith.constant 0 : i32
    %c0_i32_0 = arith.constant 0 : i32
    %c0_i32_1 = arith.constant 0 : i32
    return %c0_i32, %c0_i32_0 : i32, i32
  }
  func.func @transform_1(%arg0: i32, %arg1: memref<1xi32, #tpu.memory_space<smem>>) -> (i32, i32) {
    %c0_i32 = arith.constant 0 : i32
    %c0_i32_0 = arith.constant 0 : i32
    %c0_i32_1 = arith.constant 0 : i32
    return %c0_i32, %c0_i32_0 : i32, i32
  }
  func.func @transform_2(%arg0: i32, %arg1: memref<1xi32, #tpu.memory_space<smem>>) -> (i32, i32, i32) {
    %0 = arith.index_cast %arg0 : i32 to index
    %1 = memref.load %arg1[%0] : memref<1xi32, #tpu.memory_space<smem>>
    %c0_i32 = arith.constant 0 : i32
    %c0_i32_0 = arith.constant 0 : i32
    %c0_i32_1 = arith.constant 0 : i32
    return %1, %c0_i32, %c0_i32_0 : i32, i32, i32
  }
  func.func @transform_3(%arg0: i32, %arg1: memref<1xi32, #tpu.memory_space<smem>>) -> (i32, i32) {
    %c0_i32 = arith.constant 0 : i32
    %c0_i32_0 = arith.constant 0 : i32
    %c0_i32_1 = arith.constant 0 : i32
    return %c0_i32, %c0_i32_0 : i32, i32
  }
  func.func @transform_4(%arg0: i32, %arg1: memref<1xi32, #tpu.memory_space<smem>>) -> (i32, i32) {
    %c0_i32 = arith.constant 0 : i32
    %c0_i32_0 = arith.constant 0 : i32
    %c0_i32_1 = arith.constant 0 : i32
    return %c0_i32, %c0_i32_0 : i32, i32
  }
  func.func @transform_5(%arg0: i32, %arg1: memref<1xi32, #tpu.memory_space<smem>>) -> (i32, i32) {
    %c0_i32 = arith.constant 0 : i32
    %c0_i32_0 = arith.constant 0 : i32
    %c0_i32_1 = arith.constant 0 : i32
    return %c0_i32, %c0_i32_0 : i32, i32
  }
  func.func @transform_6(%arg0: i32, %arg1: memref<1xi32, #tpu.memory_space<smem>>) -> (i32, i32, i32) {
    %c0_i32 = arith.constant 0 : i32
    %c0_i32_0 = arith.constant 0 : i32
    %c0_i32_1 = arith.constant 0 : i32
    return %arg0, %c0_i32, %c0_i32_0 : i32, i32, i32
  }
  func.func @transform_7(%arg0: i32, %arg1: memref<1xi32, #tpu.memory_space<smem>>) -> (i32, i32) {
    %c0_i32 = arith.constant 0 : i32
    %c0_i32_0 = arith.constant 0 : i32
    %c0_i32_1 = arith.constant 0 : i32
    return %c0_i32, %c0_i32_0 : i32, i32
  }
  func.func @transform_8(%arg0: i32, %arg1: memref<1xi32, #tpu.memory_space<smem>>) -> (i32, i32, i32) {
    %c0_i32 = arith.constant 0 : i32
    %c0_i32_0 = arith.constant 0 : i32
    %c0_i32_1 = arith.constant 0 : i32
    return %arg0, %c0_i32, %c0_i32_0 : i32, i32, i32
  }
}

</mosaic_0001>

<llo_original>
// kernel: attn_decoder_decode.1
$region0: #{attn_decoder_decode.1}
  #allocation0 [shape = 'u32[]', space=smem, size = 0x4, offset = 0x4, fixed_abs, tag = 'smem constant byte address 0x4 - core index']
  #allocation1 [shape = 'u32[144,128]{1,0:T(1,128)}', space=vmem, size = 0x12000, scoped, tag = 'internal scratch']
  #allocation2 [shape = 'f32[1,256]{1,0:T(1,128)}', space=vmem, size = 0x400, scoped, tag = 'scratch operand']
  #allocation3 [shape = 'f32[1,512]{1,0:T(1,128)}', space=vmem, size = 0x800, scoped, tag = 'scratch operand']
  #allocation4 [shape = 'f32[2,256]{1,0:T(2,128)}', space=vmem, size = 0x800, scoped, tag = 'scratch operand']
  #allocation5 [shape = 's32[1]{0}', space=sflag, size = 0x4, scoped, tag = 'scoped memory for attn_decoder_decode.1']
  #allocation6 [shape = 's32[1]{0:T(128)S(6)}', space=smem, size = 0x200, scoped, tag = 'prefetched SMEM operand 0']
  %s0 = inlined_call_operand.<no memory space> [shape: s32[1], index: 0, kind: input, shape index: {}]
  %s1 = inlined_call_operand.hbm [shape: f32[1,256], index: 1, kind: input, shape index: {}]
  %s2 = inlined_call_operand.vmem [shape: bf16[128,256], index: 2, kind: input, shape index: {}]
  %s3 = inlined_call_operand.vmem [shape: bf16[128,1,256], index: 3, kind: input, shape index: {}]
  %s4 = inlined_call_operand.hbm [shape: bf16[512,384], index: 4, kind: input, shape index: {}]
  %s5 = inlined_call_operand.hbm [shape: bf16[256,4736], index: 5, kind: input, shape index: {}]
  %s6 = inlined_call_operand.hbm [shape: f32[1,5120], index: 6, kind: input, shape index: {}]
  %s7 = inlined_call_operand.hbm [shape: f32[1,1,128], index: 7, kind: output, shape index: {0}]
  %s8 = inlined_call_operand.hbm [shape: f32[1,256], index: 8, kind: output, shape index: {1}]
  %s9 = inlined_call_operand.vmem [shape: f32[1,1,128], index: 9, kind: output, shape index: {2}]
  %10 = xla_tuple %s7, %s8, %s9
  %s11 = sld [smem:[#allocation0]]
  $region70: #{attn_decoder_decode.1} parent=0
    _
  %s13 = ssub.s32 1, %s11
  %s14 = scalar_select 0, %s13, %s11
  %15 = sst [smem:[#allocation6]] %s0
  $region1: #{attn_decoder_decode.1} parent=0
    #allocation7 [shape = 'u8[1024]{0}', space=vmem, size = 0x400, scoped, tag = 'input window, operand 1, single buffered']
    #allocation8 [shape = 's32[1]{0}', space=sflag, size = 0x4, scoped, tag = 'scoped memory for attn_decoder_decode.1']
    #allocation9 [shape = 's32[1]{0}', space=sflag, size = 0x4, scoped, tag = 'scoped memory for attn_decoder_decode.1']
    #allocation10 [shape = 'u8[393216]{0}', space=vmem, size = 0x60000, scoped, tag = 'input window, operand 4, single buffered']
    #allocation11 [shape = 's32[1]{0}', space=sflag, size = 0x4, scoped, tag = 'scoped memory for attn_decoder_decode.1']
    #allocation12 [shape = 'u8[2424832]{0}', space=vmem, size = 0x250000, scoped, tag = 'input window, operand 5, single buffered']
    #allocation13 [shape = 'u8[20480]{0}', space=vmem, size = 0x5000, scoped, tag = 'input window, operand 6, single buffered']
    #allocation14 [shape = 's32[1]{0}', space=sflag, size = 0x4, scoped, tag = 'scoped memory for attn_decoder_decode.1']
    #allocation15 [shape = 'u8[512]{0}', space=vmem, size = 0x400, scoped, tag = 'output window, operand 0, single buffered']
    #allocation16 [shape = 'u8[1024]{0}', space=vmem, size = 0x400, scoped, tag = 'output window, operand 1, single buffered']
    #allocation17 [shape = 's32[1]{0}', space=sflag, size = 0x4, scoped, tag = 'scoped memory for attn_decoder_decode.1']
    %16 = vsyncpa [#allocation8], 0
    %17 = vsyncpa [#allocation11], 0
    %18 = vsyncpa [#allocation14], 0
    %19 = vsyncpa [#allocation9], 0
    %20 = vsyncpa [#allocation17], 0
    // Predicated region
    $region2: #{attn_decoder_decode.1} parent=1 // pred_check
      _
    $region3: #{attn_decoder_decode.1} parent=1 // pred_check_branch
      %22 = sbr.rel (0) target = $region5
    $region4: #{attn_decoder_decode.1} parent=1 // pred_region
      %s24 = ssub.s32 32, 32
      %25 = vsyncadd [#allocation8], %s24
      %s27 = sshll.u32 [#allocation7], 4
      %s28 = int_to_ptr.vmem [resolvable:$true] %s27
      %30 = dma.hbm_to_vmem [thread:$0]  %s1, 32, %s28, [#allocation8]
    $region5: #{attn_decoder_decode.1} parent=1 // pred_fallthru
      _
    // Predicated region
    $region6: #{attn_decoder_decode.1} parent=1 // pred_check
      _
    $region7: #{attn_decoder_decode.1} parent=1 // pred_check_branch
      %32 = sbr.rel (0) target = $region9
    $region8: #{attn_decoder_decode.1} parent=1 // pred_region
      _
    $region9: #{attn_decoder_decode.1} parent=1 // pred_fallthru
      _
    // Predicated region
    $region10: #{attn_decoder_decode.1} parent=1 // pred_check
      _
    $region11: #{attn_decoder_decode.1} parent=1 // pred_check_branch
      %34 = sbr.rel (0) target = $region13
    $region12: #{attn_decoder_decode.1} parent=1 // pred_region
      %s35 = sld [smem:[#allocation6]]
      %p36 = scmp.lt.s32.totalorder %s35, 127
      %s37 = scalar_select %p36, %s35, 127
      %s38 = smul.addr %s37, 2
      %s39 = scalar_lea.vmem %s3, %s38
      %s40 = sld [smem:[#allocation6]]
    $region13: #{attn_decoder_decode.1} parent=1 // pred_fallthru
      _
    // Predicated region
    $region14: #{attn_decoder_decode.1} parent=1 // pred_check
      _
    $region15: #{attn_decoder_decode.1} parent=1 // pred_check_branch
      %42 = sbr.rel (0) target = $region17
    $region16: #{attn_decoder_decode.1} parent=1 // pred_region
      %s44 = ssub.s32 12288, 12288
      %45 = vsyncadd [#allocation11], %s44
      %s46 = sshll.u32 [#allocation10], 4
      %s47 = int_to_ptr.vmem [resolvable:$true] %s46
      %52 = dma.hbm_to_vmem [thread:$0]  %s4, 12288, %s47, [#allocation11], 192, 192, 12
    $region17: #{attn_decoder_decode.1} parent=1 // pred_fallthru
      _
    // Predicated region
    $region18: #{attn_decoder_decode.1} parent=1 // pred_check
      _
    $region19: #{attn_decoder_decode.1} parent=1 // pred_check_branch
      %54 = sbr.rel (0) target = $region21
    $region20: #{attn_decoder_decode.1} parent=1 // pred_region
      %s56 = ssub.s32 75776, 75776
      %57 = vsyncadd [#allocation11], %s56
      %s58 = sshll.u32 [#allocation12], 4
      %s59 = int_to_ptr.vmem [resolvable:$true] %s58
      %64 = dma.hbm_to_vmem [thread:$0]  %s5, 75776, %s59, [#allocation11], 2368, 2368, 148
    $region21: #{attn_decoder_decode.1} parent=1 // pred_fallthru
      _
    // Predicated region
    $region22: #{attn_decoder_decode.1} parent=1 // pred_check
      _
    $region23: #{attn_decoder_decode.1} parent=1 // pred_check_branch
      %66 = sbr.rel (0) target = $region25
    $region24: #{attn_decoder_decode.1} parent=1 // pred_region
      %s68 = ssub.s32 640, 640
      %69 = vsyncadd [#allocation14], %s68
      %s71 = sshll.u32 [#allocation13], 4
      %s72 = int_to_ptr.vmem [resolvable:$true] %s71
      %74 = dma.hbm_to_vmem [thread:$0]  %s6, 640, %s72, [#allocation14]
    $region25: #{attn_decoder_decode.1} parent=1 // pred_fallthru
      _
    // Predicated region
    $region26: #{attn_decoder_decode.1} parent=1 // pred_check
      _
    $region27: #{attn_decoder_decode.1} parent=1 // pred_check_branch
      %76 = sbr.rel (0) target = $region29
    $region28: #{attn_decoder_decode.1} parent=1 // pred_region
      %77 = dma.done [#allocation8], 32
    $region29: #{attn_decoder_decode.1} parent=1 // pred_fallthru
      _
    // Predicated region
    $region30: #{attn_decoder_decode.1} parent=1 // pred_check
      _
    $region31: #{attn_decoder_decode.1} parent=1 // pred_check_branch
      %79 = sbr.rel (0) target = $region33
    $region32: #{attn_decoder_decode.1} parent=1 // pred_region
      %80 = dma.done [#allocation11], 12288
    $region33: #{attn_decoder_decode.1} parent=1 // pred_fallthru
      _
    // Predicated region
    $region34: #{attn_decoder_decode.1} parent=1 // pred_check
      _
    $region35: #{attn_decoder_decode.1} parent=1 // pred_check_branch
      %82 = sbr.rel (0) target = $region37
    $region36: #{attn_decoder_decode.1} parent=1 // pred_region
      %83 = dma.done [#allocation11], 75776
    $region37: #{attn_decoder_decode.1} parent=1 // pred_fallthru
      _
    // Predicated region
    $region38: #{attn_decoder_decode.1} parent=1 // pred_check
      _
    $region39: #{attn_decoder_decode.1} parent=1 // pred_check_branch
      %85 = sbr.rel (0) target = $region41
    $region40: #{attn_decoder_decode.1} parent=1 // pred_region
      %86 = dma.done [#allocation14], 640
    $region41: #{attn_decoder_decode.1} parent=1 // pred_fallthru
      _
    %s87 = sld [smem:[#allocation6]]
    %p88 = scmp.lt.s32.totalorder %s87, 127
    %s89 = scalar_select %p88, %s87, 127
    %s90 = smul.addr %s89, 2
    %s91 = scalar_lea.vmem %s3, %s90
    %s92 = sld [smem:[#allocation6]]
    %p93 = scmp.lt.s32.totalorder %s92, 127
    %s94 = scalar_select %p93, %s92, 127
    %s95 = smul.addr %s94, 2
    %s96 = scalar_lea.vmem %s3, %s95
    %s97 = sld [smem:[#allocation6]]
    %p99 = scmp.eq.s32.totalorder 0, 0
    // Predicated region
    $region42: #{attn_decoder_decode.1} parent=1 // pred_check
      %p100 = pneg %p99
    $region43: #{attn_decoder_decode.1} parent=1 // pred_check_branch
      %102 = sbr.rel (%p100) target = $region45
    $region44: #{attn_decoder_decode.1} parent=1 // pred_region
      %v103 = vld [vmem:[#allocation7] sm:$0x3]
      %v104 = vlaneseq
      %vm105 = vcmp.ge.s32.totalorder %v104, 0
      %vm106 = vcmp.lt.s32.totalorder %v104, 256
      %vm107 = vmand %vm105, %vm106
      %108 = vst.msk [vmem:[#allocation2] sm:$0x3] %vm107, %v103
    $region45: #{attn_decoder_decode.1} parent=1 // pred_fallthru
      _
    %v109 = vld [vmem:[#allocation2] sm:$0x3]
    %v110 = vld [vmem:[%s96] sm:$0x3]
    %v111 = vunpack.c.l.bf16 %v110
    %v112 = vld [vmem:[#allocation10] sm:$0xf]
    %v113 = vld [vmem:[#allocation10 + $0xc] sm:$0xf]
    %v114 = vld [vmem:[#allocation10 + $0x18] sm:$0xf]
    %v115 = vld [vmem:[#allocation10 + $0x24] sm:$0xf]
    %v116 = vld [vmem:[#allocation10 + $0x30] sm:$0xf]
    %v117 = vld [vmem:[#allocation10 + $0x3c] sm:$0xf]
    %v118 = vld [vmem:[#allocation10 + $0x48] sm:$0xf]
    %v119 = vld [vmem:[#allocation10 + $0x54] sm:$0xf]
    %v120 = vld [vmem:[#allocation10 + $0x60] sm:$0xf]
    %v121 = vld [vmem:[#allocation10 + $0x6c] sm:$0xf]
    %v122 = vld [vmem:[#allocation10 + $0x78] sm:$0xf]
    %v123 = vld [vmem:[#allocation10 + $0x84] sm:$0xf]
    %v124 = vld [vmem:[#allocation10 + $0x90] sm:$0xf]
    %v125 = vld [vmem:[#allocation10 + $0x9c] sm:$0xf]
    %v126 = vld [vmem:[#allocation10 + $0xa8] sm:$0xf]
    %v127 = vld [vmem:[#allocation10 + $0xb4] sm:$0xf]
    %v128 = vld [vmem:[#allocation10 + $0xc0] sm:$0xf]
    %v129 = vld [vmem:[#allocation10 + $0xcc] sm:$0xf]
    %v130 = vld [vmem:[#allocation10 + $0xd8] sm:$0xf]
    %v131 = vld [vmem:[#allocation10 + $0xe4] sm:$0xf]
    %v132 = vld [vmem:[#allocation10 + $0xf0] sm:$0xf]
    %v133 = vld [vmem:[#allocation10 + $0xfc] sm:$0xf]
    %v134 = vld [vmem:[#allocation10 + $0x108] sm:$0xf]
    %v135 = vld [vmem:[#allocation10 + $0x114] sm:$0xf]
    %v136 = vld [vmem:[#allocation10 + $0x120] sm:$0xf]
    %v137 = vld [vmem:[#allocation10 + $0x12c] sm:$0xf]
    %v138 = vld [vmem:[#allocation10 + $0x138] sm:$0xf]
    %v139 = vld [vmem:[#allocation10 + $0x144] sm:$0xf]
    %v140 = vld [vmem:[#allocation10 + $0x150] sm:$0xf]
    %v141 = vld [vmem:[#allocation10 + $0x15c] sm:$0xf]
    %v142 = vld [vmem:[#allocation10 + $0x168] sm:$0xf]
    %v143 = vld [vmem:[#allocation10 + $0x174] sm:$0xf]
    %v144 = vld [vmem:[#allocation10 + $0x180] sm:$0xf]
    %v145 = vld [vmem:[#allocation10 + $0x18c] sm:$0xf]
    %v146 = vld [vmem:[#allocation10 + $0x198] sm:$0xf]
    %v147 = vld [vmem:[#allocation10 + $0x1a4] sm:$0xf]
    %v148 = vld [vmem:[#allocation10 + $0x1b0] sm:$0xf]
    %v149 = vld [vmem:[#allocation10 + $0x1bc] sm:$0xf]
    %v150 = vld [vmem:[#allocation10 + $0x1c8] sm:$0xf]
    %v151 = vld [vmem:[#allocation10 + $0x1d4] sm:$0xf]
    %v152 = vld [vmem:[#allocation10 + $0x1e0] sm:$0xf]
    %v153 = vld [vmem:[#allocation10 + $0x1ec] sm:$0xf]
    %v154 = vld [vmem:[#allocation10 + $0x1f8] sm:$0xf]
    %v155 = vld [vmem:[#allocation10 + $0x204] sm:$0xf]
    %v156 = vld [vmem:[#allocation10 + $0x210] sm:$0xf]
    %v157 = vld [vmem:[#allocation10 + $0x21c] sm:$0xf]
    %v158 = vld [vmem:[#allocation10 + $0x228] sm:$0xf]
    %v159 = vld [vmem:[#allocation10 + $0x234] sm:$0xf]
    %v160 = vld [vmem:[#allocation10 + $0x240] sm:$0xf]
    %v161 = vld [vmem:[#allocation10 + $0x24c] sm:$0xf]
    %v162 = vld [vmem:[#allocation10 + $0x258] sm:$0xf]
    %v163 = vld [vmem:[#allocation10 + $0x264] sm:$0xf]
    %v164 = vld [vmem:[#allocation10 + $0x270] sm:$0xf]
    %v165 = vld [vmem:[#allocation10 + $0x27c] sm:$0xf]
    %v166 = vld [vmem:[#allocation10 + $0x288] sm:$0xf]
    %v167 = vld [vmem:[#allocation10 + $0x294] sm:$0xf]
    %v168 = vld [vmem:[#allocation10 + $0x2a0] sm:$0xf]
    %v169 = vld [vmem:[#allocation10 + $0x2ac] sm:$0xf]
    %v170 = vld [vmem:[#allocation10 + $0x2b8] sm:$0xf]
    %v171 = vld [vmem:[#allocation10 + $0x2c4] sm:$0xf]
    %v172 = vld [vmem:[#allocation10 + $0x2d0] sm:$0xf]
    %v173 = vld [vmem:[#allocation10 + $0x2dc] sm:$0xf]
    %v174 = vld [vmem:[#allocation10 + $0x2e8] sm:$0xf]
    %v175 = vld [vmem:[#allocation10 + $0x2f4] sm:$0xf]
    %v176 = vld [vmem:[#allocation10 + $0x4] sm:$0xff]
    %v177 = vld [vmem:[#allocation10 + $0x10] sm:$0xff]
    %v178 = vld [vmem:[#allocation10 + $0x1c] sm:$0xff]
    %v179 = vld [vmem:[#allocation10 + $0x28] sm:$0xff]
    %v180 = vld [vmem:[#allocation10 + $0x34] sm:$0xff]
    %v181 = vld [vmem:[#allocation10 + $0x40] sm:$0xff]
    %v182 = vld [vmem:[#allocation10 + $0x4c] sm:$0xff]
    %v183 = vld [vmem:[#allocation10 + $0x58] sm:$0xff]
    %v184 = vld [vmem:[#allocation10 + $0x64] sm:$0xff]
    %v185 = vld [vmem:[#allocation10 + $0x70] sm:$0xff]
    %v186 = vld [vmem:[#allocation10 + $0x7c] sm:$0xff]
    %v187 = vld [vmem:[#allocation10 + $0x88] sm:$0xff]
    %v188 = vld [vmem:[#allocation10 + $0x94] sm:$0xff]
    %v189 = vld [vmem:[#allocation10 + $0xa0] sm:$0xff]
    %v190 = vld [vmem:[#allocation10 + $0xac] sm:$0xff]
    %v191 = vld [vmem:[#allocation10 + $0xb8] sm:$0xff]
    %v192 = vld [vmem:[#allocation10 + $0xc4] sm:$0xff]
    %v193 = vld [vmem:[#allocation10 + $0xd0] sm:$0xff]
    %v194 = vld [vmem:[#allocation10 + $0xdc] sm:$0xff]
    %v195 = vld [vmem:[#allocation10 + $0xe8] sm:$0xff]
    %v196 = vld [vmem:[#allocation10 + $0xf4] sm:$0xff]
    %v197 = vld [vmem:[#allocation10 + $0x100] sm:$0xff]
    %v198 = vld [vmem:[#allocation10 + $0x10c] sm:$0xff]
    %v199 = vld [vmem:[#allocation10 + $0x118] sm:$0xff]
    %v200 = vld [vmem:[#allocation10 + $0x124] sm:$0xff]
    %v201 = vld [vmem:[#allocation10 + $0x130] sm:$0xff]
    %v202 = vld [vmem:[#allocation10 + $0x13c] sm:$0xff]
    %v203 = vld [vmem:[#allocation10 + $0x148] sm:$0xff]
    %v204 = vld [vmem:[#allocation10 + $0x154] sm:$0xff]
    %v205 = vld [vmem:[#allocation10 + $0x160] sm:$0xff]
    %v206 = vld [vmem:[#allocation10 + $0x16c] sm:$0xff]
    %v207 = vld [vmem:[#allocation10 + $0x178] sm:$0xff]
    %v208 = vld [vmem:[#allocation10 + $0x184] sm:$0xff]
    %v209 = vld [vmem:[#allocation10 + $0x190] sm:$0xff]
    %v210 = vld [vmem:[#allocation10 + $0x19c] sm:$0xff]
    %v211 = vld [vmem:[#allocation10 + $0x1a8] sm:$0xff]
    %v212 = vld [vmem:[#allocation10 + $0x1b4] sm:$0xff]
    %v213 = vld [vmem:[#allocation10 + $0x1c0] sm:$0xff]
    %v214 = vld [vmem:[#allocation10 + $0x1cc] sm:$0xff]
    %v215 = vld [vmem:[#allocation10 + $0x1d8] sm:$0xff]
    %v216 = vld [vmem:[#allocation10 + $0x1e4] sm:$0xff]
    %v217 = vld [vmem:[#allocation10 + $0x1f0] sm:$0xff]
    %v218 = vld [vmem:[#allocation10 + $0x1fc] sm:$0xff]
    %v219 = vld [vmem:[#allocation10 + $0x208] sm:$0xff]
    %v220 = vld [vmem:[#allocation10 + $0x214] sm:$0xff]
    %v221 = vld [vmem:[#allocation10 + $0x220] sm:$0xff]
    %v222 = vld [vmem:[#allocation10 + $0x22c] sm:$0xff]
    %v223 = vld [vmem:[#allocation10 + $0x238] sm:$0xff]
    %v224 = vld [vmem:[#allocation10 + $0x244] sm:$0xff]
    %v225 = vld [vmem:[#allocation10 + $0x250] sm:$0xff]
    %v226 = vld [vmem:[#allocation10 + $0x25c] sm:$0xff]
    %v227 = vld [vmem:[#allocation10 + $0x268] sm:$0xff]
    %v228 = vld [vmem:[#allocation10 + $0x274] sm:$0xff]
    %v229 = vld [vmem:[#allocation10 + $0x280] sm:$0xff]
    %v230 = vld [vmem:[#allocation10 + $0x28c] sm:$0xff]
    %v231 = vld [vmem:[#allocation10 + $0x298] sm:$0xff]
    %v232 = vld [vmem:[#allocation10 + $0x2a4] sm:$0xff]
    %v233 = vld [vmem:[#allocation10 + $0x2b0] sm:$0xff]
    %v234 = vld [vmem:[#allocation10 + $0x2bc] sm:$0xff]
    %v235 = vld [vmem:[#allocation10 + $0x2c8] sm:$0xff]
    %v236 = vld [vmem:[#allocation10 + $0x2d4] sm:$0xff]
    %v237 = vld [vmem:[#allocation10 + $0x2e0] sm:$0xff]
    %v238 = vld [vmem:[#allocation10 + $0x2ec] sm:$0xff]
    %v239 = vld [vmem:[#allocation10 + $0x2f8] sm:$0xff]
    %v240 = vld [vmem:[#allocation12] sm:$0xff]
    %v241 = vld [vmem:[#allocation12 + $0x8] sm:$0xff]
    %v242 = vld [vmem:[#allocation12 + $0x10] sm:$0xff]
    %v243 = vld [vmem:[#allocation12 + $0x18] sm:$0xff]
    %v244 = vld [vmem:[#allocation12 + $0x20] sm:$0xff]
    %v245 = vld [vmem:[#allocation12 + $0x28] sm:$0xff]
    %v246 = vld [vmem:[#allocation12 + $0x94] sm:$0xff]
    %v247 = vld [vmem:[#allocation12 + $0x9c] sm:$0xff]
    %v248 = vld [vmem:[#allocation12 + $0xa4] sm:$0xff]
    %v249 = vld [vmem:[#allocation12 + $0xac] sm:$0xff]
    %v250 = vld [vmem:[#allocation12 + $0xb4] sm:$0xff]
    %v251 = vld [vmem:[#allocation12 + $0xbc] sm:$0xff]
    %v252 = vld [vmem:[#allocation12 + $0x128] sm:$0xff]
    %v253 = vld [vmem:[#allocation12 + $0x130] sm:$0xff]
    %v254 = vld [vmem:[#allocation12 + $0x138] sm:$0xff]
    %v255 = vld [vmem:[#allocation12 + $0x140] sm:$0xff]
    %v256 = vld [vmem:[#allocation12 + $0x148] sm:$0xff]
    %v257 = vld [vmem:[#allocation12 + $0x150] sm:$0xff]
    %v258 = vld [vmem:[#allocation12 + $0x1bc] sm:$0xff]
    %v259 = vld [vmem:[#allocation12 + $0x1c4] sm:$0xff]
    %v260 = vld [vmem:[#allocation12 + $0x1cc] sm:$0xff]
    %v261 = vld [vmem:[#allocation12 + $0x1d4] sm:$0xff]
    %v262 = vld [vmem:[#allocation12 + $0x1dc] sm:$0xff]
    %v263 = vld [vmem:[#allocation12 + $0x1e4] sm:$0xff]
    %v264 = vld [vmem:[#allocation12 + $0x250] sm:$0xff]
    %v265 = vld [vmem:[#allocation12 + $0x258] sm:$0xff]
    %v266 = vld [vmem:[#allocation12 + $0x260] sm:$0xff]
    %v267 = vld [vmem:[#allocation12 + $0x268] sm:$0xff]
    %v268 = vld [vmem:[#allocation12 + $0x270] sm:$0xff]
    %v269 = vld [vmem:[#allocation12 + $0x278] sm:$0xff]
    %v270 = vld [vmem:[#allocation12 + $0x2e4] sm:$0xff]
    %v271 = vld [vmem:[#allocation12 + $0x2ec] sm:$0xff]
    %v272 = vld [vmem:[#allocation12 + $0x2f4] sm:$0xff]
    %v273 = vld [vmem:[#allocation12 + $0x2fc] sm:$0xff]
    %v274 = vld [vmem:[#allocation12 + $0x304] sm:$0xff]
    %v275 = vld [vmem:[#allocation12 + $0x30c] sm:$0xff]
    %v276 = vld [vmem:[#allocation12 + $0x378] sm:$0xff]
    %v277 = vld [vmem:[#allocation12 + $0x380] sm:$0xff]
    %v278 = vld [vmem:[#allocation12 + $0x388] sm:$0xff]
    %v279 = vld [vmem:[#allocation12 + $0x390] sm:$0xff]
    %v280 = vld [vmem:[#allocation12 + $0x398] sm:$0xff]
    %v281 = vld [vmem:[#allocation12 + $0x3a0] sm:$0xff]
    %v282 = vld [vmem:[#allocation12 + $0x40c] sm:$0xff]
    %v283 = vld [vmem:[#allocation12 + $0x414] sm:$0xff]
    %v284 = vld [vmem:[#allocation12 + $0x41c] sm:$0xff]
    %v285 = vld [vmem:[#allocation12 + $0x424] sm:$0xff]
    %v286 = vld [vmem:[#allocation12 + $0x42c] sm:$0xff]
    %v287 = vld [vmem:[#allocation12 + $0x434] sm:$0xff]
    %v288 = vld [vmem:[#allocation12 + $0x4a0] sm:$0xff]
    %v289 = vld [vmem:[#allocation12 + $0x4a8] sm:$0xff]
    %v290 = vld [vmem:[#allocation12 + $0x4b0] sm:$0xff]
    %v291 = vld [vmem:[#allocation12 + $0x4b8] sm:$0xff]
    %v292 = vld [vmem:[#allocation12 + $0x4c0] sm:$0xff]
    %v293 = vld [vmem:[#allocation12 + $0x4c8] sm:$0xff]
    %v294 = vld [vmem:[#allocation12 + $0x534] sm:$0xff]
    %v295 = vld [vmem:[#allocation12 + $0x53c] sm:$0xff]
    %v296 = vld [vmem:[#allocation12 + $0x544] sm:$0xff]
    %v297 = vld [vmem:[#allocation12 + $0x54c] sm:$0xff]
    %v298 = vld [vmem:[#allocation12 + $0x554] sm:$0xff]
    %v299 = vld [vmem:[#allocation12 + $0x55c] sm:$0xff]
    %v300 = vld [vmem:[#allocation12 + $0x5c8] sm:$0xff]
    %v301 = vld [vmem:[#allocation12 + $0x5d0] sm:$0xff]
    %v302 = vld [vmem:[#allocation12 + $0x5d8] sm:$0xff]
    %v303 = vld [vmem:[#allocation12 + $0x5e0] sm:$0xff]
    %v304 = vld [vmem:[#allocation12 + $0x5e8] sm:$0xff]
    %v305 = vld [vmem:[#allocation12 + $0x5f0] sm:$0xff]
    %v306 = vld [vmem:[#allocation12 + $0x65c] sm:$0xff]
    %v307 = vld [vmem:[#allocation12 + $0x664] sm:$0xff]
    %v308 = vld [vmem:[#allocation12 + $0x66c] sm:$0xff]
    %v309 = vld [vmem:[#allocation12 + $0x674] sm:$0xff]
    %v310 = vld [vmem:[#allocation12 + $0x67c] sm:$0xff]
    %v311 = vld [vmem:[#allocation12 + $0x684] sm:$0xff]
    %v312 = vld [vmem:[#allocation12 + $0x6f0] sm:$0xff]
    %v313 = vld [vmem:[#allocation12 + $0x6f8] sm:$0xff]
    %v314 = vld [vmem:[#allocation12 + $0x700] sm:$0xff]
    %v315 = vld [vmem:[#allocation12 + $0x708] sm:$0xff]
    %v316 = vld [vmem:[#allocation12 + $0x710] sm:$0xff]
    %v317 = vld [vmem:[#allocation12 + $0x718] sm:$0xff]
    %v318 = vld [vmem:[#allocation12 + $0x784] sm:$0xff]
    %v319 = vld [vmem:[#allocation12 + $0x78c] sm:$0xff]
    %v320 = vld [vmem:[#allocation12 + $0x794] sm:$0xff]
    %v321 = vld [vmem:[#allocation12 + $0x79c] sm:$0xff]
    %v322 = vld [vmem:[#allocation12 + $0x7a4] sm:$0xff]
    %v323 = vld [vmem:[#allocation12 + $0x7ac] sm:$0xff]
    %v324 = vld [vmem:[#allocation12 + $0x818] sm:$0xff]
    %v325 = vld [vmem:[#allocation12 + $0x820] sm:$0xff]
    %v326 = vld [vmem:[#allocation12 + $0x828] sm:$0xff]
    %v327 = vld [vmem:[#allocation12 + $0x830] sm:$0xff]
    %v328 = vld [vmem:[#allocation12 + $0x838] sm:$0xff]
    %v329 = vld [vmem:[#allocation12 + $0x840] sm:$0xff]
    %v330 = vld [vmem:[#allocation12 + $0x8ac] sm:$0xff]
    %v331 = vld [vmem:[#allocation12 + $0x8b4] sm:$0xff]
    %v332 = vld [vmem:[#allocation12 + $0x8bc] sm:$0xff]
    %v333 = vld [vmem:[#allocation12 + $0x8c4] sm:$0xff]
    %v334 = vld [vmem:[#allocation12 + $0x8cc] sm:$0xff]
    %v335 = vld [vmem:[#allocation12 + $0x8d4] sm:$0xff]
    %v336 = vld [vmem:[#allocation12 + $0x940] sm:$0xff]
    %v337 = vld [vmem:[#allocation12 + $0x948] sm:$0xff]
    %v338 = vld [vmem:[#allocation12 + $0x950] sm:$0xff]
    %v339 = vld [vmem:[#allocation12 + $0x958] sm:$0xff]
    %v340 = vld [vmem:[#allocation12 + $0x960] sm:$0xff]
    %v341 = vld [vmem:[#allocation12 + $0x968] sm:$0xff]
    %v342 = vld [vmem:[#allocation12 + $0x9d4] sm:$0xff]
    %v343 = vld [vmem:[#allocation12 + $0x9dc] sm:$0xff]
    %v344 = vld [vmem:[#allocation12 + $0x9e4] sm:$0xff]
    %v345 = vld [vmem:[#allocation12 + $0x9ec] sm:$0xff]
    %v346 = vld [vmem:[#allocation12 + $0x9f4] sm:$0xff]
    %v347 = vld [vmem:[#allocation12 + $0x9fc] sm:$0xff]
    %v348 = vld [vmem:[#allocation12 + $0xa68] sm:$0xff]
    %v349 = vld [vmem:[#allocation12 + $0xa70] sm:$0xff]
    %v350 = vld [vmem:[#allocation12 + $0xa78] sm:$0xff]
    %v351 = vld [vmem:[#allocation12 + $0xa80] sm:$0xff]
    %v352 = vld [vmem:[#allocation12 + $0xa88] sm:$0xff]
    %v353 = vld [vmem:[#allocation12 + $0xa90] sm:$0xff]
    %v354 = vld [vmem:[#allocation12 + $0xafc] sm:$0xff]
    %v355 = vld [vmem:[#allocation12 + $0xb04] sm:$0xff]
    %v356 = vld [vmem:[#allocation12 + $0xb0c] sm:$0xff]
    %v357 = vld [vmem:[#allocation12 + $0xb14] sm:$0xff]
    %v358 = vld [vmem:[#allocation12 + $0xb1c] sm:$0xff]
    %v359 = vld [vmem:[#allocation12 + $0xb24] sm:$0xff]
    %v360 = vld [vmem:[#allocation12 + $0xb90] sm:$0xff]
    %v361 = vld [vmem:[#allocation12 + $0xb98] sm:$0xff]
    %v362 = vld [vmem:[#allocation12 + $0xba0] sm:$0xff]
    %v363 = vld [vmem:[#allocation12 + $0xba8] sm:$0xff]
    %v364 = vld [vmem:[#allocation12 + $0xbb0] sm:$0xff]
    %v365 = vld [vmem:[#allocation12 + $0xbb8] sm:$0xff]
    %v366 = vld [vmem:[#allocation12 + $0xc24] sm:$0xff]
    %v367 = vld [vmem:[#allocation12 + $0xc2c] sm:$0xff]
    %v368 = vld [vmem:[#allocation12 + $0xc34] sm:$0xff]
    %v369 = vld [vmem:[#allocation12 + $0xc3c] sm:$0xff]
    %v370 = vld [vmem:[#allocation12 + $0xc44] sm:$0xff]
    %v371 = vld [vmem:[#allocation12 + $0xc4c] sm:$0xff]
    %v372 = vld [vmem:[#allocation12 + $0xcb8] sm:$0xff]
    %v373 = vld [vmem:[#allocation12 + $0xcc0] sm:$0xff]
    %v374 = vld [vmem:[#allocation12 + $0xcc8] sm:$0xff]
    %v375 = vld [vmem:[#allocation12 + $0xcd0] sm:$0xff]
    %v376 = vld [vmem:[#allocation12 + $0xcd8] sm:$0xff]
    %v377 = vld [vmem:[#allocation12 + $0xce0] sm:$0xff]
    %v378 = vld [vmem:[#allocation12 + $0xd4c] sm:$0xff]
    %v379 = vld [vmem:[#allocation12 + $0xd54] sm:$0xff]
    %v380 = vld [vmem:[#allocation12 + $0xd5c] sm:$0xff]
    %v381 = vld [vmem:[#allocation12 + $0xd64] sm:$0xff]
    %v382 = vld [vmem:[#allocation12 + $0xd6c] sm:$0xff]
    %v383 = vld [vmem:[#allocation12 + $0xd74] sm:$0xff]
    %v384 = vld [vmem:[#allocation12 + $0xde0] sm:$0xff]
    %v385 = vld [vmem:[#allocation12 + $0xde8] sm:$0xff]
    %v386 = vld [vmem:[#allocation12 + $0xdf0] sm:$0xff]
    %v387 = vld [vmem:[#allocation12 + $0xdf8] sm:$0xff]
    %v388 = vld [vmem:[#allocation12 + $0xe00] sm:$0xff]
    %v389 = vld [vmem:[#allocation12 + $0xe08] sm:$0xff]
    %v390 = vld [vmem:[#allocation12 + $0xe74] sm:$0xff]
    %v391 = vld [vmem:[#allocation12 + $0xe7c] sm:$0xff]
    %v392 = vld [vmem:[#allocation12 + $0xe84] sm:$0xff]
    %v393 = vld [vmem:[#allocation12 + $0xe8c] sm:$0xff]
    %v394 = vld [vmem:[#allocation12 + $0xe94] sm:$0xff]
    %v395 = vld [vmem:[#allocation12 + $0xe9c] sm:$0xff]
    %v396 = vld [vmem:[#allocation12 + $0xf08] sm:$0xff]
    %v397 = vld [vmem:[#allocation12 + $0xf10] sm:$0xff]
    %v398 = vld [vmem:[#allocation12 + $0xf18] sm:$0xff]
    %v399 = vld [vmem:[#allocation12 + $0xf20] sm:$0xff]
    %v400 = vld [vmem:[#allocation12 + $0xf28] sm:$0xff]
    %v401 = vld [vmem:[#allocation12 + $0xf30] sm:$0xff]
    %v402 = vld [vmem:[#allocation12 + $0xf9c] sm:$0xff]
    %v403 = vld [vmem:[#allocation12 + $0xfa4] sm:$0xff]
    %v404 = vld [vmem:[#allocation12 + $0xfac] sm:$0xff]
    %v405 = vld [vmem:[#allocation12 + $0xfb4] sm:$0xff]
    %v406 = vld [vmem:[#allocation12 + $0xfbc] sm:$0xff]
    %v407 = vld [vmem:[#allocation12 + $0xfc4] sm:$0xff]
    %v408 = vld [vmem:[#allocation12 + $0x1030] sm:$0xff]
    %v409 = vld [vmem:[#allocation12 + $0x1038] sm:$0xff]
    %v410 = vld [vmem:[#allocation12 + $0x1040] sm:$0xff]
    %v411 = vld [vmem:[#allocation12 + $0x1048] sm:$0xff]
    %v412 = vld [vmem:[#allocation12 + $0x1050] sm:$0xff]
    %v413 = vld [vmem:[#allocation12 + $0x1058] sm:$0xff]
    %v414 = vld [vmem:[#allocation12 + $0x10c4] sm:$0xff]
    %v415 = vld [vmem:[#allocation12 + $0x10cc] sm:$0xff]
    %v416 = vld [vmem:[#allocation12 + $0x10d4] sm:$0xff]
    %v417 = vld [vmem:[#allocation12 + $0x10dc] sm:$0xff]
    %v418 = vld [vmem:[#allocation12 + $0x10e4] sm:$0xff]
    %v419 = vld [vmem:[#allocation12 + $0x10ec] sm:$0xff]
    %v420 = vld [vmem:[#allocation12 + $0x1158] sm:$0xff]
    %v421 = vld [vmem:[#allocation12 + $0x1160] sm:$0xff]
    %v422 = vld [vmem:[#allocation12 + $0x1168] sm:$0xff]
    %v423 = vld [vmem:[#allocation12 + $0x1170] sm:$0xff]
    %v424 = vld [vmem:[#allocation12 + $0x1178] sm:$0xff]
    %v425 = vld [vmem:[#allocation12 + $0x1180] sm:$0xff]
    %v426 = vld [vmem:[#allocation12 + $0x11ec] sm:$0xff]
    %v427 = vld [vmem:[#allocation12 + $0x11f4] sm:$0xff]
    %v428 = vld [vmem:[#allocation12 + $0x11fc] sm:$0xff]
    %v429 = vld [vmem:[#allocation12 + $0x1204] sm:$0xff]
    %v430 = vld [vmem:[#allocation12 + $0x120c] sm:$0xff]
    %v431 = vld [vmem:[#allocation12 + $0x1214] sm:$0xff]
    %v432 = vld [vmem:[#allocation12 + $0x30] sm:$0xff]
    %v433 = vld [vmem:[#allocation12 + $0x38] sm:$0xff]
    %v434 = vld [vmem:[#allocation12 + $0x40] sm:$0xff]
    %v435 = vld [vmem:[#allocation12 + $0x48] sm:$0xff]
    %v436 = vld [vmem:[#allocation12 + $0x50] sm:$0xff]
    %v437 = vld [vmem:[#allocation12 + $0x58] sm:$0xff]
    %v438 = vld [vmem:[#allocation12 + $0xc4] sm:$0xff]
    %v439 = vld [vmem:[#allocation12 + $0xcc] sm:$0xff]
    %v440 = vld [vmem:[#allocation12 + $0xd4] sm:$0xff]
    %v441 = vld [vmem:[#allocation12 + $0xdc] sm:$0xff]
    %v442 = vld [vmem:[#allocation12 + $0xe4] sm:$0xff]
    %v443 = vld [vmem:[#allocation12 + $0xec] sm:$0xff]
    %v444 = vld [vmem:[#allocation12 + $0x158] sm:$0xff]
    %v445 = vld [vmem:[#allocation12 + $0x160] sm:$0xff]
    %v446 = vld [vmem:[#allocation12 + $0x168] sm:$0xff]
    %v447 = vld [vmem:[#allocation12 + $0x170] sm:$0xff]
    %v448 = vld [vmem:[#allocation12 + $0x178] sm:$0xff]
    %v449 = vld [vmem:[#allocation12 + $0x180] sm:$0xff]
    %v450 = vld [vmem:[#allocation12 + $0x1ec] sm:$0xff]
    %v451 = vld [vmem:[#allocation12 + $0x1f4] sm:$0xff]
    %v452 = vld [vmem:[#allocation12 + $0x1fc] sm:$0xff]
    %v453 = vld [vmem:[#allocation12 + $0x204] sm:$0xff]
    %v454 = vld [vmem:[#allocation12 + $0x20c] sm:$0xff]
    %v455 = vld [vmem:[#allocation12 + $0x214] sm:$0xff]
    %v456 = vld [vmem:[#allocation12 + $0x280] sm:$0xff]
    %v457 = vld [vmem:[#allocation12 + $0x288] sm:$0xff]
    %v458 = vld [vmem:[#allocation12 + $0x290] sm:$0xff]
    %v459 = vld [vmem:[#allocation12 + $0x298] sm:$0xff]
    %v460 = vld [vmem:[#allocation12 + $0x2a0] sm:$0xff]
    %v461 = vld [vmem:[#allocation12 + $0x2a8] sm:$0xff]
    %v462 = vld [vmem:[#allocation12 + $0x314] sm:$0xff]
    %v463 = vld [vmem:[#allocation12 + $0x31c] sm:$0xff]
    %v464 = vld [vmem:[#allocation12 + $0x324] sm:$0xff]
    %v465 = vld [vmem:[#allocation12 + $0x32c] sm:$0xff]
    %v466 = vld [vmem:[#allocation12 + $0x334] sm:$0xff]
    %v467 = vld [vmem:[#allocation12 + $0x33c] sm:$0xff]
    %v468 = vld [vmem:[#allocation12 + $0x3a8] sm:$0xff]
    %v469 = vld [vmem:[#allocation12 + $0x3b0] sm:$0xff]
    %v470 = vld [vmem:[#allocation12 + $0x3b8] sm:$0xff]
    %v471 = vld [vmem:[#allocation12 + $0x3c0] sm:$0xff]
    %v472 = vld [vmem:[#allocation12 + $0x3c8] sm:$0xff]
    %v473 = vld [vmem:[#allocation12 + $0x3d0] sm:$0xff]
    %v474 = vld [vmem:[#allocation12 + $0x43c] sm:$0xff]
    %v475 = vld [vmem:[#allocation12 + $0x444] sm:$0xff]
    %v476 = vld [vmem:[#allocation12 + $0x44c] sm:$0xff]
    %v477 = vld [vmem:[#allocation12 + $0x454] sm:$0xff]
    %v478 = vld [vmem:[#allocation12 + $0x45c] sm:$0xff]
    %v479 = vld [vmem:[#allocation12 + $0x464] sm:$0xff]
    %v480 = vld [vmem:[#allocation12 + $0x4d0] sm:$0xff]
    %v481 = vld [vmem:[#allocation12 + $0x4d8] sm:$0xff]
    %v482 = vld [vmem:[#allocation12 + $0x4e0] sm:$0xff]
    %v483 = vld [vmem:[#allocation12 + $0x4e8] sm:$0xff]
    %v484 = vld [vmem:[#allocation12 + $0x4f0] sm:$0xff]
    %v485 = vld [vmem:[#allocation12 + $0x4f8] sm:$0xff]
    %v486 = vld [vmem:[#allocation12 + $0x564] sm:$0xff]
    %v487 = vld [vmem:[#allocation12 + $0x56c] sm:$0xff]
    %v488 = vld [vmem:[#allocation12 + $0x574] sm:$0xff]
    %v489 = vld [vmem:[#allocation12 + $0x57c] sm:$0xff]
    %v490 = vld [vmem:[#allocation12 + $0x584] sm:$0xff]
    %v491 = vld [vmem:[#allocation12 + $0x58c] sm:$0xff]
    %v492 = vld [vmem:[#allocation12 + $0x5f8] sm:$0xff]
    %v493 = vld [vmem:[#allocation12 + $0x600] sm:$0xff]
    %v494 = vld [vmem:[#allocation12 + $0x608] sm:$0xff]
    %v495 = vld [vmem:[#allocation12 + $0x610] sm:$0xff]
    %v496 = vld [vmem:[#allocation12 + $0x618] sm:$0xff]
    %v497 = vld [vmem:[#allocation12 + $0x620] sm:$0xff]
    %v498 = vld [vmem:[#allocation12 + $0x68c] sm:$0xff]
    %v499 = vld [vmem:[#allocation12 + $0x694] sm:$0xff]
    %v500 = vld [vmem:[#allocation12 + $0x69c] sm:$0xff]
    %v501 = vld [vmem:[#allocation12 + $0x6a4] sm:$0xff]
    %v502 = vld [vmem:[#allocation12 + $0x6ac] sm:$0xff]
    %v503 = vld [vmem:[#allocation12 + $0x6b4] sm:$0xff]
    %v504 = vld [vmem:[#allocation12 + $0x720] sm:$0xff]
    %v505 = vld [vmem:[#allocation12 + $0x728] sm:$0xff]
    %v506 = vld [vmem:[#allocation12 + $0x730] sm:$0xff]
    %v507 = vld [vmem:[#allocation12 + $0x738] sm:$0xff]
    %v508 = vld [vmem:[#allocation12 + $0x740] sm:$0xff]
    %v509 = vld [vmem:[#allocation12 + $0x748] sm:$0xff]
    %v510 = vld [vmem:[#allocation12 + $0x7b4] sm:$0xff]
    %v511 = vld [vmem:[#allocation12 + $0x7bc] sm:$0xff]
    %v512 = vld [vmem:[#allocation12 + $0x7c4] sm:$0xff]
    %v513 = vld [vmem:[#allocation12 + $0x7cc] sm:$0xff]
    %v514 = vld [vmem:[#allocation12 + $0x7d4] sm:$0xff]
    %v515 = vld [vmem:[#allocation12 + $0x7dc] sm:$0xff]
    %v516 = vld [vmem:[#allocation12 + $0x848] sm:$0xff]
    %v517 = vld [vmem:[#allocation12 + $0x850] sm:$0xff]
    %v518 = vld [vmem:[#allocation12 + $0x858] sm:$0xff]
    %v519 = vld [vmem:[#allocation12 + $0x860] sm:$0xff]
    %v520 = vld [vmem:[#allocation12 + $0x868] sm:$0xff]
    %v521 = vld [vmem:[#allocation12 + $0x870] sm:$0xff]
    %v522 = vld [vmem:[#allocation12 + $0x8dc] sm:$0xff]
    %v523 = vld [vmem:[#allocation12 + $0x8e4] sm:$0xff]
    %v524 = vld [vmem:[#allocation12 + $0x8ec] sm:$0xff]
    %v525 = vld [vmem:[#allocation12 + $0x8f4] sm:$0xff]
    %v526 = vld [vmem:[#allocation12 + $0x8fc] sm:$0xff]
    %v527 = vld [vmem:[#allocation12 + $0x904] sm:$0xff]
    %v528 = vld [vmem:[#allocation12 + $0x970] sm:$0xff]
    %v529 = vld [vmem:[#allocation12 + $0x978] sm:$0xff]
    %v530 = vld [vmem:[#allocation12 + $0x980] sm:$0xff]
    %v531 = vld [vmem:[#allocation12 + $0x988] sm:$0xff]
    %v532 = vld [vmem:[#allocation12 + $0x990] sm:$0xff]
    %v533 = vld [vmem:[#allocation12 + $0x998] sm:$0xff]
    %v534 = vld [vmem:[#allocation12 + $0xa04] sm:$0xff]
    %v535 = vld [vmem:[#allocation12 + $0xa0c] sm:$0xff]
    %v536 = vld [vmem:[#allocation12 + $0xa14] sm:$0xff]
    %v537 = vld [vmem:[#allocation12 + $0xa1c] sm:$0xff]
    %v538 = vld [vmem:[#allocation12 + $0xa24] sm:$0xff]
    %v539 = vld [vmem:[#allocation12 + $0xa2c] sm:$0xff]
    %v540 = vld [vmem:[#allocation12 + $0xa98] sm:$0xff]
    %v541 = vld [vmem:[#allocation12 + $0xaa0] sm:$0xff]
    %v542 = vld [vmem:[#allocation12 + $0xaa8] sm:$0xff]
    %v543 = vld [vmem:[#allocation12 + $0xab0] sm:$0xff]
    %v544 = vld [vmem:[#allocation12 + $0xab8] sm:$0xff]
    %v545 = vld [vmem:[#allocation12 + $0xac0] sm:$0xff]
    %v546 = vld [vmem:[#allocation12 + $0xb2c] sm:$0xff]
    %v547 = vld [vmem:[#allocation12 + $0xb34] sm:$0xff]
    %v548 = vld [vmem:[#allocation12 + $0xb3c] sm:$0xff]
    %v549 = vld [vmem:[#allocation12 + $0xb44] sm:$0xff]
    %v550 = vld [vmem:[#allocation12 + $0xb4c] sm:$0xff]
    %v551 = vld [vmem:[#allocation12 + $0xb54] sm:$0xff]
    %v552 = vld [vmem:[#allocation12 + $0xbc0] sm:$0xff]
    %v553 = vld [vmem:[#allocation12 + $0xbc8] sm:$0xff]
    %v554 = vld [vmem:[#allocation12 + $0xbd0] sm:$0xff]
    %v555 = vld [vmem:[#allocation12 + $0xbd8] sm:$0xff]
    %v556 = vld [vmem:[#allocation12 + $0xbe0] sm:$0xff]
    %v557 = vld [vmem:[#allocation12 + $0xbe8] sm:$0xff]
    %v558 = vld [vmem:[#allocation12 + $0xc54] sm:$0xff]
    %v559 = vld [vmem:[#allocation12 + $0xc5c] sm:$0xff]
    %v560 = vld [vmem:[#allocation12 + $0xc64] sm:$0xff]
    %v561 = vld [vmem:[#allocation12 + $0xc6c] sm:$0xff]
    %v562 = vld [vmem:[#allocation12 + $0xc74] sm:$0xff]
    %v563 = vld [vmem:[#allocation12 + $0xc7c] sm:$0xff]
    %v564 = vld [vmem:[#allocation12 + $0xce8] sm:$0xff]
    %v565 = vld [vmem:[#allocation12 + $0xcf0] sm:$0xff]
    %v566 = vld [vmem:[#allocation12 + $0xcf8] sm:$0xff]
    %v567 = vld [vmem:[#allocation12 + $0xd00] sm:$0xff]
    %v568 = vld [vmem:[#allocation12 + $0xd08] sm:$0xff]
    %v569 = vld [vmem:[#allocation12 + $0xd10] sm:$0xff]
    %v570 = vld [vmem:[#allocation12 + $0xd7c] sm:$0xff]
    %v571 = vld [vmem:[#allocation12 + $0xd84] sm:$0xff]
    %v572 = vld [vmem:[#allocation12 + $0xd8c] sm:$0xff]
    %v573 = vld [vmem:[#allocation12 + $0xd94] sm:$0xff]
    %v574 = vld [vmem:[#allocation12 + $0xd9c] sm:$0xff]
    %v575 = vld [vmem:[#allocation12 + $0xda4] sm:$0xff]
    %v576 = vld [vmem:[#allocation12 + $0xe10] sm:$0xff]
    %v577 = vld [vmem:[#allocation12 + $0xe18] sm:$0xff]
    %v578 = vld [vmem:[#allocation12 + $0xe20] sm:$0xff]
    %v579 = vld [vmem:[#allocation12 + $0xe28] sm:$0xff]
    %v580 = vld [vmem:[#allocation12 + $0xe30] sm:$0xff]
    %v581 = vld [vmem:[#allocation12 + $0xe38] sm:$0xff]
    %v582 = vld [vmem:[#allocation12 + $0xea4] sm:$0xff]
    %v583 = vld [vmem:[#allocation12 + $0xeac] sm:$0xff]
    %v584 = vld [vmem:[#allocation12 + $0xeb4] sm:$0xff]
    %v585 = vld [vmem:[#allocation12 + $0xebc] sm:$0xff]
    %v586 = vld [vmem:[#allocation12 + $0xec4] sm:$0xff]
    %v587 = vld [vmem:[#allocation12 + $0xecc] sm:$0xff]
    %v588 = vld [vmem:[#allocation12 + $0xf38] sm:$0xff]
    %v589 = vld [vmem:[#allocation12 + $0xf40] sm:$0xff]
    %v590 = vld [vmem:[#allocation12 + $0xf48] sm:$0xff]
    %v591 = vld [vmem:[#allocation12 + $0xf50] sm:$0xff]
    %v592 = vld [vmem:[#allocation12 + $0xf58] sm:$0xff]
    %v593 = vld [vmem:[#allocation12 + $0xf60] sm:$0xff]
    %v594 = vld [vmem:[#allocation12 + $0xfcc] sm:$0xff]
    %v595 = vld [vmem:[#allocation12 + $0xfd4] sm:$0xff]
    %v596 = vld [vmem:[#allocation12 + $0xfdc] sm:$0xff]
    %v597 = vld [vmem:[#allocation12 + $0xfe4] sm:$0xff]
    %v598 = vld [vmem:[#allocation12 + $0xfec] sm:$0xff]
    %v599 = vld [vmem:[#allocation12 + $0xff4] sm:$0xff]
    %v600 = vld [vmem:[#allocation12 + $0x1060] sm:$0xff]
    %v601 = vld [vmem:[#allocation12 + $0x1068] sm:$0xff]
    %v602 = vld [vmem:[#allocation12 + $0x1070] sm:$0xff]
    %v603 = vld [vmem:[#allocation12 + $0x1078] sm:$0xff]
    %v604 = vld [vmem:[#allocation12 + $0x1080] sm:$0xff]
    %v605 = vld [vmem:[#allocation12 + $0x1088] sm:$0xff]
    %v606 = vld [vmem:[#allocation12 + $0x10f4] sm:$0xff]
    %v607 = vld [vmem:[#allocation12 + $0x10fc] sm:$0xff]
    %v608 = vld [vmem:[#allocation12 + $0x1104] sm:$0xff]
    %v609 = vld [vmem:[#allocation12 + $0x110c] sm:$0xff]
    %v610 = vld [vmem:[#allocation12 + $0x1114] sm:$0xff]
    %v611 = vld [vmem:[#allocation12 + $0x111c] sm:$0xff]
    %v612 = vld [vmem:[#allocation12 + $0x1188] sm:$0xff]
    %v613 = vld [vmem:[#allocation12 + $0x1190] sm:$0xff]
    %v614 = vld [vmem:[#allocation12 + $0x1198] sm:$0xff]
    %v615 = vld [vmem:[#allocation12 + $0x11a0] sm:$0xff]
    %v616 = vld [vmem:[#allocation12 + $0x11a8] sm:$0xff]
    %v617 = vld [vmem:[#allocation12 + $0x11b0] sm:$0xff]
    %v618 = vld [vmem:[#allocation12 + $0x121c] sm:$0xff]
    %v619 = vld [vmem:[#allocation12 + $0x1224] sm:$0xff]
    %v620 = vld [vmem:[#allocation12 + $0x122c] sm:$0xff]
    %v621 = vld [vmem:[#allocation12 + $0x1234] sm:$0xff]
    %v622 = vld [vmem:[#allocation12 + $0x123c] sm:$0xff]
    %v623 = vld [vmem:[#allocation12 + $0x1244] sm:$0xff]
    %v624 = vld [vmem:[#allocation12 + $0x60] sm:$0xff]
    %v625 = vld [vmem:[#allocation12 + $0x68] sm:$0xff]
    %v626 = vld [vmem:[#allocation12 + $0x70] sm:$0xff]
    %v627 = vld [vmem:[#allocation12 + $0xf4] sm:$0xff]
    %v628 = vld [vmem:[#allocation12 + $0xfc] sm:$0xff]
    %v629 = vld [vmem:[#allocation12 + $0x104] sm:$0xff]
    %v630 = vld [vmem:[#allocation12 + $0x188] sm:$0xff]
    %v631 = vld [vmem:[#allocation12 + $0x190] sm:$0xff]
    %v632 = vld [vmem:[#allocation12 + $0x198] sm:$0xff]
    %v633 = vld [vmem:[#allocation12 + $0x21c] sm:$0xff]
    %v634 = vld [vmem:[#allocation12 + $0x224] sm:$0xff]
    %v635 = vld [vmem:[#allocation12 + $0x22c] sm:$0xff]
    %v636 = vld [vmem:[#allocation12 + $0x2b0] sm:$0xff]
    %v637 = vld [vmem:[#allocation12 + $0x2b8] sm:$0xff]
    %v638 = vld [vmem:[#allocation12 + $0x2c0] sm:$0xff]
    %v639 = vld [vmem:[#allocation12 + $0x344] sm:$0xff]
    %v640 = vld [vmem:[#allocation12 + $0x34c] sm:$0xff]
    %v641 = vld [vmem:[#allocation12 + $0x354] sm:$0xff]
    %v642 = vld [vmem:[#allocation12 + $0x3d8] sm:$0xff]
    %v643 = vld [vmem:[#allocation12 + $0x3e0] sm:$0xff]
    %v644 = vld [vmem:[#allocation12 + $0x3e8] sm:$0xff]
    %v645 = vld [vmem:[#allocation12 + $0x46c] sm:$0xff]
    %v646 = vld [vmem:[#allocation12 + $0x474] sm:$0xff]
    %v647 = vld [vmem:[#allocation12 + $0x47c] sm:$0xff]
    %v648 = vld [vmem:[#allocation12 + $0x500] sm:$0xff]
    %v649 = vld [vmem:[#allocation12 + $0x508] sm:$0xff]
    %v650 = vld [vmem:[#allocation12 + $0x510] sm:$0xff]
    %v651 = vld [vmem:[#allocation12 + $0x594] sm:$0xff]
    %v652 = vld [vmem:[#allocation12 + $0x59c] sm:$0xff]
    %v653 = vld [vmem:[#allocation12 + $0x5a4] sm:$0xff]
    %v654 = vld [vmem:[#allocation12 + $0x628] sm:$0xff]
    %v655 = vld [vmem:[#allocation12 + $0x630] sm:$0xff]
    %v656 = vld [vmem:[#allocation12 + $0x638] sm:$0xff]
    %v657 = vld [vmem:[#allocation12 + $0x6bc] sm:$0xff]
    %v658 = vld [vmem:[#allocation12 + $0x6c4] sm:$0xff]
    %v659 = vld [vmem:[#allocation12 + $0x6cc] sm:$0xff]
    %v660 = vld [vmem:[#allocation12 + $0x750] sm:$0xff]
    %v661 = vld [vmem:[#allocation12 + $0x758] sm:$0xff]
    %v662 = vld [vmem:[#allocation12 + $0x760] sm:$0xff]
    %v663 = vld [vmem:[#allocation12 + $0x7e4] sm:$0xff]
    %v664 = vld [vmem:[#allocation12 + $0x7ec] sm:$0xff]
    %v665 = vld [vmem:[#allocation12 + $0x7f4] sm:$0xff]
    %v666 = vld [vmem:[#allocation12 + $0x878] sm:$0xff]
    %v667 = vld [vmem:[#allocation12 + $0x880] sm:$0xff]
    %v668 = vld [vmem:[#allocation12 + $0x888] sm:$0xff]
    %v669 = vld [vmem:[#allocation12 + $0x90c] sm:$0xff]
    %v670 = vld [vmem:[#allocation12 + $0x914] sm:$0xff]
    %v671 = vld [vmem:[#allocation12 + $0x91c] sm:$0xff]
    %v672 = vld [vmem:[#allocation12 + $0x9a0] sm:$0xff]
    %v673 = vld [vmem:[#allocation12 + $0x9a8] sm:$0xff]
    %v674 = vld [vmem:[#allocation12 + $0x9b0] sm:$0xff]
    %v675 = vld [vmem:[#allocation12 + $0xa34] sm:$0xff]
    %v676 = vld [vmem:[#allocation12 + $0xa3c] sm:$0xff]
    %v677 = vld [vmem:[#allocation12 + $0xa44] sm:$0xff]
    %v678 = vld [vmem:[#allocation12 + $0xac8] sm:$0xff]
    %v679 = vld [vmem:[#allocation12 + $0xad0] sm:$0xff]
    %v680 = vld [vmem:[#allocation12 + $0xad8] sm:$0xff]
    %v681 = vld [vmem:[#allocation12 + $0xb5c] sm:$0xff]
    %v682 = vld [vmem:[#allocation12 + $0xb64] sm:$0xff]
    %v683 = vld [vmem:[#allocation12 + $0xb6c] sm:$0xff]
    %v684 = vld [vmem:[#allocation12 + $0xbf0] sm:$0xff]
    %v685 = vld [vmem:[#allocation12 + $0xbf8] sm:$0xff]
    %v686 = vld [vmem:[#allocation12 + $0xc00] sm:$0xff]
    %v687 = vld [vmem:[#allocation12 + $0xc84] sm:$0xff]
    %v688 = vld [vmem:[#allocation12 + $0xc8c] sm:$0xff]
    %v689 = vld [vmem:[#allocation12 + $0xc94] sm:$0xff]
    %v690 = vld [vmem:[#allocation12 + $0xd18] sm:$0xff]
    %v691 = vld [vmem:[#allocation12 + $0xd20] sm:$0xff]
    %v692 = vld [vmem:[#allocation12 + $0xd28] sm:$0xff]
    %v693 = vld [vmem:[#allocation12 + $0xdac] sm:$0xff]
    %v694 = vld [vmem:[#allocation12 + $0xdb4] sm:$0xff]
    %v695 = vld [vmem:[#allocation12 + $0xdbc] sm:$0xff]
    %v696 = vld [vmem:[#allocation12 + $0xe40] sm:$0xff]
    %v697 = vld [vmem:[#allocation12 + $0xe48] sm:$0xff]
    %v698 = vld [vmem:[#allocation12 + $0xe50] sm:$0xff]
    %v699 = vld [vmem:[#allocation12 + $0xed4] sm:$0xff]
    %v700 = vld [vmem:[#allocation12 + $0xedc] sm:$0xff]
    %v701 = vld [vmem:[#allocation12 + $0xee4] sm:$0xff]
    %v702 = vld [vmem:[#allocation12 + $0xf68] sm:$0xff]
    %v703 = vld [vmem:[#allocation12 + $0xf70] sm:$0xff]
    %v704 = vld [vmem:[#allocation12 + $0xf78] sm:$0xff]
    %v705 = vld [vmem:[#allocation12 + $0xffc] sm:$0xff]
    %v706 = vld [vmem:[#allocation12 + $0x1004] sm:$0xff]
    %v707 = vld [vmem:[#allocation12 + $0x100c] sm:$0xff]
    %v708 = vld [vmem:[#allocation12 + $0x1090] sm:$0xff]
    %v709 = vld [vmem:[#allocation12 + $0x1098] sm:$0xff]
    %v710 = vld [vmem:[#allocation12 + $0x10a0] sm:$0xff]
    %v711 = vld [vmem:[#allocation12 + $0x1124] sm:$0xff]
    %v712 = vld [vmem:[#allocation12 + $0x112c] sm:$0xff]
    %v713 = vld [vmem:[#allocation12 + $0x1134] sm:$0xff]
    %v714 = vld [vmem:[#allocation12 + $0x11b8] sm:$0xff]
    %v715 = vld [vmem:[#allocation12 + $0x11c0] sm:$0xff]
    %v716 = vld [vmem:[#allocation12 + $0x11c8] sm:$0xff]
    %v717 = vld [vmem:[#allocation12 + $0x124c] sm:$0xff]
    %v718 = vld [vmem:[#allocation12 + $0x1254] sm:$0xff]
    %v719 = vld [vmem:[#allocation12 + $0x125c] sm:$0xff]
    %v720 = vld [vmem:[#allocation12 + $0x78] sm:$0xff]
    %v721 = vld [vmem:[#allocation12 + $0x80] sm:$0xff]
    %v722 = vld [vmem:[#allocation12 + $0x88] sm:$0xff]
    %v723 = vld [vmem:[#allocation12 + $0x10c] sm:$0xff]
    %v724 = vld [vmem:[#allocation12 + $0x114] sm:$0xff]
    %v725 = vld [vmem:[#allocation12 + $0x11c] sm:$0xff]
    %v726 = vld [vmem:[#allocation12 + $0x1a0] sm:$0xff]
    %v727 = vld [vmem:[#allocation12 + $0x1a8] sm:$0xff]
    %v728 = vld [vmem:[#allocation12 + $0x1b0] sm:$0xff]
    %v729 = vld [vmem:[#allocation12 + $0x234] sm:$0xff]
    %v730 = vld [vmem:[#allocation12 + $0x23c] sm:$0xff]
    %v731 = vld [vmem:[#allocation12 + $0x244] sm:$0xff]
    %v732 = vld [vmem:[#allocation12 + $0x2c8] sm:$0xff]
    %v733 = vld [vmem:[#allocation12 + $0x2d0] sm:$0xff]
    %v734 = vld [vmem:[#allocation12 + $0x2d8] sm:$0xff]
    %v735 = vld [vmem:[#allocation12 + $0x35c] sm:$0xff]
    %v736 = vld [vmem:[#allocation12 + $0x364] sm:$0xff]
    %v737 = vld [vmem:[#allocation12 + $0x36c] sm:$0xff]
    %v738 = vld [vmem:[#allocation12 + $0x3f0] sm:$0xff]
    %v739 = vld [vmem:[#allocation12 + $0x3f8] sm:$0xff]
    %v740 = vld [vmem:[#allocation12 + $0x400] sm:$0xff]
    %v741 = vld [vmem:[#allocation12 + $0x484] sm:$0xff]
    %v742 = vld [vmem:[#allocation12 + $0x48c] sm:$0xff]
    %v743 = vld [vmem:[#allocation12 + $0x494] sm:$0xff]
    %v744 = vld [vmem:[#allocation12 + $0x518] sm:$0xff]
    %v745 = vld [vmem:[#allocation12 + $0x520] sm:$0xff]
    %v746 = vld [vmem:[#allocation12 + $0x528] sm:$0xff]
    %v747 = vld [vmem:[#allocation12 + $0x5ac] sm:$0xff]
    %v748 = vld [vmem:[#allocation12 + $0x5b4] sm:$0xff]
    %v749 = vld [vmem:[#allocation12 + $0x5bc] sm:$0xff]
    %v750 = vld [vmem:[#allocation12 + $0x640] sm:$0xff]
    %v751 = vld [vmem:[#allocation12 + $0x648] sm:$0xff]
    %v752 = vld [vmem:[#allocation12 + $0x650] sm:$0xff]
    %v753 = vld [vmem:[#allocation12 + $0x6d4] sm:$0xff]
    %v754 = vld [vmem:[#allocation12 + $0x6dc] sm:$0xff]
    %v755 = vld [vmem:[#allocation12 + $0x6e4] sm:$0xff]
    %v756 = vld [vmem:[#allocation12 + $0x768] sm:$0xff]
    %v757 = vld [vmem:[#allocation12 + $0x770] sm:$0xff]
    %v758 = vld [vmem:[#allocation12 + $0x778] sm:$0xff]
    %v759 = vld [vmem:[#allocation12 + $0x7fc] sm:$0xff]
    %v760 = vld [vmem:[#allocation12 + $0x804] sm:$0xff]
    %v761 = vld [vmem:[#allocation12 + $0x80c] sm:$0xff]
    %v762 = vld [vmem:[#allocation12 + $0x890] sm:$0xff]
    %v763 = vld [vmem:[#allocation12 + $0x898] sm:$0xff]
    %v764 = vld [vmem:[#allocation12 + $0x8a0] sm:$0xff]
    %v765 = vld [vmem:[#allocation12 + $0x924] sm:$0xff]
    %v766 = vld [vmem:[#allocation12 + $0x92c] sm:$0xff]
    %v767 = vld [vmem:[#allocation12 + $0x934] sm:$0xff]
    %v768 = vld [vmem:[#allocation12 + $0x9b8] sm:$0xff]
    %v769 = vld [vmem:[#allocation12 + $0x9c0] sm:$0xff]
    %v770 = vld [vmem:[#allocation12 + $0x9c8] sm:$0xff]
    %v771 = vld [vmem:[#allocation12 + $0xa4c] sm:$0xff]
    %v772 = vld [vmem:[#allocation12 + $0xa54] sm:$0xff]
    %v773 = vld [vmem:[#allocation12 + $0xa5c] sm:$0xff]
    %v774 = vld [vmem:[#allocation12 + $0xae0] sm:$0xff]
    %v775 = vld [vmem:[#allocation12 + $0xae8] sm:$0xff]
    %v776 = vld [vmem:[#allocation12 + $0xaf0] sm:$0xff]
    %v777 = vld [vmem:[#allocation12 + $0xb74] sm:$0xff]
    %v778 = vld [vmem:[#allocation12 + $0xb7c] sm:$0xff]
    %v779 = vld [vmem:[#allocation12 + $0xb84] sm:$0xff]
    %v780 = vld [vmem:[#allocation12 + $0xc08] sm:$0xff]
    %v781 = vld [vmem:[#allocation12 + $0xc10] sm:$0xff]
    %v782 = vld [vmem:[#allocation12 + $0xc18] sm:$0xff]
    %v783 = vld [vmem:[#allocation12 + $0xc9c] sm:$0xff]
    %v784 = vld [vmem:[#allocation12 + $0xca4] sm:$0xff]
    %v785 = vld [vmem:[#allocation12 + $0xcac] sm:$0xff]
    %v786 = vld [vmem:[#allocation12 + $0xd30] sm:$0xff]
    %v787 = vld [vmem:[#allocation12 + $0xd38] sm:$0xff]
    %v788 = vld [vmem:[#allocation12 + $0xd40] sm:$0xff]
    %v789 = vld [vmem:[#allocation12 + $0xdc4] sm:$0xff]
    %v790 = vld [vmem:[#allocation12 + $0xdcc] sm:$0xff]
    %v791 = vld [vmem:[#allocation12 + $0xdd4] sm:$0xff]
    %v792 = vld [vmem:[#allocation12 + $0xe58] sm:$0xff]
    %v793 = vld [vmem:[#allocation12 + $0xe60] sm:$0xff]
    %v794 = vld [vmem:[#allocation12 + $0xe68] sm:$0xff]
    %v795 = vld [vmem:[#allocation12 + $0xeec] sm:$0xff]
    %v796 = vld [vmem:[#allocation12 + $0xef4] sm:$0xff]
    %v797 = vld [vmem:[#allocation12 + $0xefc] sm:$0xff]
    %v798 = vld [vmem:[#allocation12 + $0xf80] sm:$0xff]
    %v799 = vld [vmem:[#allocation12 + $0xf88] sm:$0xff]
    %v800 = vld [vmem:[#allocation12 + $0xf90] sm:$0xff]
    %v801 = vld [vmem:[#allocation12 + $0x1014] sm:$0xff]
    %v802 = vld [vmem:[#allocation12 + $0x101c] sm:$0xff]
    %v803 = vld [vmem:[#allocation12 + $0x1024] sm:$0xff]
    %v804 = vld [vmem:[#allocation12 + $0x10a8] sm:$0xff]
    %v805 = vld [vmem:[#allocation12 + $0x10b0] sm:$0xff]
    %v806 = vld [vmem:[#allocation12 + $0x10b8] sm:$0xff]
    %v807 = vld [vmem:[#allocation12 + $0x113c] sm:$0xff]
    %v808 = vld [vmem:[#allocation12 + $0x1144] sm:$0xff]
    %v809 = vld [vmem:[#allocation12 + $0x114c] sm:$0xff]
    %v810 = vld [vmem:[#allocation12 + $0x11d0] sm:$0xff]
    %v811 = vld [vmem:[#allocation12 + $0x11d8] sm:$0xff]
    %v812 = vld [vmem:[#allocation12 + $0x11e0] sm:$0xff]
    %v813 = vld [vmem:[#allocation12 + $0x1264] sm:$0xff]
    %v814 = vld [vmem:[#allocation12 + $0x126c] sm:$0xff]
    %v815 = vld [vmem:[#allocation12 + $0x1274] sm:$0xff]
    %v816 = vld [vmem:[#allocation12 + $0x90] sm:$0xf]
    %v817 = vld [vmem:[#allocation12 + $0x124] sm:$0xf]
    %v818 = vld [vmem:[#allocation12 + $0x1b8] sm:$0xf]
    %v819 = vld [vmem:[#allocation12 + $0x24c] sm:$0xf]
    %v820 = vld [vmem:[#allocation12 + $0x2e0] sm:$0xf]
    %v821 = vld [vmem:[#allocation12 + $0x374] sm:$0xf]
    %v822 = vld [vmem:[#allocation12 + $0x408] sm:$0xf]
    %v823 = vld [vmem:[#allocation12 + $0x49c] sm:$0xf]
    %v824 = vld [vmem:[#allocation12 + $0x530] sm:$0xf]
    %v825 = vld [vmem:[#allocation12 + $0x5c4] sm:$0xf]
    %v826 = vld [vmem:[#allocation12 + $0x658] sm:$0xf]
    %v827 = vld [vmem:[#allocation12 + $0x6ec] sm:$0xf]
    %v828 = vld [vmem:[#allocation12 + $0x780] sm:$0xf]
    %v829 = vld [vmem:[#allocation12 + $0x814] sm:$0xf]
    %v830 = vld [vmem:[#allocation12 + $0x8a8] sm:$0xf]
    %v831 = vld [vmem:[#allocation12 + $0x93c] sm:$0xf]
    %v832 = vld [vmem:[#allocation12 + $0x9d0] sm:$0xf]
    %v833 = vld [vmem:[#allocation12 + $0xa64] sm:$0xf]
    %v834 = vld [vmem:[#allocation12 + $0xaf8] sm:$0xf]
    %v835 = vld [vmem:[#allocation12 + $0xb8c] sm:$0xf]
    %v836 = vld [vmem:[#allocation12 + $0xc20] sm:$0xf]
    %v837 = vld [vmem:[#allocation12 + $0xcb4] sm:$0xf]
    %v838 = vld [vmem:[#allocation12 + $0xd48] sm:$0xf]
    %v839 = vld [vmem:[#allocation12 + $0xddc] sm:$0xf]
    %v840 = vld [vmem:[#allocation12 + $0xe70] sm:$0xf]
    %v841 = vld [vmem:[#allocation12 + $0xf04] sm:$0xf]
    %v842 = vld [vmem:[#allocation12 + $0xf98] sm:$0xf]
    %v843 = vld [vmem:[#allocation12 + $0x102c] sm:$0xf]
    %v844 = vld [vmem:[#allocation12 + $0x10c0] sm:$0xf]
    %v845 = vld [vmem:[#allocation12 + $0x1154] sm:$0xf]
    %v846 = vld [vmem:[#allocation12 + $0x11e8] sm:$0xf]
    %v847 = vld [vmem:[#allocation12 + $0x127c] sm:$0xf]
    %v848 = vld [vmem:[#allocation13] sm:$0x1]
    %v849 = vld [vmem:[#allocation13 + $0x1] sm:$0x3]
    %v850 = vld [vmem:[#allocation13 + $0x3] sm:$0xff]
    %v851 = vld [vmem:[#allocation13 + $0xb] sm:$0xf]
    %v852 = vld [vmem:[#allocation13 + $0xf] sm:$0xff]
    %v853 = vld [vmem:[#allocation13 + $0x17] sm:$0xf]
    %v854 = vld [vmem:[#allocation13 + $0x1b] sm:$0x3f]
    %v855 = vld [vmem:[#allocation13 + $0x21] sm:$0x3f]
    %v856 = vld [vmem:[#allocation13 + $0x27] sm:$0x1]
    %v859 = vunpack.c.l.s4 1966171168
    %v860 = vunpack.c.0.s8 %v859
    %v861 = vlaneseq
    %v862 = vshrl.u32 %v861, 7
    %v863 = vsub.s32 %v860, %v862
    %v864 = vrot.slane %v111, %v863
    %v866 = vlaneseq
    %vm867 = vcmp.ge.s32.totalorder %v866, 0
    %vm868 = vcmp.lt.s32.totalorder %v866, 256
    %vm869 = vmand %vm867, %vm868
    %870 = vst.msk [vmem:[#allocation3] sm:$0x3] %vm869, %v864
    %871 = vst.msk [vmem:[#allocation3 + $0x2] sm:$0x3] %vm869, %v109
    %v872 = vld [vmem:[#allocation3] sm:$0xf]
    %v874 = vlaneseq
    %v875 = vshrl.u32 %v874, 7
    %v876 = vsub.s32 0, %v875
    %v877 = vrot.slane %v872, %v876
    %v878 = vlaneseq
    %v879 = vshrl.u32 %v878, 7
    %v880 = vsub.s32 1, %v879
    %v881 = vrot.slane %v872, %v880
    %v882 = vlaneseq
    %v883 = vshrl.u32 %v882, 7
    %v884 = vsub.s32 2, %v883
    %v885 = vrot.slane %v872, %v884
    %v886 = vlaneseq
    %v887 = vshrl.u32 %v886, 7
    %v888 = vsub.s32 3, %v887
    %v889 = vrot.slane %v872, %v888
    %v894 = vpack.c.bf16 %v877, %v877
    %v895 = vpack.c.bf16 %v881, %v881
    %v896 = vpack.c.bf16 %v885, %v885
    %v897 = vpack.c.bf16 %v889, %v889
    %v962 = vunpack.c.l.b16 %v112
    %v963 = vunpack.c.l.b16 %v113
    %v964 = vunpack.c.l.b16 %v114
    %v965 = vunpack.c.l.b16 %v115
    %v966 = vunpack.c.l.b16 %v116
    %v967 = vunpack.c.l.b16 %v117
    %v968 = vunpack.c.l.b16 %v118
    %v969 = vunpack.c.l.b16 %v119
    %v970 = vunpack.c.l.b16 %v120
    %v971 = vunpack.c.l.b16 %v121
    %v972 = vunpack.c.l.b16 %v122
    %v973 = vunpack.c.l.b16 %v123
    %v974 = vunpack.c.l.b16 %v124
    %v975 = vunpack.c.l.b16 %v125
    %v976 = vunpack.c.l.b16 %v126
    %v977 = vunpack.c.l.b16 %v127
    %v978 = vunpack.c.l.b16 %v128
    %v979 = vunpack.c.l.b16 %v129
    %v980 = vunpack.c.l.b16 %v130
    %v981 = vunpack.c.l.b16 %v131
    %v982 = vunpack.c.l.b16 %v132
    %v983 = vunpack.c.l.b16 %v133
    %v984 = vunpack.c.l.b16 %v134
    %v985 = vunpack.c.l.b16 %v135
    %v986 = vunpack.c.l.b16 %v136
    %v987 = vunpack.c.l.b16 %v137
    %v988 = vunpack.c.l.b16 %v138
    %v989 = vunpack.c.l.b16 %v139
    %v990 = vunpack.c.l.b16 %v140
    %v991 = vunpack.c.l.b16 %v141
    %v992 = vunpack.c.l.b16 %v142
    %v993 = vunpack.c.l.b16 %v143
    %v994 = vunpack.c.l.b16 %v144
    %v995 = vunpack.c.l.b16 %v145
    %v996 = vunpack.c.l.b16 %v146
    %v997 = vunpack.c.l.b16 %v147
    %v998 = vunpack.c.l.b16 %v148
    %v999 = vunpack.c.l.b16 %v149
    %v1000 = vunpack.c.l.b16 %v150
    %v1001 = vunpack.c.l.b16 %v151
    %v1002 = vunpack.c.l.b16 %v152
    %v1003 = vunpack.c.l.b16 %v153
    %v1004 = vunpack.c.l.b16 %v154
    %v1005 = vunpack.c.l.b16 %v155
    %v1006 = vunpack.c.l.b16 %v156
    %v1007 = vunpack.c.l.b16 %v157
    %v1008 = vunpack.c.l.b16 %v158
    %v1009 = vunpack.c.l.b16 %v159
    %v1010 = vunpack.c.l.b16 %v160
    %v1011 = vunpack.c.l.b16 %v161
    %v1012 = vunpack.c.l.b16 %v162
    %v1013 = vunpack.c.l.b16 %v163
    %v1014 = vunpack.c.l.b16 %v164
    %v1015 = vunpack.c.l.b16 %v165
    %v1016 = vunpack.c.l.b16 %v166
    %v1017 = vunpack.c.l.b16 %v167
    %v1018 = vunpack.c.l.b16 %v168
    %v1019 = vunpack.c.l.b16 %v169
    %v1020 = vunpack.c.l.b16 %v170
    %v1021 = vunpack.c.l.b16 %v171
    %v1022 = vunpack.c.l.b16 %v172
    %v1023 = vunpack.c.l.b16 %v173
    %v1024 = vunpack.c.l.b16 %v174
    %v1025 = vunpack.c.l.b16 %v175
    %v1026 = vpack.c.b16 %v963, %v962
    %v1027 = vpack.c.b16 %v965, %v964
    %v1028 = vpack.c.b16 %v967, %v966
    %v1029 = vpack.c.b16 %v969, %v968
    %v1030 = vpack.c.b16 %v971, %v970
    %v1031 = vpack.c.b16 %v973, %v972
    %v1032 = vpack.c.b16 %v975, %v974
    %v1033 = vpack.c.b16 %v977, %v976
    %v1034 = vpack.c.b16 %v979, %v978
    %v1035 = vpack.c.b16 %v981, %v980
    %v1036 = vpack.c.b16 %v983, %v982
    %v1037 = vpack.c.b16 %v985, %v984
    %v1038 = vpack.c.b16 %v987, %v986
    %v1039 = vpack.c.b16 %v989, %v988
    %v1040 = vpack.c.b16 %v991, %v990
    %v1041 = vpack.c.b16 %v993, %v992
    %v1042 = vpack.c.b16 %v995, %v994
    %v1043 = vpack.c.b16 %v997, %v996
    %v1044 = vpack.c.b16 %v999, %v998
    %v1045 = vpack.c.b16 %v1001, %v1000
    %v1046 = vpack.c.b16 %v1003, %v1002
    %v1047 = vpack.c.b16 %v1005, %v1004
    %v1048 = vpack.c.b16 %v1007, %v1006
    %v1049 = vpack.c.b16 %v1009, %v1008
    %v1050 = vpack.c.b16 %v1011, %v1010
    %v1051 = vpack.c.b16 %v1013, %v1012
    %v1052 = vpack.c.b16 %v1015, %v1014
    %v1053 = vpack.c.b16 %v1017, %v1016
    %v1054 = vpack.c.b16 %v1019, %v1018
    %v1055 = vpack.c.b16 %v1021, %v1020
    %v1056 = vpack.c.b16 %v1023, %v1022
    %v1057 = vpack.c.b16 %v1025, %v1024
    %1090 = vmatprep.subr.bf16.mxu0 0
    %1091 = vmatpush1.bf16.msra.mxu0 %v1026
    %1092 = vmatprep.subr.bf16.mxu0 0
    %1093 = vmatpush1.bf16.msra.mxu0 %v1027
    %1094 = vmatprep.subr.bf16.mxu0 0
    %1095 = vmatpush1.bf16.msra.mxu0 %v1028
    %1096 = vmatprep.subr.bf16.mxu0 0
    %1097 = vmatpush1.bf16.msra.mxu0 %v1029
    %1098 = vmatprep.subr.bf16.mxu0 0
    %1099 = vmatpush1.bf16.msra.mxu0 %v1030
    %1100 = vmatprep.subr.bf16.mxu0 0
    %1101 = vmatpush1.bf16.msra.mxu0 %v1031
    %1102 = vmatprep.subr.bf16.mxu0 0
    %1103 = vmatpush1.bf16.msra.mxu0 %v1032
    %1104 = vmatprep.subr.bf16.mxu0 0
    %1105 = vmatpush1.bf16.msra.mxu0 %v1033
    %1106 = vmatprep.subr.bf16.mxu0 0
    %1107 = vmatpush1.bf16.msra.mxu0 %v1034
    %1108 = vmatprep.subr.bf16.mxu0 0
    %1109 = vmatpush1.bf16.msra.mxu0 %v1035
    %1110 = vmatprep.subr.bf16.mxu0 0
    %1111 = vmatpush1.bf16.msra.mxu0 %v1036
    %1112 = vmatprep.subr.bf16.mxu0 0
    %1113 = vmatpush1.bf16.msra.mxu0 %v1037
    %1114 = vmatprep.subr.bf16.mxu0 0
    %1115 = vmatpush1.bf16.msra.mxu0 %v1038
    %1116 = vmatprep.subr.bf16.mxu0 0
    %1117 = vmatpush1.bf16.msra.mxu0 %v1039
    %1118 = vmatprep.subr.bf16.mxu0 0
    %1119 = vmatpush1.bf16.msra.mxu0 %v1040
    %1120 = vmatprep.subr.bf16.mxu0 0
    %1121 = vmatpush1.bf16.msra.mxu0 %v1041
    %1122 = vmatprep.mubr.bf16.mxu0 %v895
    %1123 = vmatmul.mubr.bf16.gmra.mrb[0].mxu0 %v894
    %v1124 = vpop.f32.mrb[0].mxu0
    %v1125 = vadd.f32 %v848, %v1124
    %v1126 = vpop.f32.mrb[0].mxu0
    %v1127 = vpop.f32.mrb[0].mxu0
    %v1128 = vpop.f32.mrb[0].mxu0
    %1129 = vdwg.mxu0
    %1130 = vmatprep.subr.bf16.mxu0 0
    %1131 = vmatpush1.bf16.msra.mxu0 %v1042
    %1132 = vmatprep.subr.bf16.mxu0 0
    %1133 = vmatpush1.bf16.msra.mxu0 %v1043
    %1134 = vmatprep.subr.bf16.mxu0 0
    %1135 = vmatpush1.bf16.msra.mxu0 %v1044
    %1136 = vmatprep.subr.bf16.mxu0 0
    %1137 = vmatpush1.bf16.msra.mxu0 %v1045
    %1138 = vmatprep.subr.bf16.mxu0 0
    %1139 = vmatpush1.bf16.msra.mxu0 %v1046
    %1140 = vmatprep.subr.bf16.mxu0 0
    %1141 = vmatpush1.bf16.msra.mxu0 %v1047
    %1142 = vmatprep.subr.bf16.mxu0 0
    %1143 = vmatpush1.bf16.msra.mxu0 %v1048
    %1144 = vmatprep.subr.bf16.mxu0 0
    %1145 = vmatpush1.bf16.msra.mxu0 %v1049
    %1146 = vmatprep.subr.bf16.mxu0 0
    %1147 = vmatpush1.bf16.msra.mxu0 %v1050
    %1148 = vmatprep.subr.bf16.mxu0 0
    %1149 = vmatpush1.bf16.msra.mxu0 %v1051
    %1150 = vmatprep.subr.bf16.mxu0 0
    %1151 = vmatpush1.bf16.msra.mxu0 %v1052
    %1152 = vmatprep.subr.bf16.mxu0 0
    %1153 = vmatpush1.bf16.msra.mxu0 %v1053
    %1154 = vmatprep.subr.bf16.mxu0 0
    %1155 = vmatpush1.bf16.msra.mxu0 %v1054
    %1156 = vmatprep.subr.bf16.mxu0 0
    %1157 = vmatpush1.bf16.msra.mxu0 %v1055
    %1158 = vmatprep.subr.bf16.mxu0 0
    %1159 = vmatpush1.bf16.msra.mxu0 %v1056
    %1160 = vmatprep.subr.bf16.mxu0 0
    %1161 = vmatpush1.bf16.msra.mxu0 %v1057
    %1162 = vmatprep.mubr.bf16.mxu0 %v897
    %1163 = vmatmul.mubr.bf16.gmra.mrb[0].mxu0 %v896
    %v1164 = vpop.f32.mrb[0].mxu0
    %v1165 = vadd.f32 %v1125, %v1164
    %v1166 = vpop.f32.mrb[0].mxu0
    %v1167 = vpop.f32.mrb[0].mxu0
    %v1168 = vpop.f32.mrb[0].mxu0
    %1169 = vdwg.mxu0
    %v1170 = vmax.f32 %v1165, 0.0
    %v1171 = vlaneseq
    %v1172 = vand.u32 %v1171, 127
    %vm1173 = vcmp.lt.s32.totalorder %v1172, 16
    %v1174 = vsel %vm1173, %v1170, -1e+30
    %vm1175 = vcmask 1040384
    %v1176 = vsel %vm1175, %v1174, -inf
    %1177 = vmax.xlane.f32.xlu0 %v1176
    %v1178 = vpop.xlane.xlu0 %1177
    %v1179 = vsub.f32 %v1174, %v1178
    %v1180 = vmul.f32 %v1179, 1.442695
    %v1181 = vpow.pop %v1180
    %v1182 = vsel %vm1175, %v1181, 0.0
    %1183 = vadd.xlane.f32.xlu0 %v1182
    %v1184 = vpop.xlane.xlu0 %1183
    %v1185 = vrcp.pop %v1184
    %v1186 = vmul.f32 %v1181, %v1185
    %1187 = vst [vmem:[%s9] sm:$0x1] %v1186
    %v1188 = vpack.c.bf16 %v1186, %v1186
    %v1189 = vld [vmem:[%s2] sm:$0xff]
    %v1190 = vld [vmem:[%s2 + $0x8] sm:$0xff]
    %v1191 = vld [vmem:[%s2 + $0x10] sm:$0xff]
    %v1192 = vld [vmem:[%s2 + $0x18] sm:$0xff]
    %v1193 = vld [vmem:[%s2 + $0x20] sm:$0xff]
    %v1194 = vld [vmem:[%s2 + $0x28] sm:$0xff]
    %v1195 = vld [vmem:[%s2 + $0x30] sm:$0xff]
    %v1196 = vld [vmem:[%s2 + $0x38] sm:$0xff]
    %v1197 = vld [vmem:[%s2 + $0x40] sm:$0xff]
    %v1198 = vld [vmem:[%s2 + $0x48] sm:$0xff]
    %v1199 = vld [vmem:[%s2 + $0x50] sm:$0xff]
    %v1200 = vld [vmem:[%s2 + $0x58] sm:$0xff]
    %v1201 = vld [vmem:[%s2 + $0x60] sm:$0xff]
    %v1202 = vld [vmem:[%s2 + $0x68] sm:$0xff]
    %v1203 = vld [vmem:[%s2 + $0x70] sm:$0xff]
    %v1204 = vld [vmem:[%s2 + $0x78] sm:$0xff]
    %v1221 = vunpack.c.l.b16 %v1189
    %v1222 = vunpack.c.h.b16 %v1189
    %v1223 = vunpack.c.l.b16 %v1190
    %v1224 = vunpack.c.h.b16 %v1190
    %v1225 = vunpack.c.l.b16 %v1191
    %v1226 = vunpack.c.h.b16 %v1191
    %v1227 = vunpack.c.l.b16 %v1192
    %v1228 = vunpack.c.h.b16 %v1192
    %v1229 = vunpack.c.l.b16 %v1193
    %v1230 = vunpack.c.h.b16 %v1193
    %v1231 = vunpack.c.l.b16 %v1194
    %v1232 = vunpack.c.h.b16 %v1194
    %v1233 = vunpack.c.l.b16 %v1195
    %v1234 = vunpack.c.h.b16 %v1195
    %v1235 = vunpack.c.l.b16 %v1196
    %v1236 = vunpack.c.h.b16 %v1196
    %v1237 = vunpack.c.l.b16 %v1197
    %v1238 = vunpack.c.h.b16 %v1197
    %v1239 = vunpack.c.l.b16 %v1198
    %v1240 = vunpack.c.h.b16 %v1198
    %v1241 = vunpack.c.l.b16 %v1199
    %v1242 = vunpack.c.h.b16 %v1199
    %v1243 = vunpack.c.l.b16 %v1200
    %v1244 = vunpack.c.h.b16 %v1200
    %v1245 = vunpack.c.l.b16 %v1201
    %v1246 = vunpack.c.h.b16 %v1201
    %v1247 = vunpack.c.l.b16 %v1202
    %v1248 = vunpack.c.h.b16 %v1202
    %v1249 = vunpack.c.l.b16 %v1203
    %v1250 = vunpack.c.h.b16 %v1203
    %v1251 = vunpack.c.l.b16 %v1204
    %v1252 = vunpack.c.h.b16 %v1204
    %v1253 = vpack.c.b16 %v1223, %v1221
    %v1254 = vpack.c.b16 %v1224, %v1222
    %v1255 = vpack.c.b16 %v1227, %v1225
    %v1256 = vpack.c.b16 %v1228, %v1226
    %v1257 = vpack.c.b16 %v1231, %v1229
    %v1258 = vpack.c.b16 %v1232, %v1230
    %v1259 = vpack.c.b16 %v1235, %v1233
    %v1260 = vpack.c.b16 %v1236, %v1234
    %v1261 = vpack.c.b16 %v1239, %v1237
    %v1262 = vpack.c.b16 %v1240, %v1238
    %v1263 = vpack.c.b16 %v1243, %v1241
    %v1264 = vpack.c.b16 %v1244, %v1242
    %v1265 = vpack.c.b16 %v1247, %v1245
    %v1266 = vpack.c.b16 %v1248, %v1246
    %v1267 = vpack.c.b16 %v1251, %v1249
    %v1268 = vpack.c.b16 %v1252, %v1250
    %1285 = vmatprep.subr.bf16.mxu0 %v1254
    %1286 = vmatpush1.bf16.msra.mxu0 %v1253
    %1287 = vmatprep.subr.bf16.mxu0 %v1256
    %1288 = vmatpush1.bf16.msra.mxu0 %v1255
    %1289 = vmatprep.subr.bf16.mxu0 %v1258
    %1290 = vmatpush1.bf16.msra.mxu0 %v1257
    %1291 = vmatprep.subr.bf16.mxu0 %v1260
    %1292 = vmatpush1.bf16.msra.mxu0 %v1259
    %1293 = vmatprep.subr.bf16.mxu0 %v1262
    %1294 = vmatpush1.bf16.msra.mxu0 %v1261
    %1295 = vmatprep.subr.bf16.mxu0 %v1264
    %1296 = vmatpush1.bf16.msra.mxu0 %v1263
    %1297 = vmatprep.subr.bf16.mxu0 %v1266
    %1298 = vmatpush1.bf16.msra.mxu0 %v1265
    %1299 = vmatprep.subr.bf16.mxu0 %v1268
    %1300 = vmatpush1.bf16.msra.mxu0 %v1267
    %1301 = vmatprep.subr.bf16.mxu0 0
    %1302 = vmatpush1.bf16.msra.mxu0 0
    %1303 = vmatprep.subr.bf16.mxu0 0
    %1304 = vmatpush1.bf16.msra.mxu0 0
    %1305 = vmatprep.subr.bf16.mxu0 0
    %1306 = vmatpush1.bf16.msra.mxu0 0
    %1307 = vmatprep.subr.bf16.mxu0 0
    %1308 = vmatpush1.bf16.msra.mxu0 0
    %1309 = vmatprep.subr.bf16.mxu0 0
    %1310 = vmatpush1.bf16.msra.mxu0 0
    %1311 = vmatprep.subr.bf16.mxu0 0
    %1312 = vmatpush1.bf16.msra.mxu0 0
    %1313 = vmatprep.subr.bf16.mxu0 0
    %1314 = vmatpush1.bf16.msra.mxu0 0
    %1315 = vmatprep.subr.bf16.mxu0 0
    %1316 = vmatpush1.bf16.msra.mxu0 0
    %1317 = vmatprep.mubr.bf16.mxu0 0
    %1318 = vmatmul.mubr.bf16.gmra.mrb[0].mxu0 %v1188
    %v1319 = vpop.f32.mrb[0].mxu0
    %v1320 = vadd.f32 0.0, %v1319
    %v1321 = vpop.f32.mrb[0].mxu0
    %v1322 = vadd.f32 0.0, %v1321
    %v1323 = vpop.f32.mrb[0].mxu0
    %v1324 = vpop.f32.mrb[0].mxu0
    %1325 = vdwg.mxu0
    %v1328 = vcombine.low %v1320, %v1322
    %v1330 = vunpack.c.l.s4 1966171168
    %v1331 = vunpack.c.0.s8 %v1330
    %v1332 = vlaneseq
    %v1333 = vshrl.u32 %v1332, 7
    %v1334 = vsub.s32 %v1331, %v1333
    %v1335 = vrot.slane %v1328, %v1334
    %v1337 = vunpack.c.l.s4 1966171168
    %v1338 = vunpack.c.0.s8 %v1337
    %v1339 = vlaneseq
    %v1340 = vshrl.u32 %v1339, 7
    %v1341 = vsub.s32 %v1338, %v1340
    %v1342 = vrot.slane %v1335, %v1341
    %1344 = vst.msk [vmem:[#allocation3 + $0x2] sm:$0x3] %vm869, %v1342
    %v1345 = vld [vmem:[#allocation3] sm:$0xf]
    %v1347 = vlaneseq
    %v1348 = vshrl.u32 %v1347, 7
    %v1349 = vsub.s32 0, %v1348
    %v1350 = vrot.slane %v1345, %v1349
    %v1351 = vlaneseq
    %v1352 = vshrl.u32 %v1351, 7
    %v1353 = vsub.s32 1, %v1352
    %v1354 = vrot.slane %v1345, %v1353
    %v1355 = vlaneseq
    %v1356 = vshrl.u32 %v1355, 7
    %v1357 = vsub.s32 2, %v1356
    %v1358 = vrot.slane %v1345, %v1357
    %v1359 = vlaneseq
    %v1360 = vshrl.u32 %v1359, 7
    %v1361 = vsub.s32 3, %v1360
    %v1362 = vrot.slane %v1345, %v1361
    %v1367 = vpack.c.bf16 %v1350, %v1350
    %v1368 = vpack.c.bf16 %v1354, %v1354
    %v1369 = vpack.c.bf16 %v1358, %v1358
    %v1370 = vpack.c.bf16 %v1362, %v1362
    %v1435 = vunpack.c.l.b16 %v176
    %v1436 = vunpack.c.h.b16 %v176
    %v1437 = vunpack.c.l.b16 %v177
    %v1438 = vunpack.c.h.b16 %v177
    %v1439 = vunpack.c.l.b16 %v178
    %v1440 = vunpack.c.h.b16 %v178
    %v1441 = vunpack.c.l.b16 %v179
    %v1442 = vunpack.c.h.b16 %v179
    %v1443 = vunpack.c.l.b16 %v180
    %v1444 = vunpack.c.h.b16 %v180
    %v1445 = vunpack.c.l.b16 %v181
    %v1446 = vunpack.c.h.b16 %v181
    %v1447 = vunpack.c.l.b16 %v182
    %v1448 = vunpack.c.h.b16 %v182
    %v1449 = vunpack.c.l.b16 %v183
    %v1450 = vunpack.c.h.b16 %v183
    %v1451 = vunpack.c.l.b16 %v184
    %v1452 = vunpack.c.h.b16 %v184
    %v1453 = vunpack.c.l.b16 %v185
    %v1454 = vunpack.c.h.b16 %v185
    %v1455 = vunpack.c.l.b16 %v186
    %v1456 = vunpack.c.h.b16 %v186
    %v1457 = vunpack.c.l.b16 %v187
    %v1458 = vunpack.c.h.b16 %v187
    %v1459 = vunpack.c.l.b16 %v188
    %v1460 = vunpack.c.h.b16 %v188
    %v1461 = vunpack.c.l.b16 %v189
    %v1462 = vunpack.c.h.b16 %v189
    %v1463 = vunpack.c.l.b16 %v190
    %v1464 = vunpack.c.h.b16 %v190
    %v1465 = vunpack.c.l.b16 %v191
    %v1466 = vunpack.c.h.b16 %v191
    %v1467 = vunpack.c.l.b16 %v192
    %v1468 = vunpack.c.h.b16 %v192
    %v1469 = vunpack.c.l.b16 %v193
    %v1470 = vunpack.c.h.b16 %v193
    %v1471 = vunpack.c.l.b16 %v194
    %v1472 = vunpack.c.h.b16 %v194
    %v1473 = vunpack.c.l.b16 %v195
    %v1474 = vunpack.c.h.b16 %v195
    %v1475 = vunpack.c.l.b16 %v196
    %v1476 = vunpack.c.h.b16 %v196
    %v1477 = vunpack.c.l.b16 %v197
    %v1478 = vunpack.c.h.b16 %v197
    %v1479 = vunpack.c.l.b16 %v198
    %v1480 = vunpack.c.h.b16 %v198
    %v1481 = vunpack.c.l.b16 %v199
    %v1482 = vunpack.c.h.b16 %v199
    %v1483 = vunpack.c.l.b16 %v200
    %v1484 = vunpack.c.h.b16 %v200
    %v1485 = vunpack.c.l.b16 %v201
    %v1486 = vunpack.c.h.b16 %v201
    %v1487 = vunpack.c.l.b16 %v202
    %v1488 = vunpack.c.h.b16 %v202
    %v1489 = vunpack.c.l.b16 %v203
    %v1490 = vunpack.c.h.b16 %v203
    %v1491 = vunpack.c.l.b16 %v204
    %v1492 = vunpack.c.h.b16 %v204
    %v1493 = vunpack.c.l.b16 %v205
    %v1494 = vunpack.c.h.b16 %v205
    %v1495 = vunpack.c.l.b16 %v206
    %v1496 = vunpack.c.h.b16 %v206
    %v1497 = vunpack.c.l.b16 %v207
    %v1498 = vunpack.c.h.b16 %v207
    %v1499 = vunpack.c.l.b16 %v208
    %v1500 = vunpack.c.h.b16 %v208
    %v1501 = vunpack.c.l.b16 %v209
    %v1502 = vunpack.c.h.b16 %v209
    %v1503 = vunpack.c.l.b16 %v210
    %v1504 = vunpack.c.h.b16 %v210
    %v1505 = vunpack.c.l.b16 %v211
    %v1506 = vunpack.c.h.b16 %v211
    %v1507 = vunpack.c.l.b16 %v212
    %v1508 = vunpack.c.h.b16 %v212
    %v1509 = vunpack.c.l.b16 %v213
    %v1510 = vunpack.c.h.b16 %v213
    %v1511 = vunpack.c.l.b16 %v214
    %v1512 = vunpack.c.h.b16 %v214
    %v1513 = vunpack.c.l.b16 %v215
    %v1514 = vunpack.c.h.b16 %v215
    %v1515 = vunpack.c.l.b16 %v216
    %v1516 = vunpack.c.h.b16 %v216
    %v1517 = vunpack.c.l.b16 %v217
    %v1518 = vunpack.c.h.b16 %v217
    %v1519 = vunpack.c.l.b16 %v218
    %v1520 = vunpack.c.h.b16 %v218
    %v1521 = vunpack.c.l.b16 %v219
    %v1522 = vunpack.c.h.b16 %v219
    %v1523 = vunpack.c.l.b16 %v220
    %v1524 = vunpack.c.h.b16 %v220
    %v1525 = vunpack.c.l.b16 %v221
    %v1526 = vunpack.c.h.b16 %v221
    %v1527 = vunpack.c.l.b16 %v222
    %v1528 = vunpack.c.h.b16 %v222
    %v1529 = vunpack.c.l.b16 %v223
    %v1530 = vunpack.c.h.b16 %v223
    %v1531 = vunpack.c.l.b16 %v224
    %v1532 = vunpack.c.h.b16 %v224
    %v1533 = vunpack.c.l.b16 %v225
    %v1534 = vunpack.c.h.b16 %v225
    %v1535 = vunpack.c.l.b16 %v226
    %v1536 = vunpack.c.h.b16 %v226
    %v1537 = vunpack.c.l.b16 %v227
    %v1538 = vunpack.c.h.b16 %v227
    %v1539 = vunpack.c.l.b16 %v228
    %v1540 = vunpack.c.h.b16 %v228
    %v1541 = vunpack.c.l.b16 %v229
    %v1542 = vunpack.c.h.b16 %v229
    %v1543 = vunpack.c.l.b16 %v230
    %v1544 = vunpack.c.h.b16 %v230
    %v1545 = vunpack.c.l.b16 %v231
    %v1546 = vunpack.c.h.b16 %v231
    %v1547 = vunpack.c.l.b16 %v232
    %v1548 = vunpack.c.h.b16 %v232
    %v1549 = vunpack.c.l.b16 %v233
    %v1550 = vunpack.c.h.b16 %v233
    %v1551 = vunpack.c.l.b16 %v234
    %v1552 = vunpack.c.h.b16 %v234
    %v1553 = vunpack.c.l.b16 %v235
    %v1554 = vunpack.c.h.b16 %v235
    %v1555 = vunpack.c.l.b16 %v236
    %v1556 = vunpack.c.h.b16 %v236
    %v1557 = vunpack.c.l.b16 %v237
    %v1558 = vunpack.c.h.b16 %v237
    %v1559 = vunpack.c.l.b16 %v238
    %v1560 = vunpack.c.h.b16 %v238
    %v1561 = vunpack.c.l.b16 %v239
    %v1562 = vunpack.c.h.b16 %v239
    %v1563 = vpack.c.b16 %v1437, %v1435
    %v1564 = vpack.c.b16 %v1438, %v1436
    %v1565 = vpack.c.b16 %v1441, %v1439
    %v1566 = vpack.c.b16 %v1442, %v1440
    %v1567 = vpack.c.b16 %v1445, %v1443
    %v1568 = vpack.c.b16 %v1446, %v1444
    %v1569 = vpack.c.b16 %v1449, %v1447
    %v1570 = vpack.c.b16 %v1450, %v1448
    %v1571 = vpack.c.b16 %v1453, %v1451
    %v1572 = vpack.c.b16 %v1454, %v1452
    %v1573 = vpack.c.b16 %v1457, %v1455
    %v1574 = vpack.c.b16 %v1458, %v1456
    %v1575 = vpack.c.b16 %v1461, %v1459
    %v1576 = vpack.c.b16 %v1462, %v1460
    %v1577 = vpack.c.b16 %v1465, %v1463
    %v1578 = vpack.c.b16 %v1466, %v1464
    %v1579 = vpack.c.b16 %v1469, %v1467
    %v1580 = vpack.c.b16 %v1470, %v1468
    %v1581 = vpack.c.b16 %v1473, %v1471
    %v1582 = vpack.c.b16 %v1474, %v1472
    %v1583 = vpack.c.b16 %v1477, %v1475
    %v1584 = vpack.c.b16 %v1478, %v1476
    %v1585 = vpack.c.b16 %v1481, %v1479
    %v1586 = vpack.c.b16 %v1482, %v1480
    %v1587 = vpack.c.b16 %v1485, %v1483
    %v1588 = vpack.c.b16 %v1486, %v1484
    %v1589 = vpack.c.b16 %v1489, %v1487
    %v1590 = vpack.c.b16 %v1490, %v1488
    %v1591 = vpack.c.b16 %v1493, %v1491
    %v1592 = vpack.c.b16 %v1494, %v1492
    %v1593 = vpack.c.b16 %v1497, %v1495
    %v1594 = vpack.c.b16 %v1498, %v1496
    %v1595 = vpack.c.b16 %v1501, %v1499
    %v1596 = vpack.c.b16 %v1502, %v1500
    %v1597 = vpack.c.b16 %v1505, %v1503
    %v1598 = vpack.c.b16 %v1506, %v1504
    %v1599 = vpack.c.b16 %v1509, %v1507
    %v1600 = vpack.c.b16 %v1510, %v1508
    %v1601 = vpack.c.b16 %v1513, %v1511
    %v1602 = vpack.c.b16 %v1514, %v1512
    %v1603 = vpack.c.b16 %v1517, %v1515
    %v1604 = vpack.c.b16 %v1518, %v1516
    %v1605 = vpack.c.b16 %v1521, %v1519
    %v1606 = vpack.c.b16 %v1522, %v1520
    %v1607 = vpack.c.b16 %v1525, %v1523
    %v1608 = vpack.c.b16 %v1526, %v1524
    %v1609 = vpack.c.b16 %v1529, %v1527
    %v1610 = vpack.c.b16 %v1530, %v1528
    %v1611 = vpack.c.b16 %v1533, %v1531
    %v1612 = vpack.c.b16 %v1534, %v1532
    %v1613 = vpack.c.b16 %v1537, %v1535
    %v1614 = vpack.c.b16 %v1538, %v1536
    %v1615 = vpack.c.b16 %v1541, %v1539
    %v1616 = vpack.c.b16 %v1542, %v1540
    %v1617 = vpack.c.b16 %v1545, %v1543
    %v1618 = vpack.c.b16 %v1546, %v1544
    %v1619 = vpack.c.b16 %v1549, %v1547
    %v1620 = vpack.c.b16 %v1550, %v1548
    %v1621 = vpack.c.b16 %v1553, %v1551
    %v1622 = vpack.c.b16 %v1554, %v1552
    %v1623 = vpack.c.b16 %v1557, %v1555
    %v1624 = vpack.c.b16 %v1558, %v1556
    %v1625 = vpack.c.b16 %v1561, %v1559
    %v1626 = vpack.c.b16 %v1562, %v1560
    %v1692 = vlaneseq
    %v1693 = vshrl.u32 %v1692, 7
    %v1694 = vsub.s32 0, %v1693
    %v1695 = vrot.slane %v849, %v1694
    %v1696 = vlaneseq
    %v1697 = vshrl.u32 %v1696, 7
    %v1698 = vsub.s32 1, %v1697
    %v1699 = vrot.slane %v849, %v1698
    %1702 = vmatprep.subr.bf16.mxu0 %v1564
    %1703 = vmatpush1.bf16.msra.mxu0 %v1563
    %1704 = vmatprep.subr.bf16.mxu0 %v1566
    %1705 = vmatpush1.bf16.msra.mxu0 %v1565
    %1706 = vmatprep.subr.bf16.mxu0 %v1568
    %1707 = vmatpush1.bf16.msra.mxu0 %v1567
    %1708 = vmatprep.subr.bf16.mxu0 %v1570
    %1709 = vmatpush1.bf16.msra.mxu0 %v1569
    %1710 = vmatprep.subr.bf16.mxu0 %v1572
    %1711 = vmatpush1.bf16.msra.mxu0 %v1571
    %1712 = vmatprep.subr.bf16.mxu0 %v1574
    %1713 = vmatpush1.bf16.msra.mxu0 %v1573
    %1714 = vmatprep.subr.bf16.mxu0 %v1576
    %1715 = vmatpush1.bf16.msra.mxu0 %v1575
    %1716 = vmatprep.subr.bf16.mxu0 %v1578
    %1717 = vmatpush1.bf16.msra.mxu0 %v1577
    %1718 = vmatprep.subr.bf16.mxu0 %v1580
    %1719 = vmatpush1.bf16.msra.mxu0 %v1579
    %1720 = vmatprep.subr.bf16.mxu0 %v1582
    %1721 = vmatpush1.bf16.msra.mxu0 %v1581
    %1722 = vmatprep.subr.bf16.mxu0 %v1584
    %1723 = vmatpush1.bf16.msra.mxu0 %v1583
    %1724 = vmatprep.subr.bf16.mxu0 %v1586
    %1725 = vmatpush1.bf16.msra.mxu0 %v1585
    %1726 = vmatprep.subr.bf16.mxu0 %v1588
    %1727 = vmatpush1.bf16.msra.mxu0 %v1587
    %1728 = vmatprep.subr.bf16.mxu0 %v1590
    %1729 = vmatpush1.bf16.msra.mxu0 %v1589
    %1730 = vmatprep.subr.bf16.mxu0 %v1592
    %1731 = vmatpush1.bf16.msra.mxu0 %v1591
    %1732 = vmatprep.subr.bf16.mxu0 %v1594
    %1733 = vmatpush1.bf16.msra.mxu0 %v1593
    %1734 = vmatprep.mubr.bf16.mxu0 %v1368
    %1735 = vmatmul.mubr.bf16.gmra.mrb[0].mxu0 %v1367
    %v1736 = vpop.f32.mrb[0].mxu0
    %v1737 = vadd.f32 %v1695, %v1736
    %v1738 = vpop.f32.mrb[0].mxu0
    %v1739 = vadd.f32 %v1699, %v1738
    %v1740 = vpop.f32.mrb[0].mxu0
    %v1741 = vpop.f32.mrb[0].mxu0
    %1742 = vdwg.mxu0
    %1743 = vmatprep.subr.bf16.mxu0 %v1596
    %1744 = vmatpush1.bf16.msra.mxu0 %v1595
    %1745 = vmatprep.subr.bf16.mxu0 %v1598
    %1746 = vmatpush1.bf16.msra.mxu0 %v1597
    %1747 = vmatprep.subr.bf16.mxu0 %v1600
    %1748 = vmatpush1.bf16.msra.mxu0 %v1599
    %1749 = vmatprep.subr.bf16.mxu0 %v1602
    %1750 = vmatpush1.bf16.msra.mxu0 %v1601
    %1751 = vmatprep.subr.bf16.mxu0 %v1604
    %1752 = vmatpush1.bf16.msra.mxu0 %v1603
    %1753 = vmatprep.subr.bf16.mxu0 %v1606
    %1754 = vmatpush1.bf16.msra.mxu0 %v1605
    %1755 = vmatprep.subr.bf16.mxu0 %v1608
    %1756 = vmatpush1.bf16.msra.mxu0 %v1607
    %1757 = vmatprep.subr.bf16.mxu0 %v1610
    %1758 = vmatpush1.bf16.msra.mxu0 %v1609
    %1759 = vmatprep.subr.bf16.mxu0 %v1612
    %1760 = vmatpush1.bf16.msra.mxu0 %v1611
    %1761 = vmatprep.subr.bf16.mxu0 %v1614
    %1762 = vmatpush1.bf16.msra.mxu0 %v1613
    %1763 = vmatprep.subr.bf16.mxu0 %v1616
    %1764 = vmatpush1.bf16.msra.mxu0 %v1615
    %1765 = vmatprep.subr.bf16.mxu0 %v1618
    %1766 = vmatpush1.bf16.msra.mxu0 %v1617
    %1767 = vmatprep.subr.bf16.mxu0 %v1620
    %1768 = vmatpush1.bf16.msra.mxu0 %v1619
    %1769 = vmatprep.subr.bf16.mxu0 %v1622
    %1770 = vmatpush1.bf16.msra.mxu0 %v1621
    %1771 = vmatprep.subr.bf16.mxu0 %v1624
    %1772 = vmatpush1.bf16.msra.mxu0 %v1623
    %1773 = vmatprep.subr.bf16.mxu0 %v1626
    %1774 = vmatpush1.bf16.msra.mxu0 %v1625
    %1775 = vmatprep.mubr.bf16.mxu0 %v1370
    %1776 = vmatmul.mubr.bf16.gmra.mrb[0].mxu0 %v1369
    %v1777 = vpop.f32.mrb[0].mxu0
    %v1778 = vadd.f32 %v1737, %v1777
    %v1779 = vpop.f32.mrb[0].mxu0
    %v1780 = vadd.f32 %v1739, %v1779
    %v1781 = vpop.f32.mrb[0].mxu0
    %v1782 = vpop.f32.mrb[0].mxu0
    %1783 = vdwg.mxu0
    %v1784 = vmax.f32 %v1778, 0.0
    %v1785 = vmax.f32 %v1780, 0.0
    %v1786 = vpack.c.bf16 %v1784, %v1784
    %v1787 = vpack.c.bf16 %v1785, %v1785
    %v1980 = vunpack.c.l.b16 %v240
    %v1981 = vunpack.c.h.b16 %v240
    %v1982 = vunpack.c.l.b16 %v241
    %v1983 = vunpack.c.h.b16 %v241
    %v1984 = vunpack.c.l.b16 %v242
    %v1985 = vunpack.c.h.b16 %v242
    %v1986 = vunpack.c.l.b16 %v243
    %v1987 = vunpack.c.h.b16 %v243
    %v1988 = vunpack.c.l.b16 %v244
    %v1989 = vunpack.c.h.b16 %v244
    %v1990 = vunpack.c.l.b16 %v245
    %v1991 = vunpack.c.h.b16 %v245
    %v1992 = vunpack.c.l.b16 %v246
    %v1993 = vunpack.c.h.b16 %v246
    %v1994 = vunpack.c.l.b16 %v247
    %v1995 = vunpack.c.h.b16 %v247
    %v1996 = vunpack.c.l.b16 %v248
    %v1997 = vunpack.c.h.b16 %v248
    %v1998 = vunpack.c.l.b16 %v249
    %v1999 = vunpack.c.h.b16 %v249
    %v2000 = vunpack.c.l.b16 %v250
    %v2001 = vunpack.c.h.b16 %v250
    %v2002 = vunpack.c.l.b16 %v251
    %v2003 = vunpack.c.h.b16 %v251
    %v2004 = vunpack.c.l.b16 %v252
    %v2005 = vunpack.c.h.b16 %v252
    %v2006 = vunpack.c.l.b16 %v253
    %v2007 = vunpack.c.h.b16 %v253
    %v2008 = vunpack.c.l.b16 %v254
    %v2009 = vunpack.c.h.b16 %v254
    %v2010 = vunpack.c.l.b16 %v255
    %v2011 = vunpack.c.h.b16 %v255
    %v2012 = vunpack.c.l.b16 %v256
    %v2013 = vunpack.c.h.b16 %v256
    %v2014 = vunpack.c.l.b16 %v257
    %v2015 = vunpack.c.h.b16 %v257
    %v2016 = vunpack.c.l.b16 %v258
    %v2017 = vunpack.c.h.b16 %v258
    %v2018 = vunpack.c.l.b16 %v259
    %v2019 = vunpack.c.h.b16 %v259
    %v2020 = vunpack.c.l.b16 %v260
    %v2021 = vunpack.c.h.b16 %v260
    %v2022 = vunpack.c.l.b16 %v261
    %v2023 = vunpack.c.h.b16 %v261
    %v2024 = vunpack.c.l.b16 %v262
    %v2025 = vunpack.c.h.b16 %v262
    %v2026 = vunpack.c.l.b16 %v263
    %v2027 = vunpack.c.h.b16 %v263
    %v2028 = vunpack.c.l.b16 %v264
    %v2029 = vunpack.c.h.b16 %v264
    %v2030 = vunpack.c.l.b16 %v265
    %v2031 = vunpack.c.h.b16 %v265
    %v2032 = vunpack.c.l.b16 %v266
    %v2033 = vunpack.c.h.b16 %v266
    %v2034 = vunpack.c.l.b16 %v267
    %v2035 = vunpack.c.h.b16 %v267
    %v2036 = vunpack.c.l.b16 %v268
    %v2037 = vunpack.c.h.b16 %v268
    %v2038 = vunpack.c.l.b16 %v269
    %v2039 = vunpack.c.h.b16 %v269
    %v2040 = vunpack.c.l.b16 %v270
    %v2041 = vunpack.c.h.b16 %v270
    %v2042 = vunpack.c.l.b16 %v271
    %v2043 = vunpack.c.h.b16 %v271
    %v2044 = vunpack.c.l.b16 %v272
    %v2045 = vunpack.c.h.b16 %v272
    %v2046 = vunpack.c.l.b16 %v273
    %v2047 = vunpack.c.h.b16 %v273
    %v2048 = vunpack.c.l.b16 %v274
    %v2049 = vunpack.c.h.b16 %v274
    %v2050 = vunpack.c.l.b16 %v275
    %v2051 = vunpack.c.h.b16 %v275
    %v2052 = vunpack.c.l.b16 %v276
    %v2053 = vunpack.c.h.b16 %v276
    %v2054 = vunpack.c.l.b16 %v277
    %v2055 = vunpack.c.h.b16 %v277
    %v2056 = vunpack.c.l.b16 %v278
    %v2057 = vunpack.c.h.b16 %v278
    %v2058 = vunpack.c.l.b16 %v279
    %v2059 = vunpack.c.h.b16 %v279
    %v2060 = vunpack.c.l.b16 %v280
    %v2061 = vunpack.c.h.b16 %v280
    %v2062 = vunpack.c.l.b16 %v281
    %v2063 = vunpack.c.h.b16 %v281
    %v2064 = vunpack.c.l.b16 %v282
    %v2065 = vunpack.c.h.b16 %v282
    %v2066 = vunpack.c.l.b16 %v283
    %v2067 = vunpack.c.h.b16 %v283
    %v2068 = vunpack.c.l.b16 %v284
    %v2069 = vunpack.c.h.b16 %v284
    %v2070 = vunpack.c.l.b16 %v285
    %v2071 = vunpack.c.h.b16 %v285
    %v2072 = vunpack.c.l.b16 %v286
    %v2073 = vunpack.c.h.b16 %v286
    %v2074 = vunpack.c.l.b16 %v287
    %v2075 = vunpack.c.h.b16 %v287
    %v2076 = vunpack.c.l.b16 %v288
    %v2077 = vunpack.c.h.b16 %v288
    %v2078 = vunpack.c.l.b16 %v289
    %v2079 = vunpack.c.h.b16 %v289
    %v2080 = vunpack.c.l.b16 %v290
    %v2081 = vunpack.c.h.b16 %v290
    %v2082 = vunpack.c.l.b16 %v291
    %v2083 = vunpack.c.h.b16 %v291
    %v2084 = vunpack.c.l.b16 %v292
    %v2085 = vunpack.c.h.b16 %v292
    %v2086 = vunpack.c.l.b16 %v293
    %v2087 = vunpack.c.h.b16 %v293
    %v2088 = vunpack.c.l.b16 %v294
    %v2089 = vunpack.c.h.b16 %v294
    %v2090 = vunpack.c.l.b16 %v295
    %v2091 = vunpack.c.h.b16 %v295
    %v2092 = vunpack.c.l.b16 %v296
    %v2093 = vunpack.c.h.b16 %v296
    %v2094 = vunpack.c.l.b16 %v297
    %v2095 = vunpack.c.h.b16 %v297
    %v2096 = vunpack.c.l.b16 %v298
    %v2097 = vunpack.c.h.b16 %v298
    %v2098 = vunpack.c.l.b16 %v299
    %v2099 = vunpack.c.h.b16 %v299
    %v2100 = vunpack.c.l.b16 %v300
    %v2101 = vunpack.c.h.b16 %v300
    %v2102 = vunpack.c.l.b16 %v301
    %v2103 = vunpack.c.h.b16 %v301
    %v2104 = vunpack.c.l.b16 %v302
    %v2105 = vunpack.c.h.b16 %v302
    %v2106 = vunpack.c.l.b16 %v303
    %v2107 = vunpack.c.h.b16 %v303
    %v2108 = vunpack.c.l.b16 %v304
    %v2109 = vunpack.c.h.b16 %v304
    %v2110 = vunpack.c.l.b16 %v305
    %v2111 = vunpack.c.h.b16 %v305
    %v2112 = vunpack.c.l.b16 %v306
    %v2113 = vunpack.c.h.b16 %v306
    %v2114 = vunpack.c.l.b16 %v307
    %v2115 = vunpack.c.h.b16 %v307
    %v2116 = vunpack.c.l.b16 %v308
    %v2117 = vunpack.c.h.b16 %v308
    %v2118 = vunpack.c.l.b16 %v309
    %v2119 = vunpack.c.h.b16 %v309
    %v2120 = vunpack.c.l.b16 %v310
    %v2121 = vunpack.c.h.b16 %v310
    %v2122 = vunpack.c.l.b16 %v311
    %v2123 = vunpack.c.h.b16 %v311
    %v2124 = vunpack.c.l.b16 %v312
    %v2125 = vunpack.c.h.b16 %v312
    %v2126 = vunpack.c.l.b16 %v313
    %v2127 = vunpack.c.h.b16 %v313
    %v2128 = vunpack.c.l.b16 %v314
    %v2129 = vunpack.c.h.b16 %v314
    %v2130 = vunpack.c.l.b16 %v315
    %v2131 = vunpack.c.h.b16 %v315
    %v2132 = vunpack.c.l.b16 %v316
    %v2133 = vunpack.c.h.b16 %v316
    %v2134 = vunpack.c.l.b16 %v317
    %v2135 = vunpack.c.h.b16 %v317
    %v2136 = vunpack.c.l.b16 %v318
    %v2137 = vunpack.c.h.b16 %v318
    %v2138 = vunpack.c.l.b16 %v319
    %v2139 = vunpack.c.h.b16 %v319
    %v2140 = vunpack.c.l.b16 %v320
    %v2141 = vunpack.c.h.b16 %v320
    %v2142 = vunpack.c.l.b16 %v321
    %v2143 = vunpack.c.h.b16 %v321
    %v2144 = vunpack.c.l.b16 %v322
    %v2145 = vunpack.c.h.b16 %v322
    %v2146 = vunpack.c.l.b16 %v323
    %v2147 = vunpack.c.h.b16 %v323
    %v2148 = vunpack.c.l.b16 %v324
    %v2149 = vunpack.c.h.b16 %v324
    %v2150 = vunpack.c.l.b16 %v325
    %v2151 = vunpack.c.h.b16 %v325
    %v2152 = vunpack.c.l.b16 %v326
    %v2153 = vunpack.c.h.b16 %v326
    %v2154 = vunpack.c.l.b16 %v327
    %v2155 = vunpack.c.h.b16 %v327
    %v2156 = vunpack.c.l.b16 %v328
    %v2157 = vunpack.c.h.b16 %v328
    %v2158 = vunpack.c.l.b16 %v329
    %v2159 = vunpack.c.h.b16 %v329
    %v2160 = vunpack.c.l.b16 %v330
    %v2161 = vunpack.c.h.b16 %v330
    %v2162 = vunpack.c.l.b16 %v331
    %v2163 = vunpack.c.h.b16 %v331
    %v2164 = vunpack.c.l.b16 %v332
    %v2165 = vunpack.c.h.b16 %v332
    %v2166 = vunpack.c.l.b16 %v333
    %v2167 = vunpack.c.h.b16 %v333
    %v2168 = vunpack.c.l.b16 %v334
    %v2169 = vunpack.c.h.b16 %v334
    %v2170 = vunpack.c.l.b16 %v335
    %v2171 = vunpack.c.h.b16 %v335
    %v2172 = vunpack.c.l.b16 %v336
    %v2173 = vunpack.c.h.b16 %v336
    %v2174 = vunpack.c.l.b16 %v337
    %v2175 = vunpack.c.h.b16 %v337
    %v2176 = vunpack.c.l.b16 %v338
    %v2177 = vunpack.c.h.b16 %v338
    %v2178 = vunpack.c.l.b16 %v339
    %v2179 = vunpack.c.h.b16 %v339
    %v2180 = vunpack.c.l.b16 %v340
    %v2181 = vunpack.c.h.b16 %v340
    %v2182 = vunpack.c.l.b16 %v341
    %v2183 = vunpack.c.h.b16 %v341
    %v2184 = vunpack.c.l.b16 %v342
    %v2185 = vunpack.c.h.b16 %v342
    %v2186 = vunpack.c.l.b16 %v343
    %v2187 = vunpack.c.h.b16 %v343
    %v2188 = vunpack.c.l.b16 %v344
    %v2189 = vunpack.c.h.b16 %v344
    %v2190 = vunpack.c.l.b16 %v345
    %v2191 = vunpack.c.h.b16 %v345
    %v2192 = vunpack.c.l.b16 %v346
    %v2193 = vunpack.c.h.b16 %v346
    %v2194 = vunpack.c.l.b16 %v347
    %v2195 = vunpack.c.h.b16 %v347
    %v2196 = vunpack.c.l.b16 %v348
    %v2197 = vunpack.c.h.b16 %v348
    %v2198 = vunpack.c.l.b16 %v349
    %v2199 = vunpack.c.h.b16 %v349
    %v2200 = vunpack.c.l.b16 %v350
    %v2201 = vunpack.c.h.b16 %v350
    %v2202 = vunpack.c.l.b16 %v351
    %v2203 = vunpack.c.h.b16 %v351
    %v2204 = vunpack.c.l.b16 %v352
    %v2205 = vunpack.c.h.b16 %v352
    %v2206 = vunpack.c.l.b16 %v353
    %v2207 = vunpack.c.h.b16 %v353
    %v2208 = vunpack.c.l.b16 %v354
    %v2209 = vunpack.c.h.b16 %v354
    %v2210 = vunpack.c.l.b16 %v355
    %v2211 = vunpack.c.h.b16 %v355
    %v2212 = vunpack.c.l.b16 %v356
    %v2213 = vunpack.c.h.b16 %v356
    %v2214 = vunpack.c.l.b16 %v357
    %v2215 = vunpack.c.h.b16 %v357
    %v2216 = vunpack.c.l.b16 %v358
    %v2217 = vunpack.c.h.b16 %v358
    %v2218 = vunpack.c.l.b16 %v359
    %v2219 = vunpack.c.h.b16 %v359
    %v2220 = vunpack.c.l.b16 %v360
    %v2221 = vunpack.c.h.b16 %v360
    %v2222 = vunpack.c.l.b16 %v361
    %v2223 = vunpack.c.h.b16 %v361
    %v2224 = vunpack.c.l.b16 %v362
    %v2225 = vunpack.c.h.b16 %v362
    %v2226 = vunpack.c.l.b16 %v363
    %v2227 = vunpack.c.h.b16 %v363
    %v2228 = vunpack.c.l.b16 %v364
    %v2229 = vunpack.c.h.b16 %v364
    %v2230 = vunpack.c.l.b16 %v365
    %v2231 = vunpack.c.h.b16 %v365
    %v2232 = vunpack.c.l.b16 %v366
    %v2233 = vunpack.c.h.b16 %v366
    %v2234 = vunpack.c.l.b16 %v367
    %v2235 = vunpack.c.h.b16 %v367
    %v2236 = vunpack.c.l.b16 %v368
    %v2237 = vunpack.c.h.b16 %v368
    %v2238 = vunpack.c.l.b16 %v369
    %v2239 = vunpack.c.h.b16 %v369
    %v2240 = vunpack.c.l.b16 %v370
    %v2241 = vunpack.c.h.b16 %v370
    %v2242 = vunpack.c.l.b16 %v371
    %v2243 = vunpack.c.h.b16 %v371
    %v2244 = vunpack.c.l.b16 %v372
    %v2245 = vunpack.c.h.b16 %v372
    %v2246 = vunpack.c.l.b16 %v373
    %v2247 = vunpack.c.h.b16 %v373
    %v2248 = vunpack.c.l.b16 %v374
    %v2249 = vunpack.c.h.b16 %v374
    %v2250 = vunpack.c.l.b16 %v375
    %v2251 = vunpack.c.h.b16 %v375
    %v2252 = vunpack.c.l.b16 %v376
    %v2253 = vunpack.c.h.b16 %v376
    %v2254 = vunpack.c.l.b16 %v377
    %v2255 = vunpack.c.h.b16 %v377
    %v2256 = vunpack.c.l.b16 %v378
    %v2257 = vunpack.c.h.b16 %v378
    %v2258 = vunpack.c.l.b16 %v379
    %v2259 = vunpack.c.h.b16 %v379
    %v2260 = vunpack.c.l.b16 %v380
    %v2261 = vunpack.c.h.b16 %v380
    %v2262 = vunpack.c.l.b16 %v381
    %v2263 = vunpack.c.h.b16 %v381
    %v2264 = vunpack.c.l.b16 %v382
    %v2265 = vunpack.c.h.b16 %v382
    %v2266 = vunpack.c.l.b16 %v383
    %v2267 = vunpack.c.h.b16 %v383
    %v2268 = vunpack.c.l.b16 %v384
    %v2269 = vunpack.c.h.b16 %v384
    %v2270 = vunpack.c.l.b16 %v385
    %v2271 = vunpack.c.h.b16 %v385
    %v2272 = vunpack.c.l.b16 %v386
    %v2273 = vunpack.c.h.b16 %v386
    %v2274 = vunpack.c.l.b16 %v387
    %v2275 = vunpack.c.h.b16 %v387
    %v2276 = vunpack.c.l.b16 %v388
    %v2277 = vunpack.c.h.b16 %v388
    %v2278 = vunpack.c.l.b16 %v389
    %v2279 = vunpack.c.h.b16 %v389
    %v2280 = vunpack.c.l.b16 %v390
    %v2281 = vunpack.c.h.b16 %v390
    %v2282 = vunpack.c.l.b16 %v391
    %v2283 = vunpack.c.h.b16 %v391
    %v2284 = vunpack.c.l.b16 %v392
    %v2285 = vunpack.c.h.b16 %v392
    %v2286 = vunpack.c.l.b16 %v393
    %v2287 = vunpack.c.h.b16 %v393
    %v2288 = vunpack.c.l.b16 %v394
    %v2289 = vunpack.c.h.b16 %v394
    %v2290 = vunpack.c.l.b16 %v395
    %v2291 = vunpack.c.h.b16 %v395
    %v2292 = vunpack.c.l.b16 %v396
    %v2293 = vunpack.c.h.b16 %v396
    %v2294 = vunpack.c.l.b16 %v397
    %v2295 = vunpack.c.h.b16 %v397
    %v2296 = vunpack.c.l.b16 %v398
    %v2297 = vunpack.c.h.b16 %v398
    %v2298 = vunpack.c.l.b16 %v399
    %v2299 = vunpack.c.h.b16 %v399
    %v2300 = vunpack.c.l.b16 %v400
    %v2301 = vunpack.c.h.b16 %v400
    %v2302 = vunpack.c.l.b16 %v401
    %v2303 = vunpack.c.h.b16 %v401
    %v2304 = vunpack.c.l.b16 %v402
    %v2305 = vunpack.c.h.b16 %v402
    %v2306 = vunpack.c.l.b16 %v403
    %v2307 = vunpack.c.h.b16 %v403
    %v2308 = vunpack.c.l.b16 %v404
    %v2309 = vunpack.c.h.b16 %v404
    %v2310 = vunpack.c.l.b16 %v405
    %v2311 = vunpack.c.h.b16 %v405
    %v2312 = vunpack.c.l.b16 %v406
    %v2313 = vunpack.c.h.b16 %v406
    %v2314 = vunpack.c.l.b16 %v407
    %v2315 = vunpack.c.h.b16 %v407
    %v2316 = vunpack.c.l.b16 %v408
    %v2317 = vunpack.c.h.b16 %v408
    %v2318 = vunpack.c.l.b16 %v409
    %v2319 = vunpack.c.h.b16 %v409
    %v2320 = vunpack.c.l.b16 %v410
    %v2321 = vunpack.c.h.b16 %v410
    %v2322 = vunpack.c.l.b16 %v411
    %v2323 = vunpack.c.h.b16 %v411
    %v2324 = vunpack.c.l.b16 %v412
    %v2325 = vunpack.c.h.b16 %v412
    %v2326 = vunpack.c.l.b16 %v413
    %v2327 = vunpack.c.h.b16 %v413
    %v2328 = vunpack.c.l.b16 %v414
    %v2329 = vunpack.c.h.b16 %v414
    %v2330 = vunpack.c.l.b16 %v415
    %v2331 = vunpack.c.h.b16 %v415
    %v2332 = vunpack.c.l.b16 %v416
    %v2333 = vunpack.c.h.b16 %v416
    %v2334 = vunpack.c.l.b16 %v417
    %v2335 = vunpack.c.h.b16 %v417
    %v2336 = vunpack.c.l.b16 %v418
    %v2337 = vunpack.c.h.b16 %v418
    %v2338 = vunpack.c.l.b16 %v419
    %v2339 = vunpack.c.h.b16 %v419
    %v2340 = vunpack.c.l.b16 %v420
    %v2341 = vunpack.c.h.b16 %v420
    %v2342 = vunpack.c.l.b16 %v421
    %v2343 = vunpack.c.h.b16 %v421
    %v2344 = vunpack.c.l.b16 %v422
    %v2345 = vunpack.c.h.b16 %v422
    %v2346 = vunpack.c.l.b16 %v423
    %v2347 = vunpack.c.h.b16 %v423
    %v2348 = vunpack.c.l.b16 %v424
    %v2349 = vunpack.c.h.b16 %v424
    %v2350 = vunpack.c.l.b16 %v425
    %v2351 = vunpack.c.h.b16 %v425
    %v2352 = vunpack.c.l.b16 %v426
    %v2353 = vunpack.c.h.b16 %v426
    %v2354 = vunpack.c.l.b16 %v427
    %v2355 = vunpack.c.h.b16 %v427
    %v2356 = vunpack.c.l.b16 %v428
    %v2357 = vunpack.c.h.b16 %v428
    %v2358 = vunpack.c.l.b16 %v429
    %v2359 = vunpack.c.h.b16 %v429
    %v2360 = vunpack.c.l.b16 %v430
    %v2361 = vunpack.c.h.b16 %v430
    %v2362 = vunpack.c.l.b16 %v431
    %v2363 = vunpack.c.h.b16 %v431
    %v2364 = vpack.c.b16 %v1992, %v1980
    %v2365 = vpack.c.b16 %v1993, %v1981
    %v2366 = vpack.c.b16 %v1994, %v1982
    %v2367 = vpack.c.b16 %v1995, %v1983
    %v2368 = vpack.c.b16 %v1996, %v1984
    %v2369 = vpack.c.b16 %v1997, %v1985
    %v2370 = vpack.c.b16 %v1998, %v1986
    %v2371 = vpack.c.b16 %v1999, %v1987
    %v2372 = vpack.c.b16 %v2000, %v1988
    %v2373 = vpack.c.b16 %v2001, %v1989
    %v2374 = vpack.c.b16 %v2002, %v1990
    %v2375 = vpack.c.b16 %v2003, %v1991
    %v2376 = vpack.c.b16 %v2016, %v2004
    %v2377 = vpack.c.b16 %v2017, %v2005
    %v2378 = vpack.c.b16 %v2018, %v2006
    %v2379 = vpack.c.b16 %v2019, %v2007
    %v2380 = vpack.c.b16 %v2020, %v2008
    %v2381 = vpack.c.b16 %v2021, %v2009
    %v2382 = vpack.c.b16 %v2022, %v2010
    %v2383 = vpack.c.b16 %v2023, %v2011
    %v2384 = vpack.c.b16 %v2024, %v2012
    %v2385 = vpack.c.b16 %v2025, %v2013
    %v2386 = vpack.c.b16 %v2026, %v2014
    %v2387 = vpack.c.b16 %v2027, %v2015
    %v2388 = vpack.c.b16 %v2040, %v2028
    %v2389 = vpack.c.b16 %v2041, %v2029
    %v2390 = vpack.c.b16 %v2042, %v2030
    %v2391 = vpack.c.b16 %v2043, %v2031
    %v2392 = vpack.c.b16 %v2044, %v2032
    %v2393 = vpack.c.b16 %v2045, %v2033
    %v2394 = vpack.c.b16 %v2046, %v2034
    %v2395 = vpack.c.b16 %v2047, %v2035
    %v2396 = vpack.c.b16 %v2048, %v2036
    %v2397 = vpack.c.b16 %v2049, %v2037
    %v2398 = vpack.c.b16 %v2050, %v2038
    %v2399 = vpack.c.b16 %v2051, %v2039
    %v2400 = vpack.c.b16 %v2064, %v2052
    %v2401 = vpack.c.b16 %v2065, %v2053
    %v2402 = vpack.c.b16 %v2066, %v2054
    %v2403 = vpack.c.b16 %v2067, %v2055
    %v2404 = vpack.c.b16 %v2068, %v2056
    %v2405 = vpack.c.b16 %v2069, %v2057
    %v2406 = vpack.c.b16 %v2070, %v2058
    %v2407 = vpack.c.b16 %v2071, %v2059
    %v2408 = vpack.c.b16 %v2072, %v2060
    %v2409 = vpack.c.b16 %v2073, %v2061
    %v2410 = vpack.c.b16 %v2074, %v2062
    %v2411 = vpack.c.b16 %v2075, %v2063
    %v2412 = vpack.c.b16 %v2088, %v2076
    %v2413 = vpack.c.b16 %v2089, %v2077
    %v2414 = vpack.c.b16 %v2090, %v2078
    %v2415 = vpack.c.b16 %v2091, %v2079
    %v2416 = vpack.c.b16 %v2092, %v2080
    %v2417 = vpack.c.b16 %v2093, %v2081
    %v2418 = vpack.c.b16 %v2094, %v2082
    %v2419 = vpack.c.b16 %v2095, %v2083
    %v2420 = vpack.c.b16 %v2096, %v2084
    %v2421 = vpack.c.b16 %v2097, %v2085
    %v2422 = vpack.c.b16 %v2098, %v2086
    %v2423 = vpack.c.b16 %v2099, %v2087
    %v2424 = vpack.c.b16 %v2112, %v2100
    %v2425 = vpack.c.b16 %v2113, %v2101
    %v2426 = vpack.c.b16 %v2114, %v2102
    %v2427 = vpack.c.b16 %v2115, %v2103
    %v2428 = vpack.c.b16 %v2116, %v2104
    %v2429 = vpack.c.b16 %v2117, %v2105
    %v2430 = vpack.c.b16 %v2118, %v2106
    %v2431 = vpack.c.b16 %v2119, %v2107
    %v2432 = vpack.c.b16 %v2120, %v2108
    %v2433 = vpack.c.b16 %v2121, %v2109
    %v2434 = vpack.c.b16 %v2122, %v2110
    %v2435 = vpack.c.b16 %v2123, %v2111
    %v2436 = vpack.c.b16 %v2136, %v2124
    %v2437 = vpack.c.b16 %v2137, %v2125
    %v2438 = vpack.c.b16 %v2138, %v2126
    %v2439 = vpack.c.b16 %v2139, %v2127
    %v2440 = vpack.c.b16 %v2140, %v2128
    %v2441 = vpack.c.b16 %v2141, %v2129
    %v2442 = vpack.c.b16 %v2142, %v2130
    %v2443 = vpack.c.b16 %v2143, %v2131
    %v2444 = vpack.c.b16 %v2144, %v2132
    %v2445 = vpack.c.b16 %v2145, %v2133
    %v2446 = vpack.c.b16 %v2146, %v2134
    %v2447 = vpack.c.b16 %v2147, %v2135
    %v2448 = vpack.c.b16 %v2160, %v2148
    %v2449 = vpack.c.b16 %v2161, %v2149
    %v2450 = vpack.c.b16 %v2162, %v2150
    %v2451 = vpack.c.b16 %v2163, %v2151
    %v2452 = vpack.c.b16 %v2164, %v2152
    %v2453 = vpack.c.b16 %v2165, %v2153
    %v2454 = vpack.c.b16 %v2166, %v2154
    %v2455 = vpack.c.b16 %v2167, %v2155
    %v2456 = vpack.c.b16 %v2168, %v2156
    %v2457 = vpack.c.b16 %v2169, %v2157
    %v2458 = vpack.c.b16 %v2170, %v2158
    %v2459 = vpack.c.b16 %v2171, %v2159
    %v2460 = vpack.c.b16 %v2184, %v2172
    %v2461 = vpack.c.b16 %v2185, %v2173
    %v2462 = vpack.c.b16 %v2186, %v2174
    %v2463 = vpack.c.b16 %v2187, %v2175
    %v2464 = vpack.c.b16 %v2188, %v2176
    %v2465 = vpack.c.b16 %v2189, %v2177
    %v2466 = vpack.c.b16 %v2190, %v2178
    %v2467 = vpack.c.b16 %v2191, %v2179
    %v2468 = vpack.c.b16 %v2192, %v2180
    %v2469 = vpack.c.b16 %v2193, %v2181
    %v2470 = vpack.c.b16 %v2194, %v2182
    %v2471 = vpack.c.b16 %v2195, %v2183
    %v2472 = vpack.c.b16 %v2208, %v2196
    %v2473 = vpack.c.b16 %v2209, %v2197
    %v2474 = vpack.c.b16 %v2210, %v2198
    %v2475 = vpack.c.b16 %v2211, %v2199
    %v2476 = vpack.c.b16 %v2212, %v2200
    %v2477 = vpack.c.b16 %v2213, %v2201
    %v2478 = vpack.c.b16 %v2214, %v2202
    %v2479 = vpack.c.b16 %v2215, %v2203
    %v2480 = vpack.c.b16 %v2216, %v2204
    %v2481 = vpack.c.b16 %v2217, %v2205
    %v2482 = vpack.c.b16 %v2218, %v2206
    %v2483 = vpack.c.b16 %v2219, %v2207
    %v2484 = vpack.c.b16 %v2232, %v2220
    %v2485 = vpack.c.b16 %v2233, %v2221
    %v2486 = vpack.c.b16 %v2234, %v2222
    %v2487 = vpack.c.b16 %v2235, %v2223
    %v2488 = vpack.c.b16 %v2236, %v2224
    %v2489 = vpack.c.b16 %v2237, %v2225
    %v2490 = vpack.c.b16 %v2238, %v2226
    %v2491 = vpack.c.b16 %v2239, %v2227
    %v2492 = vpack.c.b16 %v2240, %v2228
    %v2493 = vpack.c.b16 %v2241, %v2229
    %v2494 = vpack.c.b16 %v2242, %v2230
    %v2495 = vpack.c.b16 %v2243, %v2231
    %v2496 = vpack.c.b16 %v2256, %v2244
    %v2497 = vpack.c.b16 %v2257, %v2245
    %v2498 = vpack.c.b16 %v2258, %v2246
    %v2499 = vpack.c.b16 %v2259, %v2247
    %v2500 = vpack.c.b16 %v2260, %v2248
    %v2501 = vpack.c.b16 %v2261, %v2249
    %v2502 = vpack.c.b16 %v2262, %v2250
    %v2503 = vpack.c.b16 %v2263, %v2251
    %v2504 = vpack.c.b16 %v2264, %v2252
    %v2505 = vpack.c.b16 %v2265, %v2253
    %v2506 = vpack.c.b16 %v2266, %v2254
    %v2507 = vpack.c.b16 %v2267, %v2255
    %v2508 = vpack.c.b16 %v2280, %v2268
    %v2509 = vpack.c.b16 %v2281, %v2269
    %v2510 = vpack.c.b16 %v2282, %v2270
    %v2511 = vpack.c.b16 %v2283, %v2271
    %v2512 = vpack.c.b16 %v2284, %v2272
    %v2513 = vpack.c.b16 %v2285, %v2273
    %v2514 = vpack.c.b16 %v2286, %v2274
    %v2515 = vpack.c.b16 %v2287, %v2275
    %v2516 = vpack.c.b16 %v2288, %v2276
    %v2517 = vpack.c.b16 %v2289, %v2277
    %v2518 = vpack.c.b16 %v2290, %v2278
    %v2519 = vpack.c.b16 %v2291, %v2279
    %v2520 = vpack.c.b16 %v2304, %v2292
    %v2521 = vpack.c.b16 %v2305, %v2293
    %v2522 = vpack.c.b16 %v2306, %v2294
    %v2523 = vpack.c.b16 %v2307, %v2295
    %v2524 = vpack.c.b16 %v2308, %v2296
    %v2525 = vpack.c.b16 %v2309, %v2297
    %v2526 = vpack.c.b16 %v2310, %v2298
    %v2527 = vpack.c.b16 %v2311, %v2299
    %v2528 = vpack.c.b16 %v2312, %v2300
    %v2529 = vpack.c.b16 %v2313, %v2301
    %v2530 = vpack.c.b16 %v2314, %v2302
    %v2531 = vpack.c.b16 %v2315, %v2303
    %v2532 = vpack.c.b16 %v2328, %v2316
    %v2533 = vpack.c.b16 %v2329, %v2317
    %v2534 = vpack.c.b16 %v2330, %v2318
    %v2535 = vpack.c.b16 %v2331, %v2319
    %v2536 = vpack.c.b16 %v2332, %v2320
    %v2537 = vpack.c.b16 %v2333, %v2321
    %v2538 = vpack.c.b16 %v2334, %v2322
    %v2539 = vpack.c.b16 %v2335, %v2323
    %v2540 = vpack.c.b16 %v2336, %v2324
    %v2541 = vpack.c.b16 %v2337, %v2325
    %v2542 = vpack.c.b16 %v2338, %v2326
    %v2543 = vpack.c.b16 %v2339, %v2327
    %v2544 = vpack.c.b16 %v2352, %v2340
    %v2545 = vpack.c.b16 %v2353, %v2341
    %v2546 = vpack.c.b16 %v2354, %v2342
    %v2547 = vpack.c.b16 %v2355, %v2343
    %v2548 = vpack.c.b16 %v2356, %v2344
    %v2549 = vpack.c.b16 %v2357, %v2345
    %v2550 = vpack.c.b16 %v2358, %v2346
    %v2551 = vpack.c.b16 %v2359, %v2347
    %v2552 = vpack.c.b16 %v2360, %v2348
    %v2553 = vpack.c.b16 %v2361, %v2349
    %v2554 = vpack.c.b16 %v2362, %v2350
    %v2555 = vpack.c.b16 %v2363, %v2351
    %v2750 = vlaneseq
    %v2751 = vshrl.u32 %v2750, 7
    %v2752 = vsub.s32 0, %v2751
    %v2753 = vrot.slane %v850, %v2752
    %v2754 = vlaneseq
    %v2755 = vshrl.u32 %v2754, 7
    %v2756 = vsub.s32 1, %v2755
    %v2757 = vrot.slane %v850, %v2756
    %v2758 = vlaneseq
    %v2759 = vshrl.u32 %v2758, 7
    %v2760 = vsub.s32 2, %v2759
    %v2761 = vrot.slane %v850, %v2760
    %v2762 = vlaneseq
    %v2763 = vshrl.u32 %v2762, 7
    %v2764 = vsub.s32 3, %v2763
    %v2765 = vrot.slane %v850, %v2764
    %v2766 = vlaneseq
    %v2767 = vshrl.u32 %v2766, 7
    %v2768 = vsub.s32 4, %v2767
    %v2769 = vrot.slane %v850, %v2768
    %v2770 = vlaneseq
    %v2771 = vshrl.u32 %v2770, 7
    %v2772 = vsub.s32 5, %v2771
    %v2773 = vrot.slane %v850, %v2772
    %v2774 = vlaneseq
    %v2775 = vshrl.u32 %v2774, 7
    %v2776 = vsub.s32 6, %v2775
    %v2777 = vrot.slane %v850, %v2776
    %v2778 = vlaneseq
    %v2779 = vshrl.u32 %v2778, 7
    %v2780 = vsub.s32 7, %v2779
    %v2781 = vrot.slane %v850, %v2780
    %v2782 = vlaneseq
    %v2783 = vshrl.u32 %v2782, 7
    %v2784 = vsub.s32 0, %v2783
    %v2785 = vrot.slane %v851, %v2784
    %v2786 = vlaneseq
    %v2787 = vshrl.u32 %v2786, 7
    %v2788 = vsub.s32 1, %v2787
    %v2789 = vrot.slane %v851, %v2788
    %v2790 = vlaneseq
    %v2791 = vshrl.u32 %v2790, 7
    %v2792 = vsub.s32 2, %v2791
    %v2793 = vrot.slane %v851, %v2792
    %v2794 = vlaneseq
    %v2795 = vshrl.u32 %v2794, 7
    %v2796 = vsub.s32 3, %v2795
    %v2797 = vrot.slane %v851, %v2796
    %2810 = vmatprep.subr.bf16.mxu0 %v2365
    %2811 = vmatpush1.bf16.msra.mxu0 %v2364
    %2812 = vmatprep.subr.bf16.mxu0 %v2377
    %2813 = vmatpush1.bf16.msra.mxu0 %v2376
    %2814 = vmatprep.subr.bf16.mxu0 %v2389
    %2815 = vmatpush1.bf16.msra.mxu0 %v2388
    %2816 = vmatprep.subr.bf16.mxu0 %v2401
    %2817 = vmatpush1.bf16.msra.mxu0 %v2400
    %2818 = vmatprep.subr.bf16.mxu0 %v2413
    %2819 = vmatpush1.bf16.msra.mxu0 %v2412
    %2820 = vmatprep.subr.bf16.mxu0 %v2425
    %2821 = vmatpush1.bf16.msra.mxu0 %v2424
    %2822 = vmatprep.subr.bf16.mxu0 %v2437
    %2823 = vmatpush1.bf16.msra.mxu0 %v2436
    %2824 = vmatprep.subr.bf16.mxu0 %v2449
    %2825 = vmatpush1.bf16.msra.mxu0 %v2448
    %2826 = vmatprep.subr.bf16.mxu0 %v2461
    %2827 = vmatpush1.bf16.msra.mxu0 %v2460
    %2828 = vmatprep.subr.bf16.mxu0 %v2473
    %2829 = vmatpush1.bf16.msra.mxu0 %v2472
    %2830 = vmatprep.subr.bf16.mxu0 %v2485
    %2831 = vmatpush1.bf16.msra.mxu0 %v2484
    %2832 = vmatprep.subr.bf16.mxu0 %v2497
    %2833 = vmatpush1.bf16.msra.mxu0 %v2496
    %2834 = vmatprep.subr.bf16.mxu0 %v2509
    %2835 = vmatpush1.bf16.msra.mxu0 %v2508
    %2836 = vmatprep.subr.bf16.mxu0 %v2521
    %2837 = vmatpush1.bf16.msra.mxu0 %v2520
    %2838 = vmatprep.subr.bf16.mxu0 %v2533
    %2839 = vmatpush1.bf16.msra.mxu0 %v2532
    %2840 = vmatprep.subr.bf16.mxu0 %v2545
    %2841 = vmatpush1.bf16.msra.mxu0 %v2544
    %2842 = vmatprep.mubr.bf16.mxu0 %v1787
    %2843 = vmatmul.mubr.bf16.gmra.mrb[0].mxu0 %v1786
    %v2844 = vpop.f32.mrb[0].mxu0
    %v2845 = vadd.f32 %v2753, %v2844
    %v2846 = vpop.f32.mrb[0].mxu0
    %v2847 = vadd.f32 %v2757, %v2846
    %v2848 = vpop.f32.mrb[0].mxu0
    %v2849 = vpop.f32.mrb[0].mxu0
    %2850 = vdwg.mxu0
    %2851 = vmatprep.subr.bf16.mxu0 %v2367
    %2852 = vmatpush1.bf16.msra.mxu0 %v2366
    %2853 = vmatprep.subr.bf16.mxu0 %v2379
    %2854 = vmatpush1.bf16.msra.mxu0 %v2378
    %2855 = vmatprep.subr.bf16.mxu0 %v2391
    %2856 = vmatpush1.bf16.msra.mxu0 %v2390
    %2857 = vmatprep.subr.bf16.mxu0 %v2403
    %2858 = vmatpush1.bf16.msra.mxu0 %v2402
    %2859 = vmatprep.subr.bf16.mxu0 %v2415
    %2860 = vmatpush1.bf16.msra.mxu0 %v2414
    %2861 = vmatprep.subr.bf16.mxu0 %v2427
    %2862 = vmatpush1.bf16.msra.mxu0 %v2426
    %2863 = vmatprep.subr.bf16.mxu0 %v2439
    %2864 = vmatpush1.bf16.msra.mxu0 %v2438
    %2865 = vmatprep.subr.bf16.mxu0 %v2451
    %2866 = vmatpush1.bf16.msra.mxu0 %v2450
    %2867 = vmatprep.subr.bf16.mxu0 %v2463
    %2868 = vmatpush1.bf16.msra.mxu0 %v2462
    %2869 = vmatprep.subr.bf16.mxu0 %v2475
    %2870 = vmatpush1.bf16.msra.mxu0 %v2474
    %2871 = vmatprep.subr.bf16.mxu0 %v2487
    %2872 = vmatpush1.bf16.msra.mxu0 %v2486
    %2873 = vmatprep.subr.bf16.mxu0 %v2499
    %2874 = vmatpush1.bf16.msra.mxu0 %v2498
    %2875 = vmatprep.subr.bf16.mxu0 %v2511
    %2876 = vmatpush1.bf16.msra.mxu0 %v2510
    %2877 = vmatprep.subr.bf16.mxu0 %v2523
    %2878 = vmatpush1.bf16.msra.mxu0 %v2522
    %2879 = vmatprep.subr.bf16.mxu0 %v2535
    %2880 = vmatpush1.bf16.msra.mxu0 %v2534
    %2881 = vmatprep.subr.bf16.mxu0 %v2547
    %2882 = vmatpush1.bf16.msra.mxu0 %v2546
    %2883 = vmatprep.mubr.bf16.mxu0 %v1787
    %2884 = vmatmul.mubr.bf16.gmra.mrb[0].mxu0 %v1786
    %v2885 = vpop.f32.mrb[0].mxu0
    %v2886 = vadd.f32 %v2761, %v2885
    %v2887 = vpop.f32.mrb[0].mxu0
    %v2888 = vadd.f32 %v2765, %v2887
    %v2889 = vpop.f32.mrb[0].mxu0
    %v2890 = vpop.f32.mrb[0].mxu0
    %2891 = vdwg.mxu0
    %2892 = vmatprep.subr.bf16.mxu0 %v2369
    %2893 = vmatpush1.bf16.msra.mxu0 %v2368
    %2894 = vmatprep.subr.bf16.mxu0 %v2381
    %2895 = vmatpush1.bf16.msra.mxu0 %v2380
    %2896 = vmatprep.subr.bf16.mxu0 %v2393
    %2897 = vmatpush1.bf16.msra.mxu0 %v2392
    %2898 = vmatprep.subr.bf16.mxu0 %v2405
    %2899 = vmatpush1.bf16.msra.mxu0 %v2404
    %2900 = vmatprep.subr.bf16.mxu0 %v2417
    %2901 = vmatpush1.bf16.msra.mxu0 %v2416
    %2902 = vmatprep.subr.bf16.mxu0 %v2429
    %2903 = vmatpush1.bf16.msra.mxu0 %v2428
    %2904 = vmatprep.subr.bf16.mxu0 %v2441
    %2905 = vmatpush1.bf16.msra.mxu0 %v2440
    %2906 = vmatprep.subr.bf16.mxu0 %v2453
    %2907 = vmatpush1.bf16.msra.mxu0 %v2452
    %2908 = vmatprep.subr.bf16.mxu0 %v2465
    %2909 = vmatpush1.bf16.msra.mxu0 %v2464
    %2910 = vmatprep.subr.bf16.mxu0 %v2477
    %2911 = vmatpush1.bf16.msra.mxu0 %v2476
    %2912 = vmatprep.subr.bf16.mxu0 %v2489
    %2913 = vmatpush1.bf16.msra.mxu0 %v2488
    %2914 = vmatprep.subr.bf16.mxu0 %v2501
    %2915 = vmatpush1.bf16.msra.mxu0 %v2500
    %2916 = vmatprep.subr.bf16.mxu0 %v2513
    %2917 = vmatpush1.bf16.msra.mxu0 %v2512
    %2918 = vmatprep.subr.bf16.mxu0 %v2525
    %2919 = vmatpush1.bf16.msra.mxu0 %v2524
    %2920 = vmatprep.subr.bf16.mxu0 %v2537
    %2921 = vmatpush1.bf16.msra.mxu0 %v2536
    %2922 = vmatprep.subr.bf16.mxu0 %v2549
    %2923 = vmatpush1.bf16.msra.mxu0 %v2548
    %2924 = vmatprep.mubr.bf16.mxu0 %v1787
    %2925 = vmatmul.mubr.bf16.gmra.mrb[0].mxu0 %v1786
    %v2926 = vpop.f32.mrb[0].mxu0
    %v2927 = vadd.f32 %v2769, %v2926
    %v2928 = vpop.f32.mrb[0].mxu0
    %v2929 = vadd.f32 %v2773, %v2928
    %v2930 = vpop.f32.mrb[0].mxu0
    %v2931 = vpop.f32.mrb[0].mxu0
    %2932 = vdwg.mxu0
    %2933 = vmatprep.subr.bf16.mxu0 %v2371
    %2934 = vmatpush1.bf16.msra.mxu0 %v2370
    %2935 = vmatprep.subr.bf16.mxu0 %v2383
    %2936 = vmatpush1.bf16.msra.mxu0 %v2382
    %2937 = vmatprep.subr.bf16.mxu0 %v2395
    %2938 = vmatpush1.bf16.msra.mxu0 %v2394
    %2939 = vmatprep.subr.bf16.mxu0 %v2407
    %2940 = vmatpush1.bf16.msra.mxu0 %v2406
    %2941 = vmatprep.subr.bf16.mxu0 %v2419
    %2942 = vmatpush1.bf16.msra.mxu0 %v2418
    %2943 = vmatprep.subr.bf16.mxu0 %v2431
    %2944 = vmatpush1.bf16.msra.mxu0 %v2430
    %2945 = vmatprep.subr.bf16.mxu0 %v2443
    %2946 = vmatpush1.bf16.msra.mxu0 %v2442
    %2947 = vmatprep.subr.bf16.mxu0 %v2455
    %2948 = vmatpush1.bf16.msra.mxu0 %v2454
    %2949 = vmatprep.subr.bf16.mxu0 %v2467
    %2950 = vmatpush1.bf16.msra.mxu0 %v2466
    %2951 = vmatprep.subr.bf16.mxu0 %v2479
    %2952 = vmatpush1.bf16.msra.mxu0 %v2478
    %2953 = vmatprep.subr.bf16.mxu0 %v2491
    %2954 = vmatpush1.bf16.msra.mxu0 %v2490
    %2955 = vmatprep.subr.bf16.mxu0 %v2503
    %2956 = vmatpush1.bf16.msra.mxu0 %v2502
    %2957 = vmatprep.subr.bf16.mxu0 %v2515
    %2958 = vmatpush1.bf16.msra.mxu0 %v2514
    %2959 = vmatprep.subr.bf16.mxu0 %v2527
    %2960 = vmatpush1.bf16.msra.mxu0 %v2526
    %2961 = vmatprep.subr.bf16.mxu0 %v2539
    %2962 = vmatpush1.bf16.msra.mxu0 %v2538
    %2963 = vmatprep.subr.bf16.mxu0 %v2551
    %2964 = vmatpush1.bf16.msra.mxu0 %v2550
    %2965 = vmatprep.mubr.bf16.mxu0 %v1787
    %2966 = vmatmul.mubr.bf16.gmra.mrb[0].mxu0 %v1786
    %v2967 = vpop.f32.mrb[0].mxu0
    %v2968 = vadd.f32 %v2777, %v2967
    %v2969 = vpop.f32.mrb[0].mxu0
    %v2970 = vadd.f32 %v2781, %v2969
    %v2971 = vpop.f32.mrb[0].mxu0
    %v2972 = vpop.f32.mrb[0].mxu0
    %2973 = vdwg.mxu0
    %2974 = vmatprep.subr.bf16.mxu0 %v2373
    %2975 = vmatpush1.bf16.msra.mxu0 %v2372
    %2976 = vmatprep.subr.bf16.mxu0 %v2385
    %2977 = vmatpush1.bf16.msra.mxu0 %v2384
    %2978 = vmatprep.subr.bf16.mxu0 %v2397
    %2979 = vmatpush1.bf16.msra.mxu0 %v2396
    %2980 = vmatprep.subr.bf16.mxu0 %v2409
    %2981 = vmatpush1.bf16.msra.mxu0 %v2408
    %2982 = vmatprep.subr.bf16.mxu0 %v2421
    %2983 = vmatpush1.bf16.msra.mxu0 %v2420
    %2984 = vmatprep.subr.bf16.mxu0 %v2433
    %2985 = vmatpush1.bf16.msra.mxu0 %v2432
    %2986 = vmatprep.subr.bf16.mxu0 %v2445
    %2987 = vmatpush1.bf16.msra.mxu0 %v2444
    %2988 = vmatprep.subr.bf16.mxu0 %v2457
    %2989 = vmatpush1.bf16.msra.mxu0 %v2456
    %2990 = vmatprep.subr.bf16.mxu0 %v2469
    %2991 = vmatpush1.bf16.msra.mxu0 %v2468
    %2992 = vmatprep.subr.bf16.mxu0 %v2481
    %2993 = vmatpush1.bf16.msra.mxu0 %v2480
    %2994 = vmatprep.subr.bf16.mxu0 %v2493
    %2995 = vmatpush1.bf16.msra.mxu0 %v2492
    %2996 = vmatprep.subr.bf16.mxu0 %v2505
    %2997 = vmatpush1.bf16.msra.mxu0 %v2504
    %2998 = vmatprep.subr.bf16.mxu0 %v2517
    %2999 = vmatpush1.bf16.msra.mxu0 %v2516
    %3000 = vmatprep.subr.bf16.mxu0 %v2529
    %3001 = vmatpush1.bf16.msra.mxu0 %v2528
    %3002 = vmatprep.subr.bf16.mxu0 %v2541
    %3003 = vmatpush1.bf16.msra.mxu0 %v2540
    %3004 = vmatprep.subr.bf16.mxu0 %v2553
    %3005 = vmatpush1.bf16.msra.mxu0 %v2552
    %3006 = vmatprep.mubr.bf16.mxu0 %v1787
    %3007 = vmatmul.mubr.bf16.gmra.mrb[0].mxu0 %v1786
    %v3008 = vpop.f32.mrb[0].mxu0
    %v3009 = vadd.f32 %v2785, %v3008
    %v3010 = vpop.f32.mrb[0].mxu0
    %v3011 = vadd.f32 %v2789, %v3010
    %v3012 = vpop.f32.mrb[0].mxu0
    %v3013 = vpop.f32.mrb[0].mxu0
    %3014 = vdwg.mxu0
    %3015 = vmatprep.subr.bf16.mxu0 %v2375
    %3016 = vmatpush1.bf16.msra.mxu0 %v2374
    %3017 = vmatprep.subr.bf16.mxu0 %v2387
    %3018 = vmatpush1.bf16.msra.mxu0 %v2386
    %3019 = vmatprep.subr.bf16.mxu0 %v2399
    %3020 = vmatpush1.bf16.msra.mxu0 %v2398
    %3021 = vmatprep.subr.bf16.mxu0 %v2411
    %3022 = vmatpush1.bf16.msra.mxu0 %v2410
    %3023 = vmatprep.subr.bf16.mxu0 %v2423
    %3024 = vmatpush1.bf16.msra.mxu0 %v2422
    %3025 = vmatprep.subr.bf16.mxu0 %v2435
    %3026 = vmatpush1.bf16.msra.mxu0 %v2434
    %3027 = vmatprep.subr.bf16.mxu0 %v2447
    %3028 = vmatpush1.bf16.msra.mxu0 %v2446
    %3029 = vmatprep.subr.bf16.mxu0 %v2459
    %3030 = vmatpush1.bf16.msra.mxu0 %v2458
    %3031 = vmatprep.subr.bf16.mxu0 %v2471
    %3032 = vmatpush1.bf16.msra.mxu0 %v2470
    %3033 = vmatprep.subr.bf16.mxu0 %v2483
    %3034 = vmatpush1.bf16.msra.mxu0 %v2482
    %3035 = vmatprep.subr.bf16.mxu0 %v2495
    %3036 = vmatpush1.bf16.msra.mxu0 %v2494
    %3037 = vmatprep.subr.bf16.mxu0 %v2507
    %3038 = vmatpush1.bf16.msra.mxu0 %v2506
    %3039 = vmatprep.subr.bf16.mxu0 %v2519
    %3040 = vmatpush1.bf16.msra.mxu0 %v2518
    %3041 = vmatprep.subr.bf16.mxu0 %v2531
    %3042 = vmatpush1.bf16.msra.mxu0 %v2530
    %3043 = vmatprep.subr.bf16.mxu0 %v2543
    %3044 = vmatpush1.bf16.msra.mxu0 %v2542
    %3045 = vmatprep.subr.bf16.mxu0 %v2555
    %3046 = vmatpush1.bf16.msra.mxu0 %v2554
    %3047 = vmatprep.mubr.bf16.mxu0 %v1787
    %3048 = vmatmul.mubr.bf16.gmra.mrb[0].mxu0 %v1786
    %v3049 = vpop.f32.mrb[0].mxu0
    %v3050 = vadd.f32 %v2793, %v3049
    %v3051 = vpop.f32.mrb[0].mxu0
    %v3052 = vadd.f32 %v2797, %v3051
    %v3053 = vpop.f32.mrb[0].mxu0
    %v3054 = vpop.f32.mrb[0].mxu0
    %3055 = vdwg.mxu0
    %v3057 = vlaneseq
    %v3058 = vshrl.u32 %v3057, 7
    %v3059 = vsub.s32 0, %v3058
    %v3060 = vrot.slane %v109, %v3059
    %v3061 = vlaneseq
    %v3062 = vshrl.u32 %v3061, 7
    %v3063 = vsub.s32 1, %v3062
    %v3064 = vrot.slane %v109, %v3063
    %v3067 = vpack.c.bf16 %v3060, %v3060
    %v3068 = vpack.c.bf16 %v3064, %v3064
    %v3261 = vunpack.c.l.b16 %v432
    %v3262 = vunpack.c.h.b16 %v432
    %v3263 = vunpack.c.l.b16 %v433
    %v3264 = vunpack.c.h.b16 %v433
    %v3265 = vunpack.c.l.b16 %v434
    %v3266 = vunpack.c.h.b16 %v434
    %v3267 = vunpack.c.l.b16 %v435
    %v3268 = vunpack.c.h.b16 %v435
    %v3269 = vunpack.c.l.b16 %v436
    %v3270 = vunpack.c.h.b16 %v436
    %v3271 = vunpack.c.l.b16 %v437
    %v3272 = vunpack.c.h.b16 %v437
    %v3273 = vunpack.c.l.b16 %v438
    %v3274 = vunpack.c.h.b16 %v438
    %v3275 = vunpack.c.l.b16 %v439
    %v3276 = vunpack.c.h.b16 %v439
    %v3277 = vunpack.c.l.b16 %v440
    %v3278 = vunpack.c.h.b16 %v440
    %v3279 = vunpack.c.l.b16 %v441
    %v3280 = vunpack.c.h.b16 %v441
    %v3281 = vunpack.c.l.b16 %v442
    %v3282 = vunpack.c.h.b16 %v442
    %v3283 = vunpack.c.l.b16 %v443
    %v3284 = vunpack.c.h.b16 %v443
    %v3285 = vunpack.c.l.b16 %v444
    %v3286 = vunpack.c.h.b16 %v444
    %v3287 = vunpack.c.l.b16 %v445
    %v3288 = vunpack.c.h.b16 %v445
    %v3289 = vunpack.c.l.b16 %v446
    %v3290 = vunpack.c.h.b16 %v446
    %v3291 = vunpack.c.l.b16 %v447
    %v3292 = vunpack.c.h.b16 %v447
    %v3293 = vunpack.c.l.b16 %v448
    %v3294 = vunpack.c.h.b16 %v448
    %v3295 = vunpack.c.l.b16 %v449
    %v3296 = vunpack.c.h.b16 %v449
    %v3297 = vunpack.c.l.b16 %v450
    %v3298 = vunpack.c.h.b16 %v450
    %v3299 = vunpack.c.l.b16 %v451
    %v3300 = vunpack.c.h.b16 %v451
    %v3301 = vunpack.c.l.b16 %v452
    %v3302 = vunpack.c.h.b16 %v452
    %v3303 = vunpack.c.l.b16 %v453
    %v3304 = vunpack.c.h.b16 %v453
    %v3305 = vunpack.c.l.b16 %v454
    %v3306 = vunpack.c.h.b16 %v454
    %v3307 = vunpack.c.l.b16 %v455
    %v3308 = vunpack.c.h.b16 %v455
    %v3309 = vunpack.c.l.b16 %v456
    %v3310 = vunpack.c.h.b16 %v456
    %v3311 = vunpack.c.l.b16 %v457
    %v3312 = vunpack.c.h.b16 %v457
    %v3313 = vunpack.c.l.b16 %v458
    %v3314 = vunpack.c.h.b16 %v458
    %v3315 = vunpack.c.l.b16 %v459
    %v3316 = vunpack.c.h.b16 %v459
    %v3317 = vunpack.c.l.b16 %v460
    %v3318 = vunpack.c.h.b16 %v460
    %v3319 = vunpack.c.l.b16 %v461
    %v3320 = vunpack.c.h.b16 %v461
    %v3321 = vunpack.c.l.b16 %v462
    %v3322 = vunpack.c.h.b16 %v462
    %v3323 = vunpack.c.l.b16 %v463
    %v3324 = vunpack.c.h.b16 %v463
    %v3325 = vunpack.c.l.b16 %v464
    %v3326 = vunpack.c.h.b16 %v464
    %v3327 = vunpack.c.l.b16 %v465
    %v3328 = vunpack.c.h.b16 %v465
    %v3329 = vunpack.c.l.b16 %v466
    %v3330 = vunpack.c.h.b16 %v466
    %v3331 = vunpack.c.l.b16 %v467
    %v3332 = vunpack.c.h.b16 %v467
    %v3333 = vunpack.c.l.b16 %v468
    %v3334 = vunpack.c.h.b16 %v468
    %v3335 = vunpack.c.l.b16 %v469
    %v3336 = vunpack.c.h.b16 %v469
    %v3337 = vunpack.c.l.b16 %v470
    %v3338 = vunpack.c.h.b16 %v470
    %v3339 = vunpack.c.l.b16 %v471
    %v3340 = vunpack.c.h.b16 %v471
    %v3341 = vunpack.c.l.b16 %v472
    %v3342 = vunpack.c.h.b16 %v472
    %v3343 = vunpack.c.l.b16 %v473
    %v3344 = vunpack.c.h.b16 %v473
    %v3345 = vunpack.c.l.b16 %v474
    %v3346 = vunpack.c.h.b16 %v474
    %v3347 = vunpack.c.l.b16 %v475
    %v3348 = vunpack.c.h.b16 %v475
    %v3349 = vunpack.c.l.b16 %v476
    %v3350 = vunpack.c.h.b16 %v476
    %v3351 = vunpack.c.l.b16 %v477
    %v3352 = vunpack.c.h.b16 %v477
    %v3353 = vunpack.c.l.b16 %v478
    %v3354 = vunpack.c.h.b16 %v478
    %v3355 = vunpack.c.l.b16 %v479
    %v3356 = vunpack.c.h.b16 %v479
    %v3357 = vunpack.c.l.b16 %v480
    %v3358 = vunpack.c.h.b16 %v480
    %v3359 = vunpack.c.l.b16 %v481
    %v3360 = vunpack.c.h.b16 %v481
    %v3361 = vunpack.c.l.b16 %v482
    %v3362 = vunpack.c.h.b16 %v482
    %v3363 = vunpack.c.l.b16 %v483
    %v3364 = vunpack.c.h.b16 %v483
    %v3365 = vunpack.c.l.b16 %v484
    %v3366 = vunpack.c.h.b16 %v484
    %v3367 = vunpack.c.l.b16 %v485
    %v3368 = vunpack.c.h.b16 %v485
    %v3369 = vunpack.c.l.b16 %v486
    %v3370 = vunpack.c.h.b16 %v486
    %v3371 = vunpack.c.l.b16 %v487
    %v3372 = vunpack.c.h.b16 %v487
    %v3373 = vunpack.c.l.b16 %v488
    %v3374 = vunpack.c.h.b16 %v488
    %v3375 = vunpack.c.l.b16 %v489
    %v3376 = vunpack.c.h.b16 %v489
    %v3377 = vunpack.c.l.b16 %v490
    %v3378 = vunpack.c.h.b16 %v490
    %v3379 = vunpack.c.l.b16 %v491
    %v3380 = vunpack.c.h.b16 %v491
    %v3381 = vunpack.c.l.b16 %v492
    %v3382 = vunpack.c.h.b16 %v492
    %v3383 = vunpack.c.l.b16 %v493
    %v3384 = vunpack.c.h.b16 %v493
    %v3385 = vunpack.c.l.b16 %v494
    %v3386 = vunpack.c.h.b16 %v494
    %v3387 = vunpack.c.l.b16 %v495
    %v3388 = vunpack.c.h.b16 %v495
    %v3389 = vunpack.c.l.b16 %v496
    %v3390 = vunpack.c.h.b16 %v496
    %v3391 = vunpack.c.l.b16 %v497
    %v3392 = vunpack.c.h.b16 %v497
    %v3393 = vunpack.c.l.b16 %v498
    %v3394 = vunpack.c.h.b16 %v498
    %v3395 = vunpack.c.l.b16 %v499
    %v3396 = vunpack.c.h.b16 %v499
    %v3397 = vunpack.c.l.b16 %v500
    %v3398 = vunpack.c.h.b16 %v500
    %v3399 = vunpack.c.l.b16 %v501
    %v3400 = vunpack.c.h.b16 %v501
    %v3401 = vunpack.c.l.b16 %v502
    %v3402 = vunpack.c.h.b16 %v502
    %v3403 = vunpack.c.l.b16 %v503
    %v3404 = vunpack.c.h.b16 %v503
    %v3405 = vunpack.c.l.b16 %v504
    %v3406 = vunpack.c.h.b16 %v504
    %v3407 = vunpack.c.l.b16 %v505
    %v3408 = vunpack.c.h.b16 %v505
    %v3409 = vunpack.c.l.b16 %v506
    %v3410 = vunpack.c.h.b16 %v506
    %v3411 = vunpack.c.l.b16 %v507
    %v3412 = vunpack.c.h.b16 %v507
    %v3413 = vunpack.c.l.b16 %v508
    %v3414 = vunpack.c.h.b16 %v508
    %v3415 = vunpack.c.l.b16 %v509
    %v3416 = vunpack.c.h.b16 %v509
    %v3417 = vunpack.c.l.b16 %v510
    %v3418 = vunpack.c.h.b16 %v510
    %v3419 = vunpack.c.l.b16 %v511
    %v3420 = vunpack.c.h.b16 %v511
    %v3421 = vunpack.c.l.b16 %v512
    %v3422 = vunpack.c.h.b16 %v512
    %v3423 = vunpack.c.l.b16 %v513
    %v3424 = vunpack.c.h.b16 %v513
    %v3425 = vunpack.c.l.b16 %v514
    %v3426 = vunpack.c.h.b16 %v514
    %v3427 = vunpack.c.l.b16 %v515
    %v3428 = vunpack.c.h.b16 %v515
    %v3429 = vunpack.c.l.b16 %v516
    %v3430 = vunpack.c.h.b16 %v516
    %v3431 = vunpack.c.l.b16 %v517
    %v3432 = vunpack.c.h.b16 %v517
    %v3433 = vunpack.c.l.b16 %v518
    %v3434 = vunpack.c.h.b16 %v518
    %v3435 = vunpack.c.l.b16 %v519
    %v3436 = vunpack.c.h.b16 %v519
    %v3437 = vunpack.c.l.b16 %v520
    %v3438 = vunpack.c.h.b16 %v520
    %v3439 = vunpack.c.l.b16 %v521
    %v3440 = vunpack.c.h.b16 %v521
    %v3441 = vunpack.c.l.b16 %v522
    %v3442 = vunpack.c.h.b16 %v522
    %v3443 = vunpack.c.l.b16 %v523
    %v3444 = vunpack.c.h.b16 %v523
    %v3445 = vunpack.c.l.b16 %v524
    %v3446 = vunpack.c.h.b16 %v524
    %v3447 = vunpack.c.l.b16 %v525
    %v3448 = vunpack.c.h.b16 %v525
    %v3449 = vunpack.c.l.b16 %v526
    %v3450 = vunpack.c.h.b16 %v526
    %v3451 = vunpack.c.l.b16 %v527
    %v3452 = vunpack.c.h.b16 %v527
    %v3453 = vunpack.c.l.b16 %v528
    %v3454 = vunpack.c.h.b16 %v528
    %v3455 = vunpack.c.l.b16 %v529
    %v3456 = vunpack.c.h.b16 %v529
    %v3457 = vunpack.c.l.b16 %v530
    %v3458 = vunpack.c.h.b16 %v530
    %v3459 = vunpack.c.l.b16 %v531
    %v3460 = vunpack.c.h.b16 %v531
    %v3461 = vunpack.c.l.b16 %v532
    %v3462 = vunpack.c.h.b16 %v532
    %v3463 = vunpack.c.l.b16 %v533
    %v3464 = vunpack.c.h.b16 %v533
    %v3465 = vunpack.c.l.b16 %v534
    %v3466 = vunpack.c.h.b16 %v534
    %v3467 = vunpack.c.l.b16 %v535
    %v3468 = vunpack.c.h.b16 %v535
    %v3469 = vunpack.c.l.b16 %v536
    %v3470 = vunpack.c.h.b16 %v536
    %v3471 = vunpack.c.l.b16 %v537
    %v3472 = vunpack.c.h.b16 %v537
    %v3473 = vunpack.c.l.b16 %v538
    %v3474 = vunpack.c.h.b16 %v538
    %v3475 = vunpack.c.l.b16 %v539
    %v3476 = vunpack.c.h.b16 %v539
    %v3477 = vunpack.c.l.b16 %v540
    %v3478 = vunpack.c.h.b16 %v540
    %v3479 = vunpack.c.l.b16 %v541
    %v3480 = vunpack.c.h.b16 %v541
    %v3481 = vunpack.c.l.b16 %v542
    %v3482 = vunpack.c.h.b16 %v542
    %v3483 = vunpack.c.l.b16 %v543
    %v3484 = vunpack.c.h.b16 %v543
    %v3485 = vunpack.c.l.b16 %v544
    %v3486 = vunpack.c.h.b16 %v544
    %v3487 = vunpack.c.l.b16 %v545
    %v3488 = vunpack.c.h.b16 %v545
    %v3489 = vunpack.c.l.b16 %v546
    %v3490 = vunpack.c.h.b16 %v546
    %v3491 = vunpack.c.l.b16 %v547
    %v3492 = vunpack.c.h.b16 %v547
    %v3493 = vunpack.c.l.b16 %v548
    %v3494 = vunpack.c.h.b16 %v548
    %v3495 = vunpack.c.l.b16 %v549
    %v3496 = vunpack.c.h.b16 %v549
    %v3497 = vunpack.c.l.b16 %v550
    %v3498 = vunpack.c.h.b16 %v550
    %v3499 = vunpack.c.l.b16 %v551
    %v3500 = vunpack.c.h.b16 %v551
    %v3501 = vunpack.c.l.b16 %v552
    %v3502 = vunpack.c.h.b16 %v552
    %v3503 = vunpack.c.l.b16 %v553
    %v3504 = vunpack.c.h.b16 %v553
    %v3505 = vunpack.c.l.b16 %v554
    %v3506 = vunpack.c.h.b16 %v554
    %v3507 = vunpack.c.l.b16 %v555
    %v3508 = vunpack.c.h.b16 %v555
    %v3509 = vunpack.c.l.b16 %v556
    %v3510 = vunpack.c.h.b16 %v556
    %v3511 = vunpack.c.l.b16 %v557
    %v3512 = vunpack.c.h.b16 %v557
    %v3513 = vunpack.c.l.b16 %v558
    %v3514 = vunpack.c.h.b16 %v558
    %v3515 = vunpack.c.l.b16 %v559
    %v3516 = vunpack.c.h.b16 %v559
    %v3517 = vunpack.c.l.b16 %v560
    %v3518 = vunpack.c.h.b16 %v560
    %v3519 = vunpack.c.l.b16 %v561
    %v3520 = vunpack.c.h.b16 %v561
    %v3521 = vunpack.c.l.b16 %v562
    %v3522 = vunpack.c.h.b16 %v562
    %v3523 = vunpack.c.l.b16 %v563
    %v3524 = vunpack.c.h.b16 %v563
    %v3525 = vunpack.c.l.b16 %v564
    %v3526 = vunpack.c.h.b16 %v564
    %v3527 = vunpack.c.l.b16 %v565
    %v3528 = vunpack.c.h.b16 %v565
    %v3529 = vunpack.c.l.b16 %v566
    %v3530 = vunpack.c.h.b16 %v566
    %v3531 = vunpack.c.l.b16 %v567
    %v3532 = vunpack.c.h.b16 %v567
    %v3533 = vunpack.c.l.b16 %v568
    %v3534 = vunpack.c.h.b16 %v568
    %v3535 = vunpack.c.l.b16 %v569
    %v3536 = vunpack.c.h.b16 %v569
    %v3537 = vunpack.c.l.b16 %v570
    %v3538 = vunpack.c.h.b16 %v570
    %v3539 = vunpack.c.l.b16 %v571
    %v3540 = vunpack.c.h.b16 %v571
    %v3541 = vunpack.c.l.b16 %v572
    %v3542 = vunpack.c.h.b16 %v572
    %v3543 = vunpack.c.l.b16 %v573
    %v3544 = vunpack.c.h.b16 %v573
    %v3545 = vunpack.c.l.b16 %v574
    %v3546 = vunpack.c.h.b16 %v574
    %v3547 = vunpack.c.l.b16 %v575
    %v3548 = vunpack.c.h.b16 %v575
    %v3549 = vunpack.c.l.b16 %v576
    %v3550 = vunpack.c.h.b16 %v576
    %v3551 = vunpack.c.l.b16 %v577
    %v3552 = vunpack.c.h.b16 %v577
    %v3553 = vunpack.c.l.b16 %v578
    %v3554 = vunpack.c.h.b16 %v578
    %v3555 = vunpack.c.l.b16 %v579
    %v3556 = vunpack.c.h.b16 %v579
    %v3557 = vunpack.c.l.b16 %v580
    %v3558 = vunpack.c.h.b16 %v580
    %v3559 = vunpack.c.l.b16 %v581
    %v3560 = vunpack.c.h.b16 %v581
    %v3561 = vunpack.c.l.b16 %v582
    %v3562 = vunpack.c.h.b16 %v582
    %v3563 = vunpack.c.l.b16 %v583
    %v3564 = vunpack.c.h.b16 %v583
    %v3565 = vunpack.c.l.b16 %v584
    %v3566 = vunpack.c.h.b16 %v584
    %v3567 = vunpack.c.l.b16 %v585
    %v3568 = vunpack.c.h.b16 %v585
    %v3569 = vunpack.c.l.b16 %v586
    %v3570 = vunpack.c.h.b16 %v586
    %v3571 = vunpack.c.l.b16 %v587
    %v3572 = vunpack.c.h.b16 %v587
    %v3573 = vunpack.c.l.b16 %v588
    %v3574 = vunpack.c.h.b16 %v588
    %v3575 = vunpack.c.l.b16 %v589
    %v3576 = vunpack.c.h.b16 %v589
    %v3577 = vunpack.c.l.b16 %v590
    %v3578 = vunpack.c.h.b16 %v590
    %v3579 = vunpack.c.l.b16 %v591
    %v3580 = vunpack.c.h.b16 %v591
    %v3581 = vunpack.c.l.b16 %v592
    %v3582 = vunpack.c.h.b16 %v592
    %v3583 = vunpack.c.l.b16 %v593
    %v3584 = vunpack.c.h.b16 %v593
    %v3585 = vunpack.c.l.b16 %v594
    %v3586 = vunpack.c.h.b16 %v594
    %v3587 = vunpack.c.l.b16 %v595
    %v3588 = vunpack.c.h.b16 %v595
    %v3589 = vunpack.c.l.b16 %v596
    %v3590 = vunpack.c.h.b16 %v596
    %v3591 = vunpack.c.l.b16 %v597
    %v3592 = vunpack.c.h.b16 %v597
    %v3593 = vunpack.c.l.b16 %v598
    %v3594 = vunpack.c.h.b16 %v598
    %v3595 = vunpack.c.l.b16 %v599
    %v3596 = vunpack.c.h.b16 %v599
    %v3597 = vunpack.c.l.b16 %v600
    %v3598 = vunpack.c.h.b16 %v600
    %v3599 = vunpack.c.l.b16 %v601
    %v3600 = vunpack.c.h.b16 %v601
    %v3601 = vunpack.c.l.b16 %v602
    %v3602 = vunpack.c.h.b16 %v602
    %v3603 = vunpack.c.l.b16 %v603
    %v3604 = vunpack.c.h.b16 %v603
    %v3605 = vunpack.c.l.b16 %v604
    %v3606 = vunpack.c.h.b16 %v604
    %v3607 = vunpack.c.l.b16 %v605
    %v3608 = vunpack.c.h.b16 %v605
    %v3609 = vunpack.c.l.b16 %v606
    %v3610 = vunpack.c.h.b16 %v606
    %v3611 = vunpack.c.l.b16 %v607
    %v3612 = vunpack.c.h.b16 %v607
    %v3613 = vunpack.c.l.b16 %v608
    %v3614 = vunpack.c.h.b16 %v608
    %v3615 = vunpack.c.l.b16 %v609
    %v3616 = vunpack.c.h.b16 %v609
    %v3617 = vunpack.c.l.b16 %v610
    %v3618 = vunpack.c.h.b16 %v610
    %v3619 = vunpack.c.l.b16 %v611
    %v3620 = vunpack.c.h.b16 %v611
    %v3621 = vunpack.c.l.b16 %v612
    %v3622 = vunpack.c.h.b16 %v612
    %v3623 = vunpack.c.l.b16 %v613
    %v3624 = vunpack.c.h.b16 %v613
    %v3625 = vunpack.c.l.b16 %v614
    %v3626 = vunpack.c.h.b16 %v614
    %v3627 = vunpack.c.l.b16 %v615
    %v3628 = vunpack.c.h.b16 %v615
    %v3629 = vunpack.c.l.b16 %v616
    %v3630 = vunpack.c.h.b16 %v616
    %v3631 = vunpack.c.l.b16 %v617
    %v3632 = vunpack.c.h.b16 %v617
    %v3633 = vunpack.c.l.b16 %v618
    %v3634 = vunpack.c.h.b16 %v618
    %v3635 = vunpack.c.l.b16 %v619
    %v3636 = vunpack.c.h.b16 %v619
    %v3637 = vunpack.c.l.b16 %v620
    %v3638 = vunpack.c.h.b16 %v620
    %v3639 = vunpack.c.l.b16 %v621
    %v3640 = vunpack.c.h.b16 %v621
    %v3641 = vunpack.c.l.b16 %v622
    %v3642 = vunpack.c.h.b16 %v622
    %v3643 = vunpack.c.l.b16 %v623
    %v3644 = vunpack.c.h.b16 %v623
    %v3645 = vpack.c.b16 %v3273, %v3261
    %v3646 = vpack.c.b16 %v3274, %v3262
    %v3647 = vpack.c.b16 %v3275, %v3263
    %v3648 = vpack.c.b16 %v3276, %v3264
    %v3649 = vpack.c.b16 %v3277, %v3265
    %v3650 = vpack.c.b16 %v3278, %v3266
    %v3651 = vpack.c.b16 %v3279, %v3267
    %v3652 = vpack.c.b16 %v3280, %v3268
    %v3653 = vpack.c.b16 %v3281, %v3269
    %v3654 = vpack.c.b16 %v3282, %v3270
    %v3655 = vpack.c.b16 %v3283, %v3271
    %v3656 = vpack.c.b16 %v3284, %v3272
    %v3657 = vpack.c.b16 %v3297, %v3285
    %v3658 = vpack.c.b16 %v3298, %v3286
    %v3659 = vpack.c.b16 %v3299, %v3287
    %v3660 = vpack.c.b16 %v3300, %v3288
    %v3661 = vpack.c.b16 %v3301, %v3289
    %v3662 = vpack.c.b16 %v3302, %v3290
    %v3663 = vpack.c.b16 %v3303, %v3291
    %v3664 = vpack.c.b16 %v3304, %v3292
    %v3665 = vpack.c.b16 %v3305, %v3293
    %v3666 = vpack.c.b16 %v3306, %v3294
    %v3667 = vpack.c.b16 %v3307, %v3295
    %v3668 = vpack.c.b16 %v3308, %v3296
    %v3669 = vpack.c.b16 %v3321, %v3309
    %v3670 = vpack.c.b16 %v3322, %v3310
    %v3671 = vpack.c.b16 %v3323, %v3311
    %v3672 = vpack.c.b16 %v3324, %v3312
    %v3673 = vpack.c.b16 %v3325, %v3313
    %v3674 = vpack.c.b16 %v3326, %v3314
    %v3675 = vpack.c.b16 %v3327, %v3315
    %v3676 = vpack.c.b16 %v3328, %v3316
    %v3677 = vpack.c.b16 %v3329, %v3317
    %v3678 = vpack.c.b16 %v3330, %v3318
    %v3679 = vpack.c.b16 %v3331, %v3319
    %v3680 = vpack.c.b16 %v3332, %v3320
    %v3681 = vpack.c.b16 %v3345, %v3333
    %v3682 = vpack.c.b16 %v3346, %v3334
    %v3683 = vpack.c.b16 %v3347, %v3335
    %v3684 = vpack.c.b16 %v3348, %v3336
    %v3685 = vpack.c.b16 %v3349, %v3337
    %v3686 = vpack.c.b16 %v3350, %v3338
    %v3687 = vpack.c.b16 %v3351, %v3339
    %v3688 = vpack.c.b16 %v3352, %v3340
    %v3689 = vpack.c.b16 %v3353, %v3341
    %v3690 = vpack.c.b16 %v3354, %v3342
    %v3691 = vpack.c.b16 %v3355, %v3343
    %v3692 = vpack.c.b16 %v3356, %v3344
    %v3693 = vpack.c.b16 %v3369, %v3357
    %v3694 = vpack.c.b16 %v3370, %v3358
    %v3695 = vpack.c.b16 %v3371, %v3359
    %v3696 = vpack.c.b16 %v3372, %v3360
    %v3697 = vpack.c.b16 %v3373, %v3361
    %v3698 = vpack.c.b16 %v3374, %v3362
    %v3699 = vpack.c.b16 %v3375, %v3363
    %v3700 = vpack.c.b16 %v3376, %v3364
    %v3701 = vpack.c.b16 %v3377, %v3365
    %v3702 = vpack.c.b16 %v3378, %v3366
    %v3703 = vpack.c.b16 %v3379, %v3367
    %v3704 = vpack.c.b16 %v3380, %v3368
    %v3705 = vpack.c.b16 %v3393, %v3381
    %v3706 = vpack.c.b16 %v3394, %v3382
    %v3707 = vpack.c.b16 %v3395, %v3383
    %v3708 = vpack.c.b16 %v3396, %v3384
    %v3709 = vpack.c.b16 %v3397, %v3385
    %v3710 = vpack.c.b16 %v3398, %v3386
    %v3711 = vpack.c.b16 %v3399, %v3387
    %v3712 = vpack.c.b16 %v3400, %v3388
    %v3713 = vpack.c.b16 %v3401, %v3389
    %v3714 = vpack.c.b16 %v3402, %v3390
    %v3715 = vpack.c.b16 %v3403, %v3391
    %v3716 = vpack.c.b16 %v3404, %v3392
    %v3717 = vpack.c.b16 %v3417, %v3405
    %v3718 = vpack.c.b16 %v3418, %v3406
    %v3719 = vpack.c.b16 %v3419, %v3407
    %v3720 = vpack.c.b16 %v3420, %v3408
    %v3721 = vpack.c.b16 %v3421, %v3409
    %v3722 = vpack.c.b16 %v3422, %v3410
    %v3723 = vpack.c.b16 %v3423, %v3411
    %v3724 = vpack.c.b16 %v3424, %v3412
    %v3725 = vpack.c.b16 %v3425, %v3413
    %v3726 = vpack.c.b16 %v3426, %v3414
    %v3727 = vpack.c.b16 %v3427, %v3415
    %v3728 = vpack.c.b16 %v3428, %v3416
    %v3729 = vpack.c.b16 %v3441, %v3429
    %v3730 = vpack.c.b16 %v3442, %v3430
    %v3731 = vpack.c.b16 %v3443, %v3431
    %v3732 = vpack.c.b16 %v3444, %v3432
    %v3733 = vpack.c.b16 %v3445, %v3433
    %v3734 = vpack.c.b16 %v3446, %v3434
    %v3735 = vpack.c.b16 %v3447, %v3435
    %v3736 = vpack.c.b16 %v3448, %v3436
    %v3737 = vpack.c.b16 %v3449, %v3437
    %v3738 = vpack.c.b16 %v3450, %v3438
    %v3739 = vpack.c.b16 %v3451, %v3439
    %v3740 = vpack.c.b16 %v3452, %v3440
    %v3741 = vpack.c.b16 %v3465, %v3453
    %v3742 = vpack.c.b16 %v3466, %v3454
    %v3743 = vpack.c.b16 %v3467, %v3455
    %v3744 = vpack.c.b16 %v3468, %v3456
    %v3745 = vpack.c.b16 %v3469, %v3457
    %v3746 = vpack.c.b16 %v3470, %v3458
    %v3747 = vpack.c.b16 %v3471, %v3459
    %v3748 = vpack.c.b16 %v3472, %v3460
    %v3749 = vpack.c.b16 %v3473, %v3461
    %v3750 = vpack.c.b16 %v3474, %v3462
    %v3751 = vpack.c.b16 %v3475, %v3463
    %v3752 = vpack.c.b16 %v3476, %v3464
    %v3753 = vpack.c.b16 %v3489, %v3477
    %v3754 = vpack.c.b16 %v3490, %v3478
    %v3755 = vpack.c.b16 %v3491, %v3479
    %v3756 = vpack.c.b16 %v3492, %v3480
    %v3757 = vpack.c.b16 %v3493, %v3481
    %v3758 = vpack.c.b16 %v3494, %v3482
    %v3759 = vpack.c.b16 %v3495, %v3483
    %v3760 = vpack.c.b16 %v3496, %v3484
    %v3761 = vpack.c.b16 %v3497, %v3485
    %v3762 = vpack.c.b16 %v3498, %v3486
    %v3763 = vpack.c.b16 %v3499, %v3487
    %v3764 = vpack.c.b16 %v3500, %v3488
    %v3765 = vpack.c.b16 %v3513, %v3501
    %v3766 = vpack.c.b16 %v3514, %v3502
    %v3767 = vpack.c.b16 %v3515, %v3503
    %v3768 = vpack.c.b16 %v3516, %v3504
    %v3769 = vpack.c.b16 %v3517, %v3505
    %v3770 = vpack.c.b16 %v3518, %v3506
    %v3771 = vpack.c.b16 %v3519, %v3507
    %v3772 = vpack.c.b16 %v3520, %v3508
    %v3773 = vpack.c.b16 %v3521, %v3509
    %v3774 = vpack.c.b16 %v3522, %v3510
    %v3775 = vpack.c.b16 %v3523, %v3511
    %v3776 = vpack.c.b16 %v3524, %v3512
    %v3777 = vpack.c.b16 %v3537, %v3525
    %v3778 = vpack.c.b16 %v3538, %v3526
    %v3779 = vpack.c.b16 %v3539, %v3527
    %v3780 = vpack.c.b16 %v3540, %v3528
    %v3781 = vpack.c.b16 %v3541, %v3529
    %v3782 = vpack.c.b16 %v3542, %v3530
    %v3783 = vpack.c.b16 %v3543, %v3531
    %v3784 = vpack.c.b16 %v3544, %v3532
    %v3785 = vpack.c.b16 %v3545, %v3533
    %v3786 = vpack.c.b16 %v3546, %v3534
    %v3787 = vpack.c.b16 %v3547, %v3535
    %v3788 = vpack.c.b16 %v3548, %v3536
    %v3789 = vpack.c.b16 %v3561, %v3549
    %v3790 = vpack.c.b16 %v3562, %v3550
    %v3791 = vpack.c.b16 %v3563, %v3551
    %v3792 = vpack.c.b16 %v3564, %v3552
    %v3793 = vpack.c.b16 %v3565, %v3553
    %v3794 = vpack.c.b16 %v3566, %v3554
    %v3795 = vpack.c.b16 %v3567, %v3555
    %v3796 = vpack.c.b16 %v3568, %v3556
    %v3797 = vpack.c.b16 %v3569, %v3557
    %v3798 = vpack.c.b16 %v3570, %v3558
    %v3799 = vpack.c.b16 %v3571, %v3559
    %v3800 = vpack.c.b16 %v3572, %v3560
    %v3801 = vpack.c.b16 %v3585, %v3573
    %v3802 = vpack.c.b16 %v3586, %v3574
    %v3803 = vpack.c.b16 %v3587, %v3575
    %v3804 = vpack.c.b16 %v3588, %v3576
    %v3805 = vpack.c.b16 %v3589, %v3577
    %v3806 = vpack.c.b16 %v3590, %v3578
    %v3807 = vpack.c.b16 %v3591, %v3579
    %v3808 = vpack.c.b16 %v3592, %v3580
    %v3809 = vpack.c.b16 %v3593, %v3581
    %v3810 = vpack.c.b16 %v3594, %v3582
    %v3811 = vpack.c.b16 %v3595, %v3583
    %v3812 = vpack.c.b16 %v3596, %v3584
    %v3813 = vpack.c.b16 %v3609, %v3597
    %v3814 = vpack.c.b16 %v3610, %v3598
    %v3815 = vpack.c.b16 %v3611, %v3599
    %v3816 = vpack.c.b16 %v3612, %v3600
    %v3817 = vpack.c.b16 %v3613, %v3601
    %v3818 = vpack.c.b16 %v3614, %v3602
    %v3819 = vpack.c.b16 %v3615, %v3603
    %v3820 = vpack.c.b16 %v3616, %v3604
    %v3821 = vpack.c.b16 %v3617, %v3605
    %v3822 = vpack.c.b16 %v3618, %v3606
    %v3823 = vpack.c.b16 %v3619, %v3607
    %v3824 = vpack.c.b16 %v3620, %v3608
    %v3825 = vpack.c.b16 %v3633, %v3621
    %v3826 = vpack.c.b16 %v3634, %v3622
    %v3827 = vpack.c.b16 %v3635, %v3623
    %v3828 = vpack.c.b16 %v3636, %v3624
    %v3829 = vpack.c.b16 %v3637, %v3625
    %v3830 = vpack.c.b16 %v3638, %v3626
    %v3831 = vpack.c.b16 %v3639, %v3627
    %v3832 = vpack.c.b16 %v3640, %v3628
    %v3833 = vpack.c.b16 %v3641, %v3629
    %v3834 = vpack.c.b16 %v3642, %v3630
    %v3835 = vpack.c.b16 %v3643, %v3631
    %v3836 = vpack.c.b16 %v3644, %v3632
    %v4031 = vlaneseq
    %v4032 = vshrl.u32 %v4031, 7
    %v4033 = vsub.s32 0, %v4032
    %v4034 = vrot.slane %v852, %v4033
    %v4035 = vlaneseq
    %v4036 = vshrl.u32 %v4035, 7
    %v4037 = vsub.s32 1, %v4036
    %v4038 = vrot.slane %v852, %v4037
    %v4039 = vlaneseq
    %v4040 = vshrl.u32 %v4039, 7
    %v4041 = vsub.s32 2, %v4040
    %v4042 = vrot.slane %v852, %v4041
    %v4043 = vlaneseq
    %v4044 = vshrl.u32 %v4043, 7
    %v4045 = vsub.s32 3, %v4044
    %v4046 = vrot.slane %v852, %v4045
    %v4047 = vlaneseq
    %v4048 = vshrl.u32 %v4047, 7
    %v4049 = vsub.s32 4, %v4048
    %v4050 = vrot.slane %v852, %v4049
    %v4051 = vlaneseq
    %v4052 = vshrl.u32 %v4051, 7
    %v4053 = vsub.s32 5, %v4052
    %v4054 = vrot.slane %v852, %v4053
    %v4055 = vlaneseq
    %v4056 = vshrl.u32 %v4055, 7
    %v4057 = vsub.s32 6, %v4056
    %v4058 = vrot.slane %v852, %v4057
    %v4059 = vlaneseq
    %v4060 = vshrl.u32 %v4059, 7
    %v4061 = vsub.s32 7, %v4060
    %v4062 = vrot.slane %v852, %v4061
    %v4063 = vlaneseq
    %v4064 = vshrl.u32 %v4063, 7
    %v4065 = vsub.s32 0, %v4064
    %v4066 = vrot.slane %v853, %v4065
    %v4067 = vlaneseq
    %v4068 = vshrl.u32 %v4067, 7
    %v4069 = vsub.s32 1, %v4068
    %v4070 = vrot.slane %v853, %v4069
    %v4071 = vlaneseq
    %v4072 = vshrl.u32 %v4071, 7
    %v4073 = vsub.s32 2, %v4072
    %v4074 = vrot.slane %v853, %v4073
    %v4075 = vlaneseq
    %v4076 = vshrl.u32 %v4075, 7
    %v4077 = vsub.s32 3, %v4076
    %v4078 = vrot.slane %v853, %v4077
    %4091 = vmatprep.subr.bf16.mxu0 %v3646
    %4092 = vmatpush1.bf16.msra.mxu0 %v3645
    %4093 = vmatprep.subr.bf16.mxu0 %v3658
    %4094 = vmatpush1.bf16.msra.mxu0 %v3657
    %4095 = vmatprep.subr.bf16.mxu0 %v3670
    %4096 = vmatpush1.bf16.msra.mxu0 %v3669
    %4097 = vmatprep.subr.bf16.mxu0 %v3682
    %4098 = vmatpush1.bf16.msra.mxu0 %v3681
    %4099 = vmatprep.subr.bf16.mxu0 %v3694
    %4100 = vmatpush1.bf16.msra.mxu0 %v3693
    %4101 = vmatprep.subr.bf16.mxu0 %v3706
    %4102 = vmatpush1.bf16.msra.mxu0 %v3705
    %4103 = vmatprep.subr.bf16.mxu0 %v3718
    %4104 = vmatpush1.bf16.msra.mxu0 %v3717
    %4105 = vmatprep.subr.bf16.mxu0 %v3730
    %4106 = vmatpush1.bf16.msra.mxu0 %v3729
    %4107 = vmatprep.subr.bf16.mxu0 %v3742
    %4108 = vmatpush1.bf16.msra.mxu0 %v3741
    %4109 = vmatprep.subr.bf16.mxu0 %v3754
    %4110 = vmatpush1.bf16.msra.mxu0 %v3753
    %4111 = vmatprep.subr.bf16.mxu0 %v3766
    %4112 = vmatpush1.bf16.msra.mxu0 %v3765
    %4113 = vmatprep.subr.bf16.mxu0 %v3778
    %4114 = vmatpush1.bf16.msra.mxu0 %v3777
    %4115 = vmatprep.subr.bf16.mxu0 %v3790
    %4116 = vmatpush1.bf16.msra.mxu0 %v3789
    %4117 = vmatprep.subr.bf16.mxu0 %v3802
    %4118 = vmatpush1.bf16.msra.mxu0 %v3801
    %4119 = vmatprep.subr.bf16.mxu0 %v3814
    %4120 = vmatpush1.bf16.msra.mxu0 %v3813
    %4121 = vmatprep.subr.bf16.mxu0 %v3826
    %4122 = vmatpush1.bf16.msra.mxu0 %v3825
    %4123 = vmatprep.mubr.bf16.mxu0 %v3068
    %4124 = vmatmul.mubr.bf16.gmra.mrb[0].mxu0 %v3067
    %v4125 = vpop.f32.mrb[0].mxu0
    %v4126 = vadd.f32 %v4034, %v4125
    %v4127 = vpop.f32.mrb[0].mxu0
    %v4128 = vadd.f32 %v4038, %v4127
    %v4129 = vpop.f32.mrb[0].mxu0
    %v4130 = vpop.f32.mrb[0].mxu0
    %4131 = vdwg.mxu0
    %4132 = vmatprep.subr.bf16.mxu0 %v3648
    %4133 = vmatpush1.bf16.msra.mxu0 %v3647
    %4134 = vmatprep.subr.bf16.mxu0 %v3660
    %4135 = vmatpush1.bf16.msra.mxu0 %v3659
    %4136 = vmatprep.subr.bf16.mxu0 %v3672
    %4137 = vmatpush1.bf16.msra.mxu0 %v3671
    %4138 = vmatprep.subr.bf16.mxu0 %v3684
    %4139 = vmatpush1.bf16.msra.mxu0 %v3683
    %4140 = vmatprep.subr.bf16.mxu0 %v3696
    %4141 = vmatpush1.bf16.msra.mxu0 %v3695
    %4142 = vmatprep.subr.bf16.mxu0 %v3708
    %4143 = vmatpush1.bf16.msra.mxu0 %v3707
    %4144 = vmatprep.subr.bf16.mxu0 %v3720
    %4145 = vmatpush1.bf16.msra.mxu0 %v3719
    %4146 = vmatprep.subr.bf16.mxu0 %v3732
    %4147 = vmatpush1.bf16.msra.mxu0 %v3731
    %4148 = vmatprep.subr.bf16.mxu0 %v3744
    %4149 = vmatpush1.bf16.msra.mxu0 %v3743
    %4150 = vmatprep.subr.bf16.mxu0 %v3756
    %4151 = vmatpush1.bf16.msra.mxu0 %v3755
    %4152 = vmatprep.subr.bf16.mxu0 %v3768
    %4153 = vmatpush1.bf16.msra.mxu0 %v3767
    %4154 = vmatprep.subr.bf16.mxu0 %v3780
    %4155 = vmatpush1.bf16.msra.mxu0 %v3779
    %4156 = vmatprep.subr.bf16.mxu0 %v3792
    %4157 = vmatpush1.bf16.msra.mxu0 %v3791
    %4158 = vmatprep.subr.bf16.mxu0 %v3804
    %4159 = vmatpush1.bf16.msra.mxu0 %v3803
    %4160 = vmatprep.subr.bf16.mxu0 %v3816
    %4161 = vmatpush1.bf16.msra.mxu0 %v3815
    %4162 = vmatprep.subr.bf16.mxu0 %v3828
    %4163 = vmatpush1.bf16.msra.mxu0 %v3827
    %4164 = vmatprep.mubr.bf16.mxu0 %v3068
    %4165 = vmatmul.mubr.bf16.gmra.mrb[0].mxu0 %v3067
    %v4166 = vpop.f32.mrb[0].mxu0
    %v4167 = vadd.f32 %v4042, %v4166
    %v4168 = vpop.f32.mrb[0].mxu0
    %v4169 = vadd.f32 %v4046, %v4168
    %v4170 = vpop.f32.mrb[0].mxu0
    %v4171 = vpop.f32.mrb[0].mxu0
    %4172 = vdwg.mxu0
    %4173 = vmatprep.subr.bf16.mxu0 %v3650
    %4174 = vmatpush1.bf16.msra.mxu0 %v3649
    %4175 = vmatprep.subr.bf16.mxu0 %v3662
    %4176 = vmatpush1.bf16.msra.mxu0 %v3661
    %4177 = vmatprep.subr.bf16.mxu0 %v3674
    %4178 = vmatpush1.bf16.msra.mxu0 %v3673
    %4179 = vmatprep.subr.bf16.mxu0 %v3686
    %4180 = vmatpush1.bf16.msra.mxu0 %v3685
    %4181 = vmatprep.subr.bf16.mxu0 %v3698
    %4182 = vmatpush1.bf16.msra.mxu0 %v3697
    %4183 = vmatprep.subr.bf16.mxu0 %v3710
    %4184 = vmatpush1.bf16.msra.mxu0 %v3709
    %4185 = vmatprep.subr.bf16.mxu0 %v3722
    %4186 = vmatpush1.bf16.msra.mxu0 %v3721
    %4187 = vmatprep.subr.bf16.mxu0 %v3734
    %4188 = vmatpush1.bf16.msra.mxu0 %v3733
    %4189 = vmatprep.subr.bf16.mxu0 %v3746
    %4190 = vmatpush1.bf16.msra.mxu0 %v3745
    %4191 = vmatprep.subr.bf16.mxu0 %v3758
    %4192 = vmatpush1.bf16.msra.mxu0 %v3757
    %4193 = vmatprep.subr.bf16.mxu0 %v3770
    %4194 = vmatpush1.bf16.msra.mxu0 %v3769
    %4195 = vmatprep.subr.bf16.mxu0 %v3782
    %4196 = vmatpush1.bf16.msra.mxu0 %v3781
    %4197 = vmatprep.subr.bf16.mxu0 %v3794
    %4198 = vmatpush1.bf16.msra.mxu0 %v3793
    %4199 = vmatprep.subr.bf16.mxu0 %v3806
    %4200 = vmatpush1.bf16.msra.mxu0 %v3805
    %4201 = vmatprep.subr.bf16.mxu0 %v3818
    %4202 = vmatpush1.bf16.msra.mxu0 %v3817
    %4203 = vmatprep.subr.bf16.mxu0 %v3830
    %4204 = vmatpush1.bf16.msra.mxu0 %v3829
    %4205 = vmatprep.mubr.bf16.mxu0 %v3068
    %4206 = vmatmul.mubr.bf16.gmra.mrb[0].mxu0 %v3067
    %v4207 = vpop.f32.mrb[0].mxu0
    %v4208 = vadd.f32 %v4050, %v4207
    %v4209 = vpop.f32.mrb[0].mxu0
    %v4210 = vadd.f32 %v4054, %v4209
    %v4211 = vpop.f32.mrb[0].mxu0
    %v4212 = vpop.f32.mrb[0].mxu0
    %4213 = vdwg.mxu0
    %4214 = vmatprep.subr.bf16.mxu0 %v3652
    %4215 = vmatpush1.bf16.msra.mxu0 %v3651
    %4216 = vmatprep.subr.bf16.mxu0 %v3664
    %4217 = vmatpush1.bf16.msra.mxu0 %v3663
    %4218 = vmatprep.subr.bf16.mxu0 %v3676
    %4219 = vmatpush1.bf16.msra.mxu0 %v3675
    %4220 = vmatprep.subr.bf16.mxu0 %v3688
    %4221 = vmatpush1.bf16.msra.mxu0 %v3687
    %4222 = vmatprep.subr.bf16.mxu0 %v3700
    %4223 = vmatpush1.bf16.msra.mxu0 %v3699
    %4224 = vmatprep.subr.bf16.mxu0 %v3712
    %4225 = vmatpush1.bf16.msra.mxu0 %v3711
    %4226 = vmatprep.subr.bf16.mxu0 %v3724
    %4227 = vmatpush1.bf16.msra.mxu0 %v3723
    %4228 = vmatprep.subr.bf16.mxu0 %v3736
    %4229 = vmatpush1.bf16.msra.mxu0 %v3735
    %4230 = vmatprep.subr.bf16.mxu0 %v3748
    %4231 = vmatpush1.bf16.msra.mxu0 %v3747
    %4232 = vmatprep.subr.bf16.mxu0 %v3760
    %4233 = vmatpush1.bf16.msra.mxu0 %v3759
    %4234 = vmatprep.subr.bf16.mxu0 %v3772
    %4235 = vmatpush1.bf16.msra.mxu0 %v3771
    %4236 = vmatprep.subr.bf16.mxu0 %v3784
    %4237 = vmatpush1.bf16.msra.mxu0 %v3783
    %4238 = vmatprep.subr.bf16.mxu0 %v3796
    %4239 = vmatpush1.bf16.msra.mxu0 %v3795
    %4240 = vmatprep.subr.bf16.mxu0 %v3808
    %4241 = vmatpush1.bf16.msra.mxu0 %v3807
    %4242 = vmatprep.subr.bf16.mxu0 %v3820
    %4243 = vmatpush1.bf16.msra.mxu0 %v3819
    %4244 = vmatprep.subr.bf16.mxu0 %v3832
    %4245 = vmatpush1.bf16.msra.mxu0 %v3831
    %4246 = vmatprep.mubr.bf16.mxu0 %v3068
    %4247 = vmatmul.mubr.bf16.gmra.mrb[0].mxu0 %v3067
    %v4248 = vpop.f32.mrb[0].mxu0
    %v4249 = vadd.f32 %v4058, %v4248
    %v4250 = vpop.f32.mrb[0].mxu0
    %v4251 = vadd.f32 %v4062, %v4250
    %v4252 = vpop.f32.mrb[0].mxu0
    %v4253 = vpop.f32.mrb[0].mxu0
    %4254 = vdwg.mxu0
    %4255 = vmatprep.subr.bf16.mxu0 %v3654
    %4256 = vmatpush1.bf16.msra.mxu0 %v3653
    %4257 = vmatprep.subr.bf16.mxu0 %v3666
    %4258 = vmatpush1.bf16.msra.mxu0 %v3665
    %4259 = vmatprep.subr.bf16.mxu0 %v3678
    %4260 = vmatpush1.bf16.msra.mxu0 %v3677
    %4261 = vmatprep.subr.bf16.mxu0 %v3690
    %4262 = vmatpush1.bf16.msra.mxu0 %v3689
    %4263 = vmatprep.subr.bf16.mxu0 %v3702
    %4264 = vmatpush1.bf16.msra.mxu0 %v3701
    %4265 = vmatprep.subr.bf16.mxu0 %v3714
    %4266 = vmatpush1.bf16.msra.mxu0 %v3713
    %4267 = vmatprep.subr.bf16.mxu0 %v3726
    %4268 = vmatpush1.bf16.msra.mxu0 %v3725
    %4269 = vmatprep.subr.bf16.mxu0 %v3738
    %4270 = vmatpush1.bf16.msra.mxu0 %v3737
    %4271 = vmatprep.subr.bf16.mxu0 %v3750
    %4272 = vmatpush1.bf16.msra.mxu0 %v3749
    %4273 = vmatprep.subr.bf16.mxu0 %v3762
    %4274 = vmatpush1.bf16.msra.mxu0 %v3761
    %4275 = vmatprep.subr.bf16.mxu0 %v3774
    %4276 = vmatpush1.bf16.msra.mxu0 %v3773
    %4277 = vmatprep.subr.bf16.mxu0 %v3786
    %4278 = vmatpush1.bf16.msra.mxu0 %v3785
    %4279 = vmatprep.subr.bf16.mxu0 %v3798
    %4280 = vmatpush1.bf16.msra.mxu0 %v3797
    %4281 = vmatprep.subr.bf16.mxu0 %v3810
    %4282 = vmatpush1.bf16.msra.mxu0 %v3809
    %4283 = vmatprep.subr.bf16.mxu0 %v3822
    %4284 = vmatpush1.bf16.msra.mxu0 %v3821
    %4285 = vmatprep.subr.bf16.mxu0 %v3834
    %4286 = vmatpush1.bf16.msra.mxu0 %v3833
    %4287 = vmatprep.mubr.bf16.mxu0 %v3068
    %4288 = vmatmul.mubr.bf16.gmra.mrb[0].mxu0 %v3067
    %v4289 = vpop.f32.mrb[0].mxu0
    %v4290 = vadd.f32 %v4066, %v4289
    %v4291 = vpop.f32.mrb[0].mxu0
    %v4292 = vadd.f32 %v4070, %v4291
    %v4293 = vpop.f32.mrb[0].mxu0
    %v4294 = vpop.f32.mrb[0].mxu0
    %4295 = vdwg.mxu0
    %4296 = vmatprep.subr.bf16.mxu0 %v3656
    %4297 = vmatpush1.bf16.msra.mxu0 %v3655
    %4298 = vmatprep.subr.bf16.mxu0 %v3668
    %4299 = vmatpush1.bf16.msra.mxu0 %v3667
    %4300 = vmatprep.subr.bf16.mxu0 %v3680
    %4301 = vmatpush1.bf16.msra.mxu0 %v3679
    %4302 = vmatprep.subr.bf16.mxu0 %v3692
    %4303 = vmatpush1.bf16.msra.mxu0 %v3691
    %4304 = vmatprep.subr.bf16.mxu0 %v3704
    %4305 = vmatpush1.bf16.msra.mxu0 %v3703
    %4306 = vmatprep.subr.bf16.mxu0 %v3716
    %4307 = vmatpush1.bf16.msra.mxu0 %v3715
    %4308 = vmatprep.subr.bf16.mxu0 %v3728
    %4309 = vmatpush1.bf16.msra.mxu0 %v3727
    %4310 = vmatprep.subr.bf16.mxu0 %v3740
    %4311 = vmatpush1.bf16.msra.mxu0 %v3739
    %4312 = vmatprep.subr.bf16.mxu0 %v3752
    %4313 = vmatpush1.bf16.msra.mxu0 %v3751
    %4314 = vmatprep.subr.bf16.mxu0 %v3764
    %4315 = vmatpush1.bf16.msra.mxu0 %v3763
    %4316 = vmatprep.subr.bf16.mxu0 %v3776
    %4317 = vmatpush1.bf16.msra.mxu0 %v3775
    %4318 = vmatprep.subr.bf16.mxu0 %v3788
    %4319 = vmatpush1.bf16.msra.mxu0 %v3787
    %4320 = vmatprep.subr.bf16.mxu0 %v3800
    %4321 = vmatpush1.bf16.msra.mxu0 %v3799
    %4322 = vmatprep.subr.bf16.mxu0 %v3812
    %4323 = vmatpush1.bf16.msra.mxu0 %v3811
    %4324 = vmatprep.subr.bf16.mxu0 %v3824
    %4325 = vmatpush1.bf16.msra.mxu0 %v3823
    %4326 = vmatprep.subr.bf16.mxu0 %v3836
    %4327 = vmatpush1.bf16.msra.mxu0 %v3835
    %4328 = vmatprep.mubr.bf16.mxu0 %v3068
    %4329 = vmatmul.mubr.bf16.gmra.mrb[0].mxu0 %v3067
    %v4330 = vpop.f32.mrb[0].mxu0
    %v4331 = vadd.f32 %v4074, %v4330
    %v4332 = vpop.f32.mrb[0].mxu0
    %v4333 = vadd.f32 %v4078, %v4332
    %v4334 = vpop.f32.mrb[0].mxu0
    %v4335 = vpop.f32.mrb[0].mxu0
    %4336 = vdwg.mxu0
    %v4337 = vadd.f32 %v2845, %v4126
    %v4338 = vadd.f32 %v2847, %v4128
    %v4339 = vsub.f32 0.0, %v4337
    %v4340 = vsub.f32 0.0, %v4338
    %v4341 = vmul.f32 %v4339, 1.442695
    %v4342 = vpow.pop %v4341
    %v4343 = vmul.f32 %v4340, 1.442695
    %v4344 = vpow.pop %v4343
    %v4345 = vadd.f32 %v4342, 1.0
    %v4346 = vadd.f32 %v4344, 1.0
    %v4347 = vrcp.pop %v4345
    %v4348 = vmul.f32 1.0, %v4347
    %v4349 = vrcp.pop %v4346
    %v4350 = vmul.f32 1.0, %v4349
    %v4351 = vadd.f32 %v2886, %v4167
    %v4352 = vadd.f32 %v2888, %v4169
    %v4353 = vsub.f32 0.0, %v4351
    %v4354 = vsub.f32 0.0, %v4352
    %v4355 = vmul.f32 %v4353, 1.442695
    %v4356 = vpow.pop %v4355
    %v4357 = vmul.f32 %v4354, 1.442695
    %v4358 = vpow.pop %v4357
    %v4359 = vadd.f32 %v4356, 1.0
    %v4360 = vadd.f32 %v4358, 1.0
    %v4361 = vrcp.pop %v4359
    %v4362 = vmul.f32 1.0, %v4361
    %v4363 = vrcp.pop %v4360
    %v4364 = vmul.f32 1.0, %v4363
    %v4365 = vmul.f32 %v4348, %v4208
    %v4366 = vmul.f32 %v4350, %v4210
    %v4367 = vadd.f32 %v2927, %v4365
    %v4368 = vadd.f32 %v2929, %v4366
    %v4369 = vtanh.pop %v4367
    %v4370 = vtanh.pop %v4368
    %v4371 = vsub.f32 1.0, %v4362
    %v4372 = vsub.f32 1.0, %v4364
    %v4373 = vmul.f32 %v4371, %v4369
    %v4374 = vmul.f32 %v4372, %v4370
    %v4375 = vmul.f32 %v4362, %v3060
    %v4376 = vmul.f32 %v4364, %v3064
    %v4377 = vadd.f32 %v4373, %v4375
    %v4378 = vadd.f32 %v4374, %v4376
    %v4379 = vadd.f32 %v2968, %v4249
    %v4380 = vadd.f32 %v2970, %v4251
    %v4381 = vsub.f32 0.0, %v4379
    %v4382 = vsub.f32 0.0, %v4380
    %v4383 = vmul.f32 %v4381, 1.442695
    %v4384 = vpow.pop %v4383
    %v4385 = vmul.f32 %v4382, 1.442695
    %v4386 = vpow.pop %v4385
    %v4387 = vadd.f32 %v4384, 1.0
    %v4388 = vadd.f32 %v4386, 1.0
    %v4389 = vrcp.pop %v4387
    %v4390 = vmul.f32 1.0, %v4389
    %v4391 = vrcp.pop %v4388
    %v4392 = vmul.f32 1.0, %v4391
    %v4393 = vadd.f32 %v3009, %v4290
    %v4394 = vadd.f32 %v3011, %v4292
    %v4395 = vsub.f32 0.0, %v4393
    %v4396 = vsub.f32 0.0, %v4394
    %v4397 = vmul.f32 %v4395, 1.442695
    %v4398 = vpow.pop %v4397
    %v4399 = vmul.f32 %v4396, 1.442695
    %v4400 = vpow.pop %v4399
    %v4401 = vadd.f32 %v4398, 1.0
    %v4402 = vadd.f32 %v4400, 1.0
    %v4403 = vrcp.pop %v4401
    %v4404 = vmul.f32 1.0, %v4403
    %v4405 = vrcp.pop %v4402
    %v4406 = vmul.f32 1.0, %v4405
    %v4407 = vmul.f32 %v4390, %v4331
    %v4408 = vmul.f32 %v4392, %v4333
    %v4409 = vadd.f32 %v3050, %v4407
    %v4410 = vadd.f32 %v3052, %v4408
    %v4411 = vtanh.pop %v4409
    %v4412 = vtanh.pop %v4410
    %v4413 = vsub.f32 1.0, %v4404
    %v4414 = vsub.f32 1.0, %v4406
    %v4415 = vmul.f32 %v4413, %v4411
    %v4416 = vmul.f32 %v4414, %v4412
    %v4417 = vmul.f32 %v4404, %v3060
    %v4418 = vmul.f32 %v4406, %v3064
    %v4419 = vadd.f32 %v4415, %v4417
    %v4420 = vadd.f32 %v4416, %v4418
    %v4421 = vadd.f32 %v4377, %v4419
    %v4422 = vadd.f32 %v4378, %v4420
    %v4423 = vmul.f32 %v4421, 0.5
    %v4424 = vmul.f32 %v4422, 0.5
    %v4427 = vcombine.low %v4377, %v4378
    %v4429 = vunpack.c.l.s4 1966171168
    %v4430 = vunpack.c.0.s8 %v4429
    %v4431 = vlaneseq
    %v4432 = vshrl.u32 %v4431, 7
    %v4433 = vsub.s32 %v4430, %v4432
    %v4434 = vrot.slane %v4427, %v4433
    %v4436 = vunpack.c.l.s4 1966171168
    %v4437 = vunpack.c.0.s8 %v4436
    %v4438 = vlaneseq
    %v4439 = vshrl.u32 %v4438, 7
    %v4440 = vsub.s32 %v4437, %v4439
    %v4441 = vrot.slane %v4434, %v4440
    %4443 = vst.msk [vmem:[#allocation4] ss:$2 sm:$0x3] %vm869, %v4441
    %v4446 = vcombine.low %v4419, %v4420
    %v4448 = vunpack.c.l.s4 1966171168
    %v4449 = vunpack.c.0.s8 %v4448
    %v4450 = vlaneseq
    %v4451 = vshrl.u32 %v4450, 7
    %v4452 = vsub.s32 %v4449, %v4451
    %v4453 = vrot.slane %v4446, %v4452
    %v4455 = vunpack.c.l.s4 1966171168
    %v4456 = vunpack.c.0.s8 %v4455
    %v4457 = vlaneseq
    %v4458 = vshrl.u32 %v4457, 7
    %v4459 = vsub.s32 %v4456, %v4458
    %v4460 = vrot.slane %v4453, %v4459
    %s4462 = scalar_lea.vmem [#allocation4], 1
    %4463 = vst.msk [vmem:[%s4462] ss:$2 sm:$0x3] %vm869, %v4460
    %v4464 = vld [vmem:[#allocation4] sm:$0xf]
    %v4467 = vunpack.c.l.s4 1983009808
    %v4468 = vunpack.c.0.s8 %v4467
    %v4469 = vlaneseq
    %v4470 = vshrl.u32 %v4469, 7
    %v4471 = vsub.s32 %v4468, %v4470
    %v4472 = vrot.slane %v4464, %v4471
    %v4473 = vcombine.high %v4472, %v4472
    %v4476 = vpack.c.bf16 %v4472, %v4472
    %v4477 = vpack.c.bf16 %v4473, %v4473
    %v4479 = vlaneseq
    %v4480 = vshrl.u32 %v4479, 7
    %v4481 = vsub.s32 0, %v4480
    %v4482 = vrot.slane %v854, %v4481
    %v4483 = vlaneseq
    %v4484 = vshrl.u32 %v4483, 7
    %v4485 = vsub.s32 1, %v4484
    %v4486 = vrot.slane %v854, %v4485
    %v4487 = vlaneseq
    %v4488 = vshrl.u32 %v4487, 7
    %v4489 = vsub.s32 2, %v4488
    %v4490 = vrot.slane %v854, %v4489
    %v4491 = vlaneseq
    %v4492 = vshrl.u32 %v4491, 7
    %v4493 = vsub.s32 3, %v4492
    %v4494 = vrot.slane %v854, %v4493
    %v4495 = vlaneseq
    %v4496 = vshrl.u32 %v4495, 7
    %v4497 = vsub.s32 4, %v4496
    %v4498 = vrot.slane %v854, %v4497
    %v4499 = vlaneseq
    %v4500 = vshrl.u32 %v4499, 7
    %v4501 = vsub.s32 5, %v4500
    %v4502 = vrot.slane %v854, %v4501
    %v4605 = vunpack.c.l.b16 %v624
    %v4606 = vunpack.c.h.b16 %v624
    %v4607 = vunpack.c.l.b16 %v625
    %v4608 = vunpack.c.h.b16 %v625
    %v4609 = vunpack.c.l.b16 %v626
    %v4610 = vunpack.c.h.b16 %v626
    %v4611 = vunpack.c.l.b16 %v627
    %v4612 = vunpack.c.h.b16 %v627
    %v4613 = vunpack.c.l.b16 %v628
    %v4614 = vunpack.c.h.b16 %v628
    %v4615 = vunpack.c.l.b16 %v629
    %v4616 = vunpack.c.h.b16 %v629
    %v4617 = vunpack.c.l.b16 %v630
    %v4618 = vunpack.c.h.b16 %v630
    %v4619 = vunpack.c.l.b16 %v631
    %v4620 = vunpack.c.h.b16 %v631
    %v4621 = vunpack.c.l.b16 %v632
    %v4622 = vunpack.c.h.b16 %v632
    %v4623 = vunpack.c.l.b16 %v633
    %v4624 = vunpack.c.h.b16 %v633
    %v4625 = vunpack.c.l.b16 %v634
    %v4626 = vunpack.c.h.b16 %v634
    %v4627 = vunpack.c.l.b16 %v635
    %v4628 = vunpack.c.h.b16 %v635
    %v4629 = vunpack.c.l.b16 %v636
    %v4630 = vunpack.c.h.b16 %v636
    %v4631 = vunpack.c.l.b16 %v637
    %v4632 = vunpack.c.h.b16 %v637
    %v4633 = vunpack.c.l.b16 %v638
    %v4634 = vunpack.c.h.b16 %v638
    %v4635 = vunpack.c.l.b16 %v639
    %v4636 = vunpack.c.h.b16 %v639
    %v4637 = vunpack.c.l.b16 %v640
    %v4638 = vunpack.c.h.b16 %v640
    %v4639 = vunpack.c.l.b16 %v641
    %v4640 = vunpack.c.h.b16 %v641
    %v4641 = vunpack.c.l.b16 %v642
    %v4642 = vunpack.c.h.b16 %v642
    %v4643 = vunpack.c.l.b16 %v643
    %v4644 = vunpack.c.h.b16 %v643
    %v4645 = vunpack.c.l.b16 %v644
    %v4646 = vunpack.c.h.b16 %v644
    %v4647 = vunpack.c.l.b16 %v645
    %v4648 = vunpack.c.h.b16 %v645
    %v4649 = vunpack.c.l.b16 %v646
    %v4650 = vunpack.c.h.b16 %v646
    %v4651 = vunpack.c.l.b16 %v647
    %v4652 = vunpack.c.h.b16 %v647
    %v4653 = vunpack.c.l.b16 %v648
    %v4654 = vunpack.c.h.b16 %v648
    %v4655 = vunpack.c.l.b16 %v649
    %v4656 = vunpack.c.h.b16 %v649
    %v4657 = vunpack.c.l.b16 %v650
    %v4658 = vunpack.c.h.b16 %v650
    %v4659 = vunpack.c.l.b16 %v651
    %v4660 = vunpack.c.h.b16 %v651
    %v4661 = vunpack.c.l.b16 %v652
    %v4662 = vunpack.c.h.b16 %v652
    %v4663 = vunpack.c.l.b16 %v653
    %v4664 = vunpack.c.h.b16 %v653
    %v4665 = vunpack.c.l.b16 %v654
    %v4666 = vunpack.c.h.b16 %v654
    %v4667 = vunpack.c.l.b16 %v655
    %v4668 = vunpack.c.h.b16 %v655
    %v4669 = vunpack.c.l.b16 %v656
    %v4670 = vunpack.c.h.b16 %v656
    %v4671 = vunpack.c.l.b16 %v657
    %v4672 = vunpack.c.h.b16 %v657
    %v4673 = vunpack.c.l.b16 %v658
    %v4674 = vunpack.c.h.b16 %v658
    %v4675 = vunpack.c.l.b16 %v659
    %v4676 = vunpack.c.h.b16 %v659
    %v4677 = vunpack.c.l.b16 %v660
    %v4678 = vunpack.c.h.b16 %v660
    %v4679 = vunpack.c.l.b16 %v661
    %v4680 = vunpack.c.h.b16 %v661
    %v4681 = vunpack.c.l.b16 %v662
    %v4682 = vunpack.c.h.b16 %v662
    %v4683 = vunpack.c.l.b16 %v663
    %v4684 = vunpack.c.h.b16 %v663
    %v4685 = vunpack.c.l.b16 %v664
    %v4686 = vunpack.c.h.b16 %v664
    %v4687 = vunpack.c.l.b16 %v665
    %v4688 = vunpack.c.h.b16 %v665
    %v4689 = vunpack.c.l.b16 %v666
    %v4690 = vunpack.c.h.b16 %v666
    %v4691 = vunpack.c.l.b16 %v667
    %v4692 = vunpack.c.h.b16 %v667
    %v4693 = vunpack.c.l.b16 %v668
    %v4694 = vunpack.c.h.b16 %v668
    %v4695 = vunpack.c.l.b16 %v669
    %v4696 = vunpack.c.h.b16 %v669
    %v4697 = vunpack.c.l.b16 %v670
    %v4698 = vunpack.c.h.b16 %v670
    %v4699 = vunpack.c.l.b16 %v671
    %v4700 = vunpack.c.h.b16 %v671
    %v4701 = vunpack.c.l.b16 %v672
    %v4702 = vunpack.c.h.b16 %v672
    %v4703 = vunpack.c.l.b16 %v673
    %v4704 = vunpack.c.h.b16 %v673
    %v4705 = vunpack.c.l.b16 %v674
    %v4706 = vunpack.c.h.b16 %v674
    %v4707 = vunpack.c.l.b16 %v675
    %v4708 = vunpack.c.h.b16 %v675
    %v4709 = vunpack.c.l.b16 %v676
    %v4710 = vunpack.c.h.b16 %v676
    %v4711 = vunpack.c.l.b16 %v677
    %v4712 = vunpack.c.h.b16 %v677
    %v4713 = vunpack.c.l.b16 %v678
    %v4714 = vunpack.c.h.b16 %v678
    %v4715 = vunpack.c.l.b16 %v679
    %v4716 = vunpack.c.h.b16 %v679
    %v4717 = vunpack.c.l.b16 %v680
    %v4718 = vunpack.c.h.b16 %v680
    %v4719 = vunpack.c.l.b16 %v681
    %v4720 = vunpack.c.h.b16 %v681
    %v4721 = vunpack.c.l.b16 %v682
    %v4722 = vunpack.c.h.b16 %v682
    %v4723 = vunpack.c.l.b16 %v683
    %v4724 = vunpack.c.h.b16 %v683
    %v4725 = vunpack.c.l.b16 %v684
    %v4726 = vunpack.c.h.b16 %v684
    %v4727 = vunpack.c.l.b16 %v685
    %v4728 = vunpack.c.h.b16 %v685
    %v4729 = vunpack.c.l.b16 %v686
    %v4730 = vunpack.c.h.b16 %v686
    %v4731 = vunpack.c.l.b16 %v687
    %v4732 = vunpack.c.h.b16 %v687
    %v4733 = vunpack.c.l.b16 %v688
    %v4734 = vunpack.c.h.b16 %v688
    %v4735 = vunpack.c.l.b16 %v689
    %v4736 = vunpack.c.h.b16 %v689
    %v4737 = vunpack.c.l.b16 %v690
    %v4738 = vunpack.c.h.b16 %v690
    %v4739 = vunpack.c.l.b16 %v691
    %v4740 = vunpack.c.h.b16 %v691
    %v4741 = vunpack.c.l.b16 %v692
    %v4742 = vunpack.c.h.b16 %v692
    %v4743 = vunpack.c.l.b16 %v693
    %v4744 = vunpack.c.h.b16 %v693
    %v4745 = vunpack.c.l.b16 %v694
    %v4746 = vunpack.c.h.b16 %v694
    %v4747 = vunpack.c.l.b16 %v695
    %v4748 = vunpack.c.h.b16 %v695
    %v4749 = vunpack.c.l.b16 %v696
    %v4750 = vunpack.c.h.b16 %v696
    %v4751 = vunpack.c.l.b16 %v697
    %v4752 = vunpack.c.h.b16 %v697
    %v4753 = vunpack.c.l.b16 %v698
    %v4754 = vunpack.c.h.b16 %v698
    %v4755 = vunpack.c.l.b16 %v699
    %v4756 = vunpack.c.h.b16 %v699
    %v4757 = vunpack.c.l.b16 %v700
    %v4758 = vunpack.c.h.b16 %v700
    %v4759 = vunpack.c.l.b16 %v701
    %v4760 = vunpack.c.h.b16 %v701
    %v4761 = vunpack.c.l.b16 %v702
    %v4762 = vunpack.c.h.b16 %v702
    %v4763 = vunpack.c.l.b16 %v703
    %v4764 = vunpack.c.h.b16 %v703
    %v4765 = vunpack.c.l.b16 %v704
    %v4766 = vunpack.c.h.b16 %v704
    %v4767 = vunpack.c.l.b16 %v705
    %v4768 = vunpack.c.h.b16 %v705
    %v4769 = vunpack.c.l.b16 %v706
    %v4770 = vunpack.c.h.b16 %v706
    %v4771 = vunpack.c.l.b16 %v707
    %v4772 = vunpack.c.h.b16 %v707
    %v4773 = vunpack.c.l.b16 %v708
    %v4774 = vunpack.c.h.b16 %v708
    %v4775 = vunpack.c.l.b16 %v709
    %v4776 = vunpack.c.h.b16 %v709
    %v4777 = vunpack.c.l.b16 %v710
    %v4778 = vunpack.c.h.b16 %v710
    %v4779 = vunpack.c.l.b16 %v711
    %v4780 = vunpack.c.h.b16 %v711
    %v4781 = vunpack.c.l.b16 %v712
    %v4782 = vunpack.c.h.b16 %v712
    %v4783 = vunpack.c.l.b16 %v713
    %v4784 = vunpack.c.h.b16 %v713
    %v4785 = vunpack.c.l.b16 %v714
    %v4786 = vunpack.c.h.b16 %v714
    %v4787 = vunpack.c.l.b16 %v715
    %v4788 = vunpack.c.h.b16 %v715
    %v4789 = vunpack.c.l.b16 %v716
    %v4790 = vunpack.c.h.b16 %v716
    %v4791 = vunpack.c.l.b16 %v717
    %v4792 = vunpack.c.h.b16 %v717
    %v4793 = vunpack.c.l.b16 %v718
    %v4794 = vunpack.c.h.b16 %v718
    %v4795 = vunpack.c.l.b16 %v719
    %v4796 = vunpack.c.h.b16 %v719
    %v4797 = vpack.c.b16 %v4611, %v4605
    %v4798 = vpack.c.b16 %v4612, %v4606
    %v4799 = vpack.c.b16 %v4613, %v4607
    %v4800 = vpack.c.b16 %v4614, %v4608
    %v4801 = vpack.c.b16 %v4615, %v4609
    %v4802 = vpack.c.b16 %v4616, %v4610
    %v4803 = vpack.c.b16 %v4623, %v4617
    %v4804 = vpack.c.b16 %v4624, %v4618
    %v4805 = vpack.c.b16 %v4625, %v4619
    %v4806 = vpack.c.b16 %v4626, %v4620
    %v4807 = vpack.c.b16 %v4627, %v4621
    %v4808 = vpack.c.b16 %v4628, %v4622
    %v4809 = vpack.c.b16 %v4635, %v4629
    %v4810 = vpack.c.b16 %v4636, %v4630
    %v4811 = vpack.c.b16 %v4637, %v4631
    %v4812 = vpack.c.b16 %v4638, %v4632
    %v4813 = vpack.c.b16 %v4639, %v4633
    %v4814 = vpack.c.b16 %v4640, %v4634
    %v4815 = vpack.c.b16 %v4647, %v4641
    %v4816 = vpack.c.b16 %v4648, %v4642
    %v4817 = vpack.c.b16 %v4649, %v4643
    %v4818 = vpack.c.b16 %v4650, %v4644
    %v4819 = vpack.c.b16 %v4651, %v4645
    %v4820 = vpack.c.b16 %v4652, %v4646
    %v4821 = vpack.c.b16 %v4659, %v4653
    %v4822 = vpack.c.b16 %v4660, %v4654
    %v4823 = vpack.c.b16 %v4661, %v4655
    %v4824 = vpack.c.b16 %v4662, %v4656
    %v4825 = vpack.c.b16 %v4663, %v4657
    %v4826 = vpack.c.b16 %v4664, %v4658
    %v4827 = vpack.c.b16 %v4671, %v4665
    %v4828 = vpack.c.b16 %v4672, %v4666
    %v4829 = vpack.c.b16 %v4673, %v4667
    %v4830 = vpack.c.b16 %v4674, %v4668
    %v4831 = vpack.c.b16 %v4675, %v4669
    %v4832 = vpack.c.b16 %v4676, %v4670
    %v4833 = vpack.c.b16 %v4683, %v4677
    %v4834 = vpack.c.b16 %v4684, %v4678
    %v4835 = vpack.c.b16 %v4685, %v4679
    %v4836 = vpack.c.b16 %v4686, %v4680
    %v4837 = vpack.c.b16 %v4687, %v4681
    %v4838 = vpack.c.b16 %v4688, %v4682
    %v4839 = vpack.c.b16 %v4695, %v4689
    %v4840 = vpack.c.b16 %v4696, %v4690
    %v4841 = vpack.c.b16 %v4697, %v4691
    %v4842 = vpack.c.b16 %v4698, %v4692
    %v4843 = vpack.c.b16 %v4699, %v4693
    %v4844 = vpack.c.b16 %v4700, %v4694
    %v4845 = vpack.c.b16 %v4707, %v4701
    %v4846 = vpack.c.b16 %v4708, %v4702
    %v4847 = vpack.c.b16 %v4709, %v4703
    %v4848 = vpack.c.b16 %v4710, %v4704
    %v4849 = vpack.c.b16 %v4711, %v4705
    %v4850 = vpack.c.b16 %v4712, %v4706
    %v4851 = vpack.c.b16 %v4719, %v4713
    %v4852 = vpack.c.b16 %v4720, %v4714
    %v4853 = vpack.c.b16 %v4721, %v4715
    %v4854 = vpack.c.b16 %v4722, %v4716
    %v4855 = vpack.c.b16 %v4723, %v4717
    %v4856 = vpack.c.b16 %v4724, %v4718
    %v4857 = vpack.c.b16 %v4731, %v4725
    %v4858 = vpack.c.b16 %v4732, %v4726
    %v4859 = vpack.c.b16 %v4733, %v4727
    %v4860 = vpack.c.b16 %v4734, %v4728
    %v4861 = vpack.c.b16 %v4735, %v4729
    %v4862 = vpack.c.b16 %v4736, %v4730
    %v4863 = vpack.c.b16 %v4743, %v4737
    %v4864 = vpack.c.b16 %v4744, %v4738
    %v4865 = vpack.c.b16 %v4745, %v4739
    %v4866 = vpack.c.b16 %v4746, %v4740
    %v4867 = vpack.c.b16 %v4747, %v4741
    %v4868 = vpack.c.b16 %v4748, %v4742
    %v4869 = vpack.c.b16 %v4755, %v4749
    %v4870 = vpack.c.b16 %v4756, %v4750
    %v4871 = vpack.c.b16 %v4757, %v4751
    %v4872 = vpack.c.b16 %v4758, %v4752
    %v4873 = vpack.c.b16 %v4759, %v4753
    %v4874 = vpack.c.b16 %v4760, %v4754
    %v4875 = vpack.c.b16 %v4767, %v4761
    %v4876 = vpack.c.b16 %v4768, %v4762
    %v4877 = vpack.c.b16 %v4769, %v4763
    %v4878 = vpack.c.b16 %v4770, %v4764
    %v4879 = vpack.c.b16 %v4771, %v4765
    %v4880 = vpack.c.b16 %v4772, %v4766
    %v4881 = vpack.c.b16 %v4779, %v4773
    %v4882 = vpack.c.b16 %v4780, %v4774
    %v4883 = vpack.c.b16 %v4781, %v4775
    %v4884 = vpack.c.b16 %v4782, %v4776
    %v4885 = vpack.c.b16 %v4783, %v4777
    %v4886 = vpack.c.b16 %v4784, %v4778
    %v4887 = vpack.c.b16 %v4791, %v4785
    %v4888 = vpack.c.b16 %v4792, %v4786
    %v4889 = vpack.c.b16 %v4793, %v4787
    %v4890 = vpack.c.b16 %v4794, %v4788
    %v4891 = vpack.c.b16 %v4795, %v4789
    %v4892 = vpack.c.b16 %v4796, %v4790
    %4989 = vmatprep.subr.bf16.mxu0 %v4798
    %4990 = vmatpush1.bf16.msra.mxu0 %v4797
    %4991 = vmatprep.subr.bf16.mxu0 %v4804
    %4992 = vmatpush1.bf16.msra.mxu0 %v4803
    %4993 = vmatprep.subr.bf16.mxu0 %v4810
    %4994 = vmatpush1.bf16.msra.mxu0 %v4809
    %4995 = vmatprep.subr.bf16.mxu0 %v4816
    %4996 = vmatpush1.bf16.msra.mxu0 %v4815
    %4997 = vmatprep.subr.bf16.mxu0 %v4822
    %4998 = vmatpush1.bf16.msra.mxu0 %v4821
    %4999 = vmatprep.subr.bf16.mxu0 %v4828
    %5000 = vmatpush1.bf16.msra.mxu0 %v4827
    %5001 = vmatprep.subr.bf16.mxu0 %v4834
    %5002 = vmatpush1.bf16.msra.mxu0 %v4833
    %5003 = vmatprep.subr.bf16.mxu0 %v4840
    %5004 = vmatpush1.bf16.msra.mxu0 %v4839
    %5005 = vmatprep.subr.bf16.mxu0 %v4846
    %5006 = vmatpush1.bf16.msra.mxu0 %v4845
    %5007 = vmatprep.subr.bf16.mxu0 %v4852
    %5008 = vmatpush1.bf16.msra.mxu0 %v4851
    %5009 = vmatprep.subr.bf16.mxu0 %v4858
    %5010 = vmatpush1.bf16.msra.mxu0 %v4857
    %5011 = vmatprep.subr.bf16.mxu0 %v4864
    %5012 = vmatpush1.bf16.msra.mxu0 %v4863
    %5013 = vmatprep.subr.bf16.mxu0 %v4870
    %5014 = vmatpush1.bf16.msra.mxu0 %v4869
    %5015 = vmatprep.subr.bf16.mxu0 %v4876
    %5016 = vmatpush1.bf16.msra.mxu0 %v4875
    %5017 = vmatprep.subr.bf16.mxu0 %v4882
    %5018 = vmatpush1.bf16.msra.mxu0 %v4881
    %5019 = vmatprep.subr.bf16.mxu0 %v4888
    %5020 = vmatpush1.bf16.msra.mxu0 %v4887
    %5021 = vmatprep.mubr.bf16.mxu0 %v4477
    %5022 = vmatmul.mubr.bf16.gmra.mrb[0].mxu0 %v4476
    %v5023 = vpop.f32.mrb[0].mxu0
    %v5024 = vadd.f32 %v4482, %v5023
    %v5025 = vpop.f32.mrb[0].mxu0
    %v5026 = vadd.f32 %v4486, %v5025
    %v5027 = vpop.f32.mrb[0].mxu0
    %v5028 = vpop.f32.mrb[0].mxu0
    %5029 = vdwg.mxu0
    %5030 = vmatprep.subr.bf16.mxu0 %v4800
    %5031 = vmatpush1.bf16.msra.mxu0 %v4799
    %5032 = vmatprep.subr.bf16.mxu0 %v4806
    %5033 = vmatpush1.bf16.msra.mxu0 %v4805
    %5034 = vmatprep.subr.bf16.mxu0 %v4812
    %5035 = vmatpush1.bf16.msra.mxu0 %v4811
    %5036 = vmatprep.subr.bf16.mxu0 %v4818
    %5037 = vmatpush1.bf16.msra.mxu0 %v4817
    %5038 = vmatprep.subr.bf16.mxu0 %v4824
    %5039 = vmatpush1.bf16.msra.mxu0 %v4823
    %5040 = vmatprep.subr.bf16.mxu0 %v4830
    %5041 = vmatpush1.bf16.msra.mxu0 %v4829
    %5042 = vmatprep.subr.bf16.mxu0 %v4836
    %5043 = vmatpush1.bf16.msra.mxu0 %v4835
    %5044 = vmatprep.subr.bf16.mxu0 %v4842
    %5045 = vmatpush1.bf16.msra.mxu0 %v4841
    %5046 = vmatprep.subr.bf16.mxu0 %v4848
    %5047 = vmatpush1.bf16.msra.mxu0 %v4847
    %5048 = vmatprep.subr.bf16.mxu0 %v4854
    %5049 = vmatpush1.bf16.msra.mxu0 %v4853
    %5050 = vmatprep.subr.bf16.mxu0 %v4860
    %5051 = vmatpush1.bf16.msra.mxu0 %v4859
    %5052 = vmatprep.subr.bf16.mxu0 %v4866
    %5053 = vmatpush1.bf16.msra.mxu0 %v4865
    %5054 = vmatprep.subr.bf16.mxu0 %v4872
    %5055 = vmatpush1.bf16.msra.mxu0 %v4871
    %5056 = vmatprep.subr.bf16.mxu0 %v4878
    %5057 = vmatpush1.bf16.msra.mxu0 %v4877
    %5058 = vmatprep.subr.bf16.mxu0 %v4884
    %5059 = vmatpush1.bf16.msra.mxu0 %v4883
    %5060 = vmatprep.subr.bf16.mxu0 %v4890
    %5061 = vmatpush1.bf16.msra.mxu0 %v4889
    %5062 = vmatprep.mubr.bf16.mxu0 %v4477
    %5063 = vmatmul.mubr.bf16.gmra.mrb[0].mxu0 %v4476
    %v5064 = vpop.f32.mrb[0].mxu0
    %v5065 = vadd.f32 %v4490, %v5064
    %v5066 = vpop.f32.mrb[0].mxu0
    %v5067 = vadd.f32 %v4494, %v5066
    %v5068 = vpop.f32.mrb[0].mxu0
    %v5069 = vpop.f32.mrb[0].mxu0
    %5070 = vdwg.mxu0
    %5071 = vmatprep.subr.bf16.mxu0 %v4802
    %5072 = vmatpush1.bf16.msra.mxu0 %v4801
    %5073 = vmatprep.subr.bf16.mxu0 %v4808
    %5074 = vmatpush1.bf16.msra.mxu0 %v4807
    %5075 = vmatprep.subr.bf16.mxu0 %v4814
    %5076 = vmatpush1.bf16.msra.mxu0 %v4813
    %5077 = vmatprep.subr.bf16.mxu0 %v4820
    %5078 = vmatpush1.bf16.msra.mxu0 %v4819
    %5079 = vmatprep.subr.bf16.mxu0 %v4826
    %5080 = vmatpush1.bf16.msra.mxu0 %v4825
    %5081 = vmatprep.subr.bf16.mxu0 %v4832
    %5082 = vmatpush1.bf16.msra.mxu0 %v4831
    %5083 = vmatprep.subr.bf16.mxu0 %v4838
    %5084 = vmatpush1.bf16.msra.mxu0 %v4837
    %5085 = vmatprep.subr.bf16.mxu0 %v4844
    %5086 = vmatpush1.bf16.msra.mxu0 %v4843
    %5087 = vmatprep.subr.bf16.mxu0 %v4850
    %5088 = vmatpush1.bf16.msra.mxu0 %v4849
    %5089 = vmatprep.subr.bf16.mxu0 %v4856
    %5090 = vmatpush1.bf16.msra.mxu0 %v4855
    %5091 = vmatprep.subr.bf16.mxu0 %v4862
    %5092 = vmatpush1.bf16.msra.mxu0 %v4861
    %5093 = vmatprep.subr.bf16.mxu0 %v4868
    %5094 = vmatpush1.bf16.msra.mxu0 %v4867
    %5095 = vmatprep.subr.bf16.mxu0 %v4874
    %5096 = vmatpush1.bf16.msra.mxu0 %v4873
    %5097 = vmatprep.subr.bf16.mxu0 %v4880
    %5098 = vmatpush1.bf16.msra.mxu0 %v4879
    %5099 = vmatprep.subr.bf16.mxu0 %v4886
    %5100 = vmatpush1.bf16.msra.mxu0 %v4885
    %5101 = vmatprep.subr.bf16.mxu0 %v4892
    %5102 = vmatpush1.bf16.msra.mxu0 %v4891
    %5103 = vmatprep.mubr.bf16.mxu0 %v4477
    %5104 = vmatmul.mubr.bf16.gmra.mrb[0].mxu0 %v4476
    %v5105 = vpop.f32.mrb[0].mxu0
    %v5106 = vadd.f32 %v4498, %v5105
    %v5107 = vpop.f32.mrb[0].mxu0
    %v5108 = vadd.f32 %v4502, %v5107
    %v5109 = vpop.f32.mrb[0].mxu0
    %v5110 = vpop.f32.mrb[0].mxu0
    %5111 = vdwg.mxu0
    %v5112 = vpack.c.bf16 %v4423, %v4423
    %v5113 = vpack.c.bf16 %v4424, %v4424
    %v5210 = vunpack.c.l.b16 %v720
    %v5211 = vunpack.c.h.b16 %v720
    %v5212 = vunpack.c.l.b16 %v721
    %v5213 = vunpack.c.h.b16 %v721
    %v5214 = vunpack.c.l.b16 %v722
    %v5215 = vunpack.c.h.b16 %v722
    %v5216 = vunpack.c.l.b16 %v723
    %v5217 = vunpack.c.h.b16 %v723
    %v5218 = vunpack.c.l.b16 %v724
    %v5219 = vunpack.c.h.b16 %v724
    %v5220 = vunpack.c.l.b16 %v725
    %v5221 = vunpack.c.h.b16 %v725
    %v5222 = vunpack.c.l.b16 %v726
    %v5223 = vunpack.c.h.b16 %v726
    %v5224 = vunpack.c.l.b16 %v727
    %v5225 = vunpack.c.h.b16 %v727
    %v5226 = vunpack.c.l.b16 %v728
    %v5227 = vunpack.c.h.b16 %v728
    %v5228 = vunpack.c.l.b16 %v729
    %v5229 = vunpack.c.h.b16 %v729
    %v5230 = vunpack.c.l.b16 %v730
    %v5231 = vunpack.c.h.b16 %v730
    %v5232 = vunpack.c.l.b16 %v731
    %v5233 = vunpack.c.h.b16 %v731
    %v5234 = vunpack.c.l.b16 %v732
    %v5235 = vunpack.c.h.b16 %v732
    %v5236 = vunpack.c.l.b16 %v733
    %v5237 = vunpack.c.h.b16 %v733
    %v5238 = vunpack.c.l.b16 %v734
    %v5239 = vunpack.c.h.b16 %v734
    %v5240 = vunpack.c.l.b16 %v735
    %v5241 = vunpack.c.h.b16 %v735
    %v5242 = vunpack.c.l.b16 %v736
    %v5243 = vunpack.c.h.b16 %v736
    %v5244 = vunpack.c.l.b16 %v737
    %v5245 = vunpack.c.h.b16 %v737
    %v5246 = vunpack.c.l.b16 %v738
    %v5247 = vunpack.c.h.b16 %v738
    %v5248 = vunpack.c.l.b16 %v739
    %v5249 = vunpack.c.h.b16 %v739
    %v5250 = vunpack.c.l.b16 %v740
    %v5251 = vunpack.c.h.b16 %v740
    %v5252 = vunpack.c.l.b16 %v741
    %v5253 = vunpack.c.h.b16 %v741
    %v5254 = vunpack.c.l.b16 %v742
    %v5255 = vunpack.c.h.b16 %v742
    %v5256 = vunpack.c.l.b16 %v743
    %v5257 = vunpack.c.h.b16 %v743
    %v5258 = vunpack.c.l.b16 %v744
    %v5259 = vunpack.c.h.b16 %v744
    %v5260 = vunpack.c.l.b16 %v745
    %v5261 = vunpack.c.h.b16 %v745
    %v5262 = vunpack.c.l.b16 %v746
    %v5263 = vunpack.c.h.b16 %v746
    %v5264 = vunpack.c.l.b16 %v747
    %v5265 = vunpack.c.h.b16 %v747
    %v5266 = vunpack.c.l.b16 %v748
    %v5267 = vunpack.c.h.b16 %v748
    %v5268 = vunpack.c.l.b16 %v749
    %v5269 = vunpack.c.h.b16 %v749
    %v5270 = vunpack.c.l.b16 %v750
    %v5271 = vunpack.c.h.b16 %v750
    %v5272 = vunpack.c.l.b16 %v751
    %v5273 = vunpack.c.h.b16 %v751
    %v5274 = vunpack.c.l.b16 %v752
    %v5275 = vunpack.c.h.b16 %v752
    %v5276 = vunpack.c.l.b16 %v753
    %v5277 = vunpack.c.h.b16 %v753
    %v5278 = vunpack.c.l.b16 %v754
    %v5279 = vunpack.c.h.b16 %v754
    %v5280 = vunpack.c.l.b16 %v755
    %v5281 = vunpack.c.h.b16 %v755
    %v5282 = vunpack.c.l.b16 %v756
    %v5283 = vunpack.c.h.b16 %v756
    %v5284 = vunpack.c.l.b16 %v757
    %v5285 = vunpack.c.h.b16 %v757
    %v5286 = vunpack.c.l.b16 %v758
    %v5287 = vunpack.c.h.b16 %v758
    %v5288 = vunpack.c.l.b16 %v759
    %v5289 = vunpack.c.h.b16 %v759
    %v5290 = vunpack.c.l.b16 %v760
    %v5291 = vunpack.c.h.b16 %v760
    %v5292 = vunpack.c.l.b16 %v761
    %v5293 = vunpack.c.h.b16 %v761
    %v5294 = vunpack.c.l.b16 %v762
    %v5295 = vunpack.c.h.b16 %v762
    %v5296 = vunpack.c.l.b16 %v763
    %v5297 = vunpack.c.h.b16 %v763
    %v5298 = vunpack.c.l.b16 %v764
    %v5299 = vunpack.c.h.b16 %v764
    %v5300 = vunpack.c.l.b16 %v765
    %v5301 = vunpack.c.h.b16 %v765
    %v5302 = vunpack.c.l.b16 %v766
    %v5303 = vunpack.c.h.b16 %v766
    %v5304 = vunpack.c.l.b16 %v767
    %v5305 = vunpack.c.h.b16 %v767
    %v5306 = vunpack.c.l.b16 %v768
    %v5307 = vunpack.c.h.b16 %v768
    %v5308 = vunpack.c.l.b16 %v769
    %v5309 = vunpack.c.h.b16 %v769
    %v5310 = vunpack.c.l.b16 %v770
    %v5311 = vunpack.c.h.b16 %v770
    %v5312 = vunpack.c.l.b16 %v771
    %v5313 = vunpack.c.h.b16 %v771
    %v5314 = vunpack.c.l.b16 %v772
    %v5315 = vunpack.c.h.b16 %v772
    %v5316 = vunpack.c.l.b16 %v773
    %v5317 = vunpack.c.h.b16 %v773
    %v5318 = vunpack.c.l.b16 %v774
    %v5319 = vunpack.c.h.b16 %v774
    %v5320 = vunpack.c.l.b16 %v775
    %v5321 = vunpack.c.h.b16 %v775
    %v5322 = vunpack.c.l.b16 %v776
    %v5323 = vunpack.c.h.b16 %v776
    %v5324 = vunpack.c.l.b16 %v777
    %v5325 = vunpack.c.h.b16 %v777
    %v5326 = vunpack.c.l.b16 %v778
    %v5327 = vunpack.c.h.b16 %v778
    %v5328 = vunpack.c.l.b16 %v779
    %v5329 = vunpack.c.h.b16 %v779
    %v5330 = vunpack.c.l.b16 %v780
    %v5331 = vunpack.c.h.b16 %v780
    %v5332 = vunpack.c.l.b16 %v781
    %v5333 = vunpack.c.h.b16 %v781
    %v5334 = vunpack.c.l.b16 %v782
    %v5335 = vunpack.c.h.b16 %v782
    %v5336 = vunpack.c.l.b16 %v783
    %v5337 = vunpack.c.h.b16 %v783
    %v5338 = vunpack.c.l.b16 %v784
    %v5339 = vunpack.c.h.b16 %v784
    %v5340 = vunpack.c.l.b16 %v785
    %v5341 = vunpack.c.h.b16 %v785
    %v5342 = vunpack.c.l.b16 %v786
    %v5343 = vunpack.c.h.b16 %v786
    %v5344 = vunpack.c.l.b16 %v787
    %v5345 = vunpack.c.h.b16 %v787
    %v5346 = vunpack.c.l.b16 %v788
    %v5347 = vunpack.c.h.b16 %v788
    %v5348 = vunpack.c.l.b16 %v789
    %v5349 = vunpack.c.h.b16 %v789
    %v5350 = vunpack.c.l.b16 %v790
    %v5351 = vunpack.c.h.b16 %v790
    %v5352 = vunpack.c.l.b16 %v791
    %v5353 = vunpack.c.h.b16 %v791
    %v5354 = vunpack.c.l.b16 %v792
    %v5355 = vunpack.c.h.b16 %v792
    %v5356 = vunpack.c.l.b16 %v793
    %v5357 = vunpack.c.h.b16 %v793
    %v5358 = vunpack.c.l.b16 %v794
    %v5359 = vunpack.c.h.b16 %v794
    %v5360 = vunpack.c.l.b16 %v795
    %v5361 = vunpack.c.h.b16 %v795
    %v5362 = vunpack.c.l.b16 %v796
    %v5363 = vunpack.c.h.b16 %v796
    %v5364 = vunpack.c.l.b16 %v797
    %v5365 = vunpack.c.h.b16 %v797
    %v5366 = vunpack.c.l.b16 %v798
    %v5367 = vunpack.c.h.b16 %v798
    %v5368 = vunpack.c.l.b16 %v799
    %v5369 = vunpack.c.h.b16 %v799
    %v5370 = vunpack.c.l.b16 %v800
    %v5371 = vunpack.c.h.b16 %v800
    %v5372 = vunpack.c.l.b16 %v801
    %v5373 = vunpack.c.h.b16 %v801
    %v5374 = vunpack.c.l.b16 %v802
    %v5375 = vunpack.c.h.b16 %v802
    %v5376 = vunpack.c.l.b16 %v803
    %v5377 = vunpack.c.h.b16 %v803
    %v5378 = vunpack.c.l.b16 %v804
    %v5379 = vunpack.c.h.b16 %v804
    %v5380 = vunpack.c.l.b16 %v805
    %v5381 = vunpack.c.h.b16 %v805
    %v5382 = vunpack.c.l.b16 %v806
    %v5383 = vunpack.c.h.b16 %v806
    %v5384 = vunpack.c.l.b16 %v807
    %v5385 = vunpack.c.h.b16 %v807
    %v5386 = vunpack.c.l.b16 %v808
    %v5387 = vunpack.c.h.b16 %v808
    %v5388 = vunpack.c.l.b16 %v809
    %v5389 = vunpack.c.h.b16 %v809
    %v5390 = vunpack.c.l.b16 %v810
    %v5391 = vunpack.c.h.b16 %v810
    %v5392 = vunpack.c.l.b16 %v811
    %v5393 = vunpack.c.h.b16 %v811
    %v5394 = vunpack.c.l.b16 %v812
    %v5395 = vunpack.c.h.b16 %v812
    %v5396 = vunpack.c.l.b16 %v813
    %v5397 = vunpack.c.h.b16 %v813
    %v5398 = vunpack.c.l.b16 %v814
    %v5399 = vunpack.c.h.b16 %v814
    %v5400 = vunpack.c.l.b16 %v815
    %v5401 = vunpack.c.h.b16 %v815
    %v5402 = vpack.c.b16 %v5216, %v5210
    %v5403 = vpack.c.b16 %v5217, %v5211
    %v5404 = vpack.c.b16 %v5218, %v5212
    %v5405 = vpack.c.b16 %v5219, %v5213
    %v5406 = vpack.c.b16 %v5220, %v5214
    %v5407 = vpack.c.b16 %v5221, %v5215
    %v5408 = vpack.c.b16 %v5228, %v5222
    %v5409 = vpack.c.b16 %v5229, %v5223
    %v5410 = vpack.c.b16 %v5230, %v5224
    %v5411 = vpack.c.b16 %v5231, %v5225
    %v5412 = vpack.c.b16 %v5232, %v5226
    %v5413 = vpack.c.b16 %v5233, %v5227
    %v5414 = vpack.c.b16 %v5240, %v5234
    %v5415 = vpack.c.b16 %v5241, %v5235
    %v5416 = vpack.c.b16 %v5242, %v5236
    %v5417 = vpack.c.b16 %v5243, %v5237
    %v5418 = vpack.c.b16 %v5244, %v5238
    %v5419 = vpack.c.b16 %v5245, %v5239
    %v5420 = vpack.c.b16 %v5252, %v5246
    %v5421 = vpack.c.b16 %v5253, %v5247
    %v5422 = vpack.c.b16 %v5254, %v5248
    %v5423 = vpack.c.b16 %v5255, %v5249
    %v5424 = vpack.c.b16 %v5256, %v5250
    %v5425 = vpack.c.b16 %v5257, %v5251
    %v5426 = vpack.c.b16 %v5264, %v5258
    %v5427 = vpack.c.b16 %v5265, %v5259
    %v5428 = vpack.c.b16 %v5266, %v5260
    %v5429 = vpack.c.b16 %v5267, %v5261
    %v5430 = vpack.c.b16 %v5268, %v5262
    %v5431 = vpack.c.b16 %v5269, %v5263
    %v5432 = vpack.c.b16 %v5276, %v5270
    %v5433 = vpack.c.b16 %v5277, %v5271
    %v5434 = vpack.c.b16 %v5278, %v5272
    %v5435 = vpack.c.b16 %v5279, %v5273
    %v5436 = vpack.c.b16 %v5280, %v5274
    %v5437 = vpack.c.b16 %v5281, %v5275
    %v5438 = vpack.c.b16 %v5288, %v5282
    %v5439 = vpack.c.b16 %v5289, %v5283
    %v5440 = vpack.c.b16 %v5290, %v5284
    %v5441 = vpack.c.b16 %v5291, %v5285
    %v5442 = vpack.c.b16 %v5292, %v5286
    %v5443 = vpack.c.b16 %v5293, %v5287
    %v5444 = vpack.c.b16 %v5300, %v5294
    %v5445 = vpack.c.b16 %v5301, %v5295
    %v5446 = vpack.c.b16 %v5302, %v5296
    %v5447 = vpack.c.b16 %v5303, %v5297
    %v5448 = vpack.c.b16 %v5304, %v5298
    %v5449 = vpack.c.b16 %v5305, %v5299
    %v5450 = vpack.c.b16 %v5312, %v5306
    %v5451 = vpack.c.b16 %v5313, %v5307
    %v5452 = vpack.c.b16 %v5314, %v5308
    %v5453 = vpack.c.b16 %v5315, %v5309
    %v5454 = vpack.c.b16 %v5316, %v5310
    %v5455 = vpack.c.b16 %v5317, %v5311
    %v5456 = vpack.c.b16 %v5324, %v5318
    %v5457 = vpack.c.b16 %v5325, %v5319
    %v5458 = vpack.c.b16 %v5326, %v5320
    %v5459 = vpack.c.b16 %v5327, %v5321
    %v5460 = vpack.c.b16 %v5328, %v5322
    %v5461 = vpack.c.b16 %v5329, %v5323
    %v5462 = vpack.c.b16 %v5336, %v5330
    %v5463 = vpack.c.b16 %v5337, %v5331
    %v5464 = vpack.c.b16 %v5338, %v5332
    %v5465 = vpack.c.b16 %v5339, %v5333
    %v5466 = vpack.c.b16 %v5340, %v5334
    %v5467 = vpack.c.b16 %v5341, %v5335
    %v5468 = vpack.c.b16 %v5348, %v5342
    %v5469 = vpack.c.b16 %v5349, %v5343
    %v5470 = vpack.c.b16 %v5350, %v5344
    %v5471 = vpack.c.b16 %v5351, %v5345
    %v5472 = vpack.c.b16 %v5352, %v5346
    %v5473 = vpack.c.b16 %v5353, %v5347
    %v5474 = vpack.c.b16 %v5360, %v5354
    %v5475 = vpack.c.b16 %v5361, %v5355
    %v5476 = vpack.c.b16 %v5362, %v5356
    %v5477 = vpack.c.b16 %v5363, %v5357
    %v5478 = vpack.c.b16 %v5364, %v5358
    %v5479 = vpack.c.b16 %v5365, %v5359
    %v5480 = vpack.c.b16 %v5372, %v5366
    %v5481 = vpack.c.b16 %v5373, %v5367
    %v5482 = vpack.c.b16 %v5374, %v5368
    %v5483 = vpack.c.b16 %v5375, %v5369
    %v5484 = vpack.c.b16 %v5376, %v5370
    %v5485 = vpack.c.b16 %v5377, %v5371
    %v5486 = vpack.c.b16 %v5384, %v5378
    %v5487 = vpack.c.b16 %v5385, %v5379
    %v5488 = vpack.c.b16 %v5386, %v5380
    %v5489 = vpack.c.b16 %v5387, %v5381
    %v5490 = vpack.c.b16 %v5388, %v5382
    %v5491 = vpack.c.b16 %v5389, %v5383
    %v5492 = vpack.c.b16 %v5396, %v5390
    %v5493 = vpack.c.b16 %v5397, %v5391
    %v5494 = vpack.c.b16 %v5398, %v5392
    %v5495 = vpack.c.b16 %v5399, %v5393
    %v5496 = vpack.c.b16 %v5400, %v5394
    %v5497 = vpack.c.b16 %v5401, %v5395
    %v5595 = vlaneseq
    %v5596 = vshrl.u32 %v5595, 7
    %v5597 = vsub.s32 0, %v5596
    %v5598 = vrot.slane %v855, %v5597
    %v5599 = vlaneseq
    %v5600 = vshrl.u32 %v5599, 7
    %v5601 = vsub.s32 1, %v5600
    %v5602 = vrot.slane %v855, %v5601
    %v5603 = vlaneseq
    %v5604 = vshrl.u32 %v5603, 7
    %v5605 = vsub.s32 2, %v5604
    %v5606 = vrot.slane %v855, %v5605
    %v5607 = vlaneseq
    %v5608 = vshrl.u32 %v5607, 7
    %v5609 = vsub.s32 3, %v5608
    %v5610 = vrot.slane %v855, %v5609
    %v5611 = vlaneseq
    %v5612 = vshrl.u32 %v5611, 7
    %v5613 = vsub.s32 4, %v5612
    %v5614 = vrot.slane %v855, %v5613
    %v5615 = vlaneseq
    %v5616 = vshrl.u32 %v5615, 7
    %v5617 = vsub.s32 5, %v5616
    %v5618 = vrot.slane %v855, %v5617
    %5625 = vmatprep.subr.bf16.mxu0 %v5403
    %5626 = vmatpush1.bf16.msra.mxu0 %v5402
    %5627 = vmatprep.subr.bf16.mxu0 %v5409
    %5628 = vmatpush1.bf16.msra.mxu0 %v5408
    %5629 = vmatprep.subr.bf16.mxu0 %v5415
    %5630 = vmatpush1.bf16.msra.mxu0 %v5414
    %5631 = vmatprep.subr.bf16.mxu0 %v5421
    %5632 = vmatpush1.bf16.msra.mxu0 %v5420
    %5633 = vmatprep.subr.bf16.mxu0 %v5427
    %5634 = vmatpush1.bf16.msra.mxu0 %v5426
    %5635 = vmatprep.subr.bf16.mxu0 %v5433
    %5636 = vmatpush1.bf16.msra.mxu0 %v5432
    %5637 = vmatprep.subr.bf16.mxu0 %v5439
    %5638 = vmatpush1.bf16.msra.mxu0 %v5438
    %5639 = vmatprep.subr.bf16.mxu0 %v5445
    %5640 = vmatpush1.bf16.msra.mxu0 %v5444
    %5641 = vmatprep.subr.bf16.mxu0 %v5451
    %5642 = vmatpush1.bf16.msra.mxu0 %v5450
    %5643 = vmatprep.subr.bf16.mxu0 %v5457
    %5644 = vmatpush1.bf16.msra.mxu0 %v5456
    %5645 = vmatprep.subr.bf16.mxu0 %v5463
    %5646 = vmatpush1.bf16.msra.mxu0 %v5462
    %5647 = vmatprep.subr.bf16.mxu0 %v5469
    %5648 = vmatpush1.bf16.msra.mxu0 %v5468
    %5649 = vmatprep.subr.bf16.mxu0 %v5475
    %5650 = vmatpush1.bf16.msra.mxu0 %v5474
    %5651 = vmatprep.subr.bf16.mxu0 %v5481
    %5652 = vmatpush1.bf16.msra.mxu0 %v5480
    %5653 = vmatprep.subr.bf16.mxu0 %v5487
    %5654 = vmatpush1.bf16.msra.mxu0 %v5486
    %5655 = vmatprep.subr.bf16.mxu0 %v5493
    %5656 = vmatpush1.bf16.msra.mxu0 %v5492
    %5657 = vmatprep.mubr.bf16.mxu0 %v5113
    %5658 = vmatmul.mubr.bf16.gmra.mrb[0].mxu0 %v5112
    %v5659 = vpop.f32.mrb[0].mxu0
    %v5660 = vadd.f32 %v5598, %v5659
    %v5661 = vpop.f32.mrb[0].mxu0
    %v5662 = vadd.f32 %v5602, %v5661
    %v5663 = vpop.f32.mrb[0].mxu0
    %v5664 = vpop.f32.mrb[0].mxu0
    %5665 = vdwg.mxu0
    %5666 = vmatprep.subr.bf16.mxu0 %v5405
    %5667 = vmatpush1.bf16.msra.mxu0 %v5404
    %5668 = vmatprep.subr.bf16.mxu0 %v5411
    %5669 = vmatpush1.bf16.msra.mxu0 %v5410
    %5670 = vmatprep.subr.bf16.mxu0 %v5417
    %5671 = vmatpush1.bf16.msra.mxu0 %v5416
    %5672 = vmatprep.subr.bf16.mxu0 %v5423
    %5673 = vmatpush1.bf16.msra.mxu0 %v5422
    %5674 = vmatprep.subr.bf16.mxu0 %v5429
    %5675 = vmatpush1.bf16.msra.mxu0 %v5428
    %5676 = vmatprep.subr.bf16.mxu0 %v5435
    %5677 = vmatpush1.bf16.msra.mxu0 %v5434
    %5678 = vmatprep.subr.bf16.mxu0 %v5441
    %5679 = vmatpush1.bf16.msra.mxu0 %v5440
    %5680 = vmatprep.subr.bf16.mxu0 %v5447
    %5681 = vmatpush1.bf16.msra.mxu0 %v5446
    %5682 = vmatprep.subr.bf16.mxu0 %v5453
    %5683 = vmatpush1.bf16.msra.mxu0 %v5452
    %5684 = vmatprep.subr.bf16.mxu0 %v5459
    %5685 = vmatpush1.bf16.msra.mxu0 %v5458
    %5686 = vmatprep.subr.bf16.mxu0 %v5465
    %5687 = vmatpush1.bf16.msra.mxu0 %v5464
    %5688 = vmatprep.subr.bf16.mxu0 %v5471
    %5689 = vmatpush1.bf16.msra.mxu0 %v5470
    %5690 = vmatprep.subr.bf16.mxu0 %v5477
    %5691 = vmatpush1.bf16.msra.mxu0 %v5476
    %5692 = vmatprep.subr.bf16.mxu0 %v5483
    %5693 = vmatpush1.bf16.msra.mxu0 %v5482
    %5694 = vmatprep.subr.bf16.mxu0 %v5489
    %5695 = vmatpush1.bf16.msra.mxu0 %v5488
    %5696 = vmatprep.subr.bf16.mxu0 %v5495
    %5697 = vmatpush1.bf16.msra.mxu0 %v5494
    %5698 = vmatprep.mubr.bf16.mxu0 %v5113
    %5699 = vmatmul.mubr.bf16.gmra.mrb[0].mxu0 %v5112
    %v5700 = vpop.f32.mrb[0].mxu0
    %v5701 = vadd.f32 %v5606, %v5700
    %v5702 = vpop.f32.mrb[0].mxu0
    %v5703 = vadd.f32 %v5610, %v5702
    %v5704 = vpop.f32.mrb[0].mxu0
    %v5705 = vpop.f32.mrb[0].mxu0
    %5706 = vdwg.mxu0
    %5707 = vmatprep.subr.bf16.mxu0 %v5407
    %5708 = vmatpush1.bf16.msra.mxu0 %v5406
    %5709 = vmatprep.subr.bf16.mxu0 %v5413
    %5710 = vmatpush1.bf16.msra.mxu0 %v5412
    %5711 = vmatprep.subr.bf16.mxu0 %v5419
    %5712 = vmatpush1.bf16.msra.mxu0 %v5418
    %5713 = vmatprep.subr.bf16.mxu0 %v5425
    %5714 = vmatpush1.bf16.msra.mxu0 %v5424
    %5715 = vmatprep.subr.bf16.mxu0 %v5431
    %5716 = vmatpush1.bf16.msra.mxu0 %v5430
    %5717 = vmatprep.subr.bf16.mxu0 %v5437
    %5718 = vmatpush1.bf16.msra.mxu0 %v5436
    %5719 = vmatprep.subr.bf16.mxu0 %v5443
    %5720 = vmatpush1.bf16.msra.mxu0 %v5442
    %5721 = vmatprep.subr.bf16.mxu0 %v5449
    %5722 = vmatpush1.bf16.msra.mxu0 %v5448
    %5723 = vmatprep.subr.bf16.mxu0 %v5455
    %5724 = vmatpush1.bf16.msra.mxu0 %v5454
    %5725 = vmatprep.subr.bf16.mxu0 %v5461
    %5726 = vmatpush1.bf16.msra.mxu0 %v5460
    %5727 = vmatprep.subr.bf16.mxu0 %v5467
    %5728 = vmatpush1.bf16.msra.mxu0 %v5466
    %5729 = vmatprep.subr.bf16.mxu0 %v5473
    %5730 = vmatpush1.bf16.msra.mxu0 %v5472
    %5731 = vmatprep.subr.bf16.mxu0 %v5479
    %5732 = vmatpush1.bf16.msra.mxu0 %v5478
    %5733 = vmatprep.subr.bf16.mxu0 %v5485
    %5734 = vmatpush1.bf16.msra.mxu0 %v5484
    %5735 = vmatprep.subr.bf16.mxu0 %v5491
    %5736 = vmatpush1.bf16.msra.mxu0 %v5490
    %5737 = vmatprep.subr.bf16.mxu0 %v5497
    %5738 = vmatpush1.bf16.msra.mxu0 %v5496
    %5739 = vmatprep.mubr.bf16.mxu0 %v5113
    %5740 = vmatmul.mubr.bf16.gmra.mrb[0].mxu0 %v5112
    %v5741 = vpop.f32.mrb[0].mxu0
    %v5742 = vadd.f32 %v5614, %v5741
    %v5743 = vpop.f32.mrb[0].mxu0
    %v5744 = vadd.f32 %v5618, %v5743
    %v5745 = vpop.f32.mrb[0].mxu0
    %v5746 = vpop.f32.mrb[0].mxu0
    %5747 = vdwg.mxu0
    %v5748 = vadd.f32 %v5024, %v5660
    %v5749 = vadd.f32 %v5026, %v5662
    %v5750 = vsub.f32 0.0, %v5748
    %v5751 = vsub.f32 0.0, %v5749
    %v5752 = vmul.f32 %v5750, 1.442695
    %v5753 = vpow.pop %v5752
    %v5754 = vmul.f32 %v5751, 1.442695
    %v5755 = vpow.pop %v5754
    %v5756 = vadd.f32 %v5753, 1.0
    %v5757 = vadd.f32 %v5755, 1.0
    %v5758 = vrcp.pop %v5756
    %v5759 = vmul.f32 1.0, %v5758
    %v5760 = vrcp.pop %v5757
    %v5761 = vmul.f32 1.0, %v5760
    %v5762 = vadd.f32 %v5065, %v5701
    %v5763 = vadd.f32 %v5067, %v5703
    %v5764 = vsub.f32 0.0, %v5762
    %v5765 = vsub.f32 0.0, %v5763
    %v5766 = vmul.f32 %v5764, 1.442695
    %v5767 = vpow.pop %v5766
    %v5768 = vmul.f32 %v5765, 1.442695
    %v5769 = vpow.pop %v5768
    %v5770 = vadd.f32 %v5767, 1.0
    %v5771 = vadd.f32 %v5769, 1.0
    %v5772 = vrcp.pop %v5770
    %v5773 = vmul.f32 1.0, %v5772
    %v5774 = vrcp.pop %v5771
    %v5775 = vmul.f32 1.0, %v5774
    %v5776 = vmul.f32 %v5759, %v5742
    %v5777 = vmul.f32 %v5761, %v5744
    %v5778 = vadd.f32 %v5106, %v5776
    %v5779 = vadd.f32 %v5108, %v5777
    %v5780 = vtanh.pop %v5778
    %v5781 = vtanh.pop %v5779
    %v5782 = vsub.f32 1.0, %v5773
    %v5783 = vsub.f32 1.0, %v5775
    %v5784 = vmul.f32 %v5782, %v5780
    %v5785 = vmul.f32 %v5783, %v5781
    %v5786 = vmul.f32 %v5773, %v4423
    %v5787 = vmul.f32 %v5775, %v4424
    %v5788 = vadd.f32 %v5784, %v5786
    %v5789 = vadd.f32 %v5785, %v5787
    %v5790 = vpack.c.bf16 %v5788, %v5788
    %v5791 = vpack.c.bf16 %v5789, %v5789
    %5792 = vmatprep.subr.bf16.mxu0 %v5403
    %5793 = vmatpush1.bf16.msra.mxu0 %v5402
    %5794 = vmatprep.subr.bf16.mxu0 %v5409
    %5795 = vmatpush1.bf16.msra.mxu0 %v5408
    %5796 = vmatprep.subr.bf16.mxu0 %v5415
    %5797 = vmatpush1.bf16.msra.mxu0 %v5414
    %5798 = vmatprep.subr.bf16.mxu0 %v5421
    %5799 = vmatpush1.bf16.msra.mxu0 %v5420
    %5800 = vmatprep.subr.bf16.mxu0 %v5427
    %5801 = vmatpush1.bf16.msra.mxu0 %v5426
    %5802 = vmatprep.subr.bf16.mxu0 %v5433
    %5803 = vmatpush1.bf16.msra.mxu0 %v5432
    %5804 = vmatprep.subr.bf16.mxu0 %v5439
    %5805 = vmatpush1.bf16.msra.mxu0 %v5438
    %5806 = vmatprep.subr.bf16.mxu0 %v5445
    %5807 = vmatpush1.bf16.msra.mxu0 %v5444
    %5808 = vmatprep.subr.bf16.mxu0 %v5451
    %5809 = vmatpush1.bf16.msra.mxu0 %v5450
    %5810 = vmatprep.subr.bf16.mxu0 %v5457
    %5811 = vmatpush1.bf16.msra.mxu0 %v5456
    %5812 = vmatprep.subr.bf16.mxu0 %v5463
    %5813 = vmatpush1.bf16.msra.mxu0 %v5462
    %5814 = vmatprep.subr.bf16.mxu0 %v5469
    %5815 = vmatpush1.bf16.msra.mxu0 %v5468
    %5816 = vmatprep.subr.bf16.mxu0 %v5475
    %5817 = vmatpush1.bf16.msra.mxu0 %v5474
    %5818 = vmatprep.subr.bf16.mxu0 %v5481
    %5819 = vmatpush1.bf16.msra.mxu0 %v5480
    %5820 = vmatprep.subr.bf16.mxu0 %v5487
    %5821 = vmatpush1.bf16.msra.mxu0 %v5486
    %5822 = vmatprep.subr.bf16.mxu0 %v5493
    %5823 = vmatpush1.bf16.msra.mxu0 %v5492
    %5824 = vmatprep.mubr.bf16.mxu0 %v5791
    %5825 = vmatmul.mubr.bf16.gmra.mrb[0].mxu0 %v5790
    %v5826 = vpop.f32.mrb[0].mxu0
    %v5827 = vadd.f32 %v5598, %v5826
    %v5828 = vpop.f32.mrb[0].mxu0
    %v5829 = vadd.f32 %v5602, %v5828
    %v5830 = vpop.f32.mrb[0].mxu0
    %v5831 = vpop.f32.mrb[0].mxu0
    %5832 = vdwg.mxu0
    %5833 = vmatprep.subr.bf16.mxu0 %v5405
    %5834 = vmatpush1.bf16.msra.mxu0 %v5404
    %5835 = vmatprep.subr.bf16.mxu0 %v5411
    %5836 = vmatpush1.bf16.msra.mxu0 %v5410
    %5837 = vmatprep.subr.bf16.mxu0 %v5417
    %5838 = vmatpush1.bf16.msra.mxu0 %v5416
    %5839 = vmatprep.subr.bf16.mxu0 %v5423
    %5840 = vmatpush1.bf16.msra.mxu0 %v5422
    %5841 = vmatprep.subr.bf16.mxu0 %v5429
    %5842 = vmatpush1.bf16.msra.mxu0 %v5428
    %5843 = vmatprep.subr.bf16.mxu0 %v5435
    %5844 = vmatpush1.bf16.msra.mxu0 %v5434
    %5845 = vmatprep.subr.bf16.mxu0 %v5441
    %5846 = vmatpush1.bf16.msra.mxu0 %v5440
    %5847 = vmatprep.subr.bf16.mxu0 %v5447
    %5848 = vmatpush1.bf16.msra.mxu0 %v5446
    %5849 = vmatprep.subr.bf16.mxu0 %v5453
    %5850 = vmatpush1.bf16.msra.mxu0 %v5452
    %5851 = vmatprep.subr.bf16.mxu0 %v5459
    %5852 = vmatpush1.bf16.msra.mxu0 %v5458
    %5853 = vmatprep.subr.bf16.mxu0 %v5465
    %5854 = vmatpush1.bf16.msra.mxu0 %v5464
    %5855 = vmatprep.subr.bf16.mxu0 %v5471
    %5856 = vmatpush1.bf16.msra.mxu0 %v5470
    %5857 = vmatprep.subr.bf16.mxu0 %v5477
    %5858 = vmatpush1.bf16.msra.mxu0 %v5476
    %5859 = vmatprep.subr.bf16.mxu0 %v5483
    %5860 = vmatpush1.bf16.msra.mxu0 %v5482
    %5861 = vmatprep.subr.bf16.mxu0 %v5489
    %5862 = vmatpush1.bf16.msra.mxu0 %v5488
    %5863 = vmatprep.subr.bf16.mxu0 %v5495
    %5864 = vmatpush1.bf16.msra.mxu0 %v5494
    %5865 = vmatprep.mubr.bf16.mxu0 %v5791
    %5866 = vmatmul.mubr.bf16.gmra.mrb[0].mxu0 %v5790
    %v5867 = vpop.f32.mrb[0].mxu0
    %v5868 = vadd.f32 %v5606, %v5867
    %v5869 = vpop.f32.mrb[0].mxu0
    %v5870 = vadd.f32 %v5610, %v5869
    %v5871 = vpop.f32.mrb[0].mxu0
    %v5872 = vpop.f32.mrb[0].mxu0
    %5873 = vdwg.mxu0
    %5874 = vmatprep.subr.bf16.mxu0 %v5407
    %5875 = vmatpush1.bf16.msra.mxu0 %v5406
    %5876 = vmatprep.subr.bf16.mxu0 %v5413
    %5877 = vmatpush1.bf16.msra.mxu0 %v5412
    %5878 = vmatprep.subr.bf16.mxu0 %v5419
    %5879 = vmatpush1.bf16.msra.mxu0 %v5418
    %5880 = vmatprep.subr.bf16.mxu0 %v5425
    %5881 = vmatpush1.bf16.msra.mxu0 %v5424
    %5882 = vmatprep.subr.bf16.mxu0 %v5431
    %5883 = vmatpush1.bf16.msra.mxu0 %v5430
    %5884 = vmatprep.subr.bf16.mxu0 %v5437
    %5885 = vmatpush1.bf16.msra.mxu0 %v5436
    %5886 = vmatprep.subr.bf16.mxu0 %v5443
    %5887 = vmatpush1.bf16.msra.mxu0 %v5442
    %5888 = vmatprep.subr.bf16.mxu0 %v5449
    %5889 = vmatpush1.bf16.msra.mxu0 %v5448
    %5890 = vmatprep.subr.bf16.mxu0 %v5455
    %5891 = vmatpush1.bf16.msra.mxu0 %v5454
    %5892 = vmatprep.subr.bf16.mxu0 %v5461
    %5893 = vmatpush1.bf16.msra.mxu0 %v5460
    %5894 = vmatprep.subr.bf16.mxu0 %v5467
    %5895 = vmatpush1.bf16.msra.mxu0 %v5466
    %5896 = vmatprep.subr.bf16.mxu0 %v5473
    %5897 = vmatpush1.bf16.msra.mxu0 %v5472
    %5898 = vmatprep.subr.bf16.mxu0 %v5479
    %5899 = vmatpush1.bf16.msra.mxu0 %v5478
    %5900 = vmatprep.subr.bf16.mxu0 %v5485
    %5901 = vmatpush1.bf16.msra.mxu0 %v5484
    %5902 = vmatprep.subr.bf16.mxu0 %v5491
    %5903 = vmatpush1.bf16.msra.mxu0 %v5490
    %5904 = vmatprep.subr.bf16.mxu0 %v5497
    %5905 = vmatpush1.bf16.msra.mxu0 %v5496
    %5906 = vmatprep.mubr.bf16.mxu0 %v5791
    %5907 = vmatmul.mubr.bf16.gmra.mrb[0].mxu0 %v5790
    %v5908 = vpop.f32.mrb[0].mxu0
    %v5909 = vadd.f32 %v5614, %v5908
    %v5910 = vpop.f32.mrb[0].mxu0
    %v5911 = vadd.f32 %v5618, %v5910
    %v5912 = vpop.f32.mrb[0].mxu0
    %v5913 = vpop.f32.mrb[0].mxu0
    %5914 = vdwg.mxu0
    %v5917 = vrot.slane %v5827, 7
    %v5918 = vrot.slane %v5829, 7
    %v5921 = vadd.f32 %v5024, %v5917
    %v5922 = vadd.f32 %v5026, %v5918
    %v5923 = vsub.f32 0.0, %v5921
    %v5924 = vsub.f32 0.0, %v5922
    %v5925 = vmul.f32 %v5923, 1.442695
    %v5926 = vpow.pop %v5925
    %v5927 = vmul.f32 %v5924, 1.442695
    %v5928 = vpow.pop %v5927
    %v5929 = vadd.f32 %v5926, 1.0
    %v5930 = vadd.f32 %v5928, 1.0
    %v5931 = vrcp.pop %v5929
    %v5932 = vmul.f32 1.0, %v5931
    %v5933 = vrcp.pop %v5930
    %v5934 = vmul.f32 1.0, %v5933
    %v5937 = vrot.slane %v5868, 7
    %v5938 = vrot.slane %v5870, 7
    %v5941 = vadd.f32 %v5065, %v5937
    %v5942 = vadd.f32 %v5067, %v5938
    %v5943 = vsub.f32 0.0, %v5941
    %v5944 = vsub.f32 0.0, %v5942
    %v5945 = vmul.f32 %v5943, 1.442695
    %v5946 = vpow.pop %v5945
    %v5947 = vmul.f32 %v5944, 1.442695
    %v5948 = vpow.pop %v5947
    %v5949 = vadd.f32 %v5946, 1.0
    %v5950 = vadd.f32 %v5948, 1.0
    %v5951 = vrcp.pop %v5949
    %v5952 = vmul.f32 1.0, %v5951
    %v5953 = vrcp.pop %v5950
    %v5954 = vmul.f32 1.0, %v5953
    %v5957 = vrot.slane %v5909, 7
    %v5958 = vrot.slane %v5911, 7
    %v5961 = vmul.f32 %v5932, %v5957
    %v5962 = vmul.f32 %v5934, %v5958
    %v5963 = vadd.f32 %v5106, %v5961
    %v5964 = vadd.f32 %v5108, %v5962
    %v5965 = vtanh.pop %v5963
    %v5966 = vtanh.pop %v5964
    %v5967 = vsub.f32 1.0, %v5952
    %v5968 = vsub.f32 1.0, %v5954
    %v5969 = vmul.f32 %v5967, %v5965
    %v5970 = vmul.f32 %v5968, %v5966
    %v5973 = vrot.slane %v5788, 7
    %v5974 = vrot.slane %v5789, 7
    %v5977 = vmul.f32 %v5952, %v5973
    %v5978 = vmul.f32 %v5954, %v5974
    %v5979 = vadd.f32 %v5969, %v5977
    %v5980 = vadd.f32 %v5970, %v5978
    %v6013 = vunpack.c.l.b16 %v816
    %v6014 = vunpack.c.l.b16 %v817
    %v6015 = vunpack.c.l.b16 %v818
    %v6016 = vunpack.c.l.b16 %v819
    %v6017 = vunpack.c.l.b16 %v820
    %v6018 = vunpack.c.l.b16 %v821
    %v6019 = vunpack.c.l.b16 %v822
    %v6020 = vunpack.c.l.b16 %v823
    %v6021 = vunpack.c.l.b16 %v824
    %v6022 = vunpack.c.l.b16 %v825
    %v6023 = vunpack.c.l.b16 %v826
    %v6024 = vunpack.c.l.b16 %v827
    %v6025 = vunpack.c.l.b16 %v828
    %v6026 = vunpack.c.l.b16 %v829
    %v6027 = vunpack.c.l.b16 %v830
    %v6028 = vunpack.c.l.b16 %v831
    %v6029 = vunpack.c.l.b16 %v832
    %v6030 = vunpack.c.l.b16 %v833
    %v6031 = vunpack.c.l.b16 %v834
    %v6032 = vunpack.c.l.b16 %v835
    %v6033 = vunpack.c.l.b16 %v836
    %v6034 = vunpack.c.l.b16 %v837
    %v6035 = vunpack.c.l.b16 %v838
    %v6036 = vunpack.c.l.b16 %v839
    %v6037 = vunpack.c.l.b16 %v840
    %v6038 = vunpack.c.l.b16 %v841
    %v6039 = vunpack.c.l.b16 %v842
    %v6040 = vunpack.c.l.b16 %v843
    %v6041 = vunpack.c.l.b16 %v844
    %v6042 = vunpack.c.l.b16 %v845
    %v6043 = vunpack.c.l.b16 %v846
    %v6044 = vunpack.c.l.b16 %v847
    %v6045 = vpack.c.b16 %v6014, %v6013
    %v6046 = vpack.c.b16 %v6016, %v6015
    %v6047 = vpack.c.b16 %v6018, %v6017
    %v6048 = vpack.c.b16 %v6020, %v6019
    %v6049 = vpack.c.b16 %v6022, %v6021
    %v6050 = vpack.c.b16 %v6024, %v6023
    %v6051 = vpack.c.b16 %v6026, %v6025
    %v6052 = vpack.c.b16 %v6028, %v6027
    %v6053 = vpack.c.b16 %v6030, %v6029
    %v6054 = vpack.c.b16 %v6032, %v6031
    %v6055 = vpack.c.b16 %v6034, %v6033
    %v6056 = vpack.c.b16 %v6036, %v6035
    %v6057 = vpack.c.b16 %v6038, %v6037
    %v6058 = vpack.c.b16 %v6040, %v6039
    %v6059 = vpack.c.b16 %v6042, %v6041
    %v6060 = vpack.c.b16 %v6044, %v6043
    %6077 = vmatprep.subr.bf16.mxu0 0
    %6078 = vmatpush1.bf16.msra.mxu0 %v6045
    %6079 = vmatprep.subr.bf16.mxu0 0
    %6080 = vmatpush1.bf16.msra.mxu0 %v6046
    %6081 = vmatprep.subr.bf16.mxu0 0
    %6082 = vmatpush1.bf16.msra.mxu0 %v6047
    %6083 = vmatprep.subr.bf16.mxu0 0
    %6084 = vmatpush1.bf16.msra.mxu0 %v6048
    %6085 = vmatprep.subr.bf16.mxu0 0
    %6086 = vmatpush1.bf16.msra.mxu0 %v6049
    %6087 = vmatprep.subr.bf16.mxu0 0
    %6088 = vmatpush1.bf16.msra.mxu0 %v6050
    %6089 = vmatprep.subr.bf16.mxu0 0
    %6090 = vmatpush1.bf16.msra.mxu0 %v6051
    %6091 = vmatprep.subr.bf16.mxu0 0
    %6092 = vmatpush1.bf16.msra.mxu0 %v6052
    %6093 = vmatprep.subr.bf16.mxu0 0
    %6094 = vmatpush1.bf16.msra.mxu0 %v6053
    %6095 = vmatprep.subr.bf16.mxu0 0
    %6096 = vmatpush1.bf16.msra.mxu0 %v6054
    %6097 = vmatprep.subr.bf16.mxu0 0
    %6098 = vmatpush1.bf16.msra.mxu0 %v6055
    %6099 = vmatprep.subr.bf16.mxu0 0
    %6100 = vmatpush1.bf16.msra.mxu0 %v6056
    %6101 = vmatprep.subr.bf16.mxu0 0
    %6102 = vmatpush1.bf16.msra.mxu0 %v6057
    %6103 = vmatprep.subr.bf16.mxu0 0
    %6104 = vmatpush1.bf16.msra.mxu0 %v6058
    %6105 = vmatprep.subr.bf16.mxu0 0
    %6106 = vmatpush1.bf16.msra.mxu0 %v6059
    %6107 = vmatprep.subr.bf16.mxu0 0
    %6108 = vmatpush1.bf16.msra.mxu0 %v6060
    %6109 = vmatprep.mubr.bf16.mxu0 %v5791
    %6110 = vmatmul.mubr.bf16.gmra.mrb[0].mxu0 %v5790
    %v6111 = vpop.f32.mrb[0].mxu0
    %v6112 = vadd.f32 %v856, %v6111
    %v6113 = vpop.f32.mrb[0].mxu0
    %v6114 = vpop.f32.mrb[0].mxu0
    %v6115 = vpop.f32.mrb[0].mxu0
    %6116 = vdwg.mxu0
    %v6117 = vsel %vm1175, %v6112, -inf
    %6118 = vmax.xlane.f32.xlu0 %v6117
    %v6119 = vpop.xlane.xlu0 %6118
    %v6120 = vsub.f32 %v6112, %v6119
    %v6121 = vmul.f32 %v6120, 1.442695
    %v6122 = vpow.pop %v6121
    %v6123 = vsel %vm1175, %v6122, 0.0
    %6124 = vadd.xlane.f32.xlu0 %v6123
    %v6125 = vpop.xlane.xlu0 %6124
    %v6126 = vlog2.pop %v6125
    %v6127 = vmul.f32 %v6126, 0.6931472
    %v6128 = vadd.f32 %v6119, %v6127
    %v6129 = vsub.f32 %v6112, %v6128
    %6130 = vst [vmem:[#allocation15] sm:$0x1] %v6129
    %v6133 = vcombine.low %v5979, %v5980
    %v6135 = vunpack.c.l.s4 1966171168
    %v6136 = vunpack.c.0.s8 %v6135
    %v6137 = vlaneseq
    %v6138 = vshrl.u32 %v6137, 7
    %v6139 = vsub.s32 %v6136, %v6138
    %v6140 = vrot.slane %v6133, %v6139
    %v6141 = vcombine.high %v6140, %v6140
    %v6143 = vunpack.c.l.s4 1966171168
    %v6144 = vunpack.c.0.s8 %v6143
    %v6145 = vlaneseq
    %v6146 = vshrl.u32 %v6145, 7
    %v6147 = vsub.s32 %v6144, %v6146
    %v6148 = vrot.slane %v6141, %v6147
    %6150 = vst.msk [vmem:[#allocation16] sm:$0x3] %vm869, %v6148
    %6151 = vst.msk [vmem:[#allocation2] sm:$0x3] %vm869, %v6148
    // Predicated region
    $region46: #{attn_decoder_decode.1} parent=1 // pred_check
      _
    $region47: #{attn_decoder_decode.1} parent=1 // pred_check_branch
      %6153 = sbr.rel (0) target = $region49
    $region48: #{attn_decoder_decode.1} parent=1 // pred_region
      %s6155 = ssub.s32 16, 16
      %6156 = vsyncadd [#allocation9], %s6155
      %s6158 = sshll.u32 [#allocation15], 4
      %s6159 = int_to_ptr.vmem [resolvable:$true] %s6158
      %6161 = dma.vmem_to_hbm [thread:$0]  %s6159, 16, %s7, [#allocation9]
    $region49: #{attn_decoder_decode.1} parent=1 // pred_fallthru
      _
    // Predicated region
    $region50: #{attn_decoder_decode.1} parent=1 // pred_check
      _
    $region51: #{attn_decoder_decode.1} parent=1 // pred_check_branch
      %6163 = sbr.rel (0) target = $region53
    $region52: #{attn_decoder_decode.1} parent=1 // pred_region
      %s6165 = ssub.s32 32, 32
      %6166 = vsyncadd [#allocation17], %s6165
      %s6168 = sshll.u32 [#allocation16], 4
      %s6169 = int_to_ptr.vmem [resolvable:$true] %s6168
      %6171 = dma.vmem_to_hbm [thread:$0]  %s6169, 32, %s8, [#allocation17]
    $region53: #{attn_decoder_decode.1} parent=1 // pred_fallthru
      _
    // Predicated region
    $region54: #{attn_decoder_decode.1} parent=1 // pred_check
      _
    $region55: #{attn_decoder_decode.1} parent=1 // pred_check_branch
      %6173 = sbr.rel (0) target = $region57
    $region56: #{attn_decoder_decode.1} parent=1 // pred_region
      _
    $region57: #{attn_decoder_decode.1} parent=1 // pred_fallthru
      _
    // Predicated region
    $region58: #{attn_decoder_decode.1} parent=1 // pred_check
      _
    $region59: #{attn_decoder_decode.1} parent=1 // pred_check_branch
      %6175 = sbr.rel (0) target = $region61
    $region60: #{attn_decoder_decode.1} parent=1 // pred_region
      %6176 = dma.done [#allocation9], 16
    $region61: #{attn_decoder_decode.1} parent=1 // pred_fallthru
      _
    // Predicated region
    $region62: #{attn_decoder_decode.1} parent=1 // pred_check
      _
    $region63: #{attn_decoder_decode.1} parent=1 // pred_check_branch
      %6178 = sbr.rel (0) target = $region65
    $region64: #{attn_decoder_decode.1} parent=1 // pred_region
      %6179 = dma.done [#allocation17], 32
    $region65: #{attn_decoder_decode.1} parent=1 // pred_fallthru
      _
    // Predicated region
    $region66: #{attn_decoder_decode.1} parent=1 // pred_check
      _
    $region67: #{attn_decoder_decode.1} parent=1 // pred_check_branch
      %6181 = sbr.rel (0) target = $region69
    $region68: #{attn_decoder_decode.1} parent=1 // pred_region
      _
    $region69: #{attn_decoder_decode.1} parent=1 // pred_fallthru
      _
    %6182 = vsyncpa [#allocation8], 1
    %6183 = vsyncpa [#allocation11], 1
    %6184 = vsyncpa [#allocation14], 1
    %6185 = vsyncpa [#allocation9], 1
    %6186 = vsyncpa [#allocation17], 1

</llo_original>
